<compile_context>
chip_gen: v5e
topology: v5e:2x2
jax: 0.10.0
libtpu: 0.0.40
codegen_flags: <defaults>
</compile_context>

<pallas_src>
import functools

import jax
import jax.numpy as jnp
from jax import lax
from jax.experimental import pallas as pl
from jax.experimental.pallas import tpu as pltpu

NEG_BIG = -1e30  # pad value for scores -> relu(1 - t + x_pad) == 0


def _mlml_kernel(xT_ref, y_ref, out_ref, *, n_classes, tb):
    # xT_ref: (1, Cp, TB) f32  -- per-block transposed scores (class k over sublanes)
    # y_ref : (TB, Cp)    i32  -- target class indices, -1 padded
    # out_ref: (1, 1, TB) f32  -- per-sample losses for this block
    xT = xT_ref[0]                                            # (Cp, TB) f32
    cp = xT.shape[0]

    # Hoisted constants (shared by all TB rows of this block).
    k_iota = lax.broadcasted_iota(jnp.int32, (cp, cp), 0)     # class index over sublanes
    lane_cp = lax.broadcasted_iota(jnp.int32, (1, cp), 1)     # target-slot index over lanes
    lane_tb = lax.broadcasted_iota(jnp.int32, (1, tb), 1)     # row selector lanes

    def row_loss(r, acc):
        y_r = y_ref[pl.ds(r, 1), :]                           # (1, Cp) i32

        # Contiguous non-negative prefix: valid slots are strictly before the first -1.
        first_neg = jnp.min(jnp.where(y_r < 0, lane_cp, cp))  # scalar i32
        valid_r = lane_cp < first_neg                         # (1, Cp) bool
        vf_r = valid_r.astype(jnp.float32)                    # (1, Cp)
        y_safe = jnp.where(valid_r, y_r, 0)                   # (1, Cp)

        # Scores of row r as a column (Cp, 1): masked lane reduce of transposed block.
        sel = (lane_tb == r).astype(jnp.float32)              # (1, TB)
        x_col = jnp.sum(xT * sel, axis=1, keepdims=True)      # (Cp, 1)

        # One-hot membership M[k, j] = (k == y[j]); pure VPU compare (no matmul).
        m = (k_iota == y_safe).astype(jnp.float32)            # (Cp, Cp)

        # Gathered target scores t[j] = x[y[j]]  (exact f32 select + sublane reduce).
        t_row = jnp.sum(m * x_col, axis=0, keepdims=True)     # (1, Cp)

        # Classes that are targets of this row (lane reduce).
        is_tgt = jnp.sum(m * vf_r, axis=1, keepdims=True)     # (Cp, 1)
        not_tgt = (is_tgt == 0.0).astype(jnp.float32)         # (Cp, 1)

        # Hinge: W[k, j] = [j valid] * [k not target] * relu(1 - x[y[j]] + x[k]).
        w = jnp.maximum(1.0 - t_row + x_col, 0.0) * (vf_r * not_tgt)   # (Cp, Cp)
        loss_r = jnp.sum(w)                                   # scalar

        return acc + jnp.where(lane_tb == r, loss_r, 0.0)     # (1, TB)

    acc = lax.fori_loop(0, tb, row_loss,
                        jnp.zeros((1, tb), jnp.float32), unroll=True)
    out_ref[0] = acc * (1.0 / float(n_classes))


def multilabel_margin_loss(x, y, size_average=True, reduce=True):
    """JAX/Pallas equivalent of F.multilabel_margin_loss."""
    x = jnp.asarray(x, jnp.float32)
    y = jnp.asarray(y, jnp.int32)
    squeeze = x.ndim == 1
    if squeeze:
        x = x[None, :]
        y = y[None, :]
    n, c = x.shape

    TB = 8
    cp = max(128, ((c + 127) // 128) * 128)
    n_pad = ((n + TB - 1) // TB) * TB
    n_blocks = n_pad // TB

    # Pad classes with NEG_BIG (zero hinge contribution), pad rows with zeros
    # (their targets are all -1 -> loss 0).
    x_p = jnp.pad(x, ((0, 0), (0, cp - c)), constant_values=NEG_BIG)
    x_p = jnp.pad(x_p, ((0, n_pad - n), (0, 0)), constant_values=0.0)
    y_p = jnp.pad(y, ((0, n_pad - n), (0, cp - c)), constant_values=-1)

    # Per-block transposed scores: (n_blocks, Cp, TB) -- wrapper-side layout plumbing.
    xT = x_p.reshape(n_blocks, TB, cp).transpose(0, 2, 1)

    kernel = functools.partial(_mlml_kernel, n_classes=c, tb=TB)
    per_block = pl.pallas_call(
        kernel,
        out_shape=jax.ShapeDtypeStruct((n_blocks, 1, TB), jnp.float32),
        grid_spec=pltpu.PrefetchScalarGridSpec(
            num_scalar_prefetch=0,
            grid=(n_blocks,),
            in_specs=[
                pl.BlockSpec((1, cp, TB), lambda i: (i, 0, 0)),
                pl.BlockSpec((TB, cp), lambda i: (i, 0)),
            ],
            out_specs=pl.BlockSpec((1, 1, TB), lambda i: (i, 0, 0)),
        ),
        compiler_params=pltpu.CompilerParams(
            dimension_semantics=("parallel",)),
    )(xT, y_p)

    per_sample = per_block.reshape(n_pad)[:n]

    if not reduce:
        return per_sample[0] if squeeze else per_sample
    if size_average:
        return jnp.mean(per_sample)
    return jnp.sum(per_sample)


def _reference_loss(x, y):
    """Pure-JAX reference of per-sample MultiLabelMarginLoss (for validation)."""
    x = jnp.asarray(x, jnp.float32)
    y = jnp.asarray(y, jnp.int32)
    n, c = x.shape

    def per(xr, yr):
        valid = jnp.cumsum((yr < 0).astype(jnp.int32)) == 0
        y_safe = jnp.where(valid, yr, 0)
        onehot = jax.nn.one_hot(y_safe, c, dtype=jnp.float32) * valid[:, None]
        is_tgt = jnp.sum(onehot, axis=0) > 0
        t = xr[y_safe]
        contrib = jnp.maximum(0.0, 1.0 - t[:, None] + xr[None, :])
        contrib = contrib * valid[:, None].astype(jnp.float32)
        contrib = contrib * (~is_tgt)[None, :].astype(jnp.float32)
        return jnp.sum(contrib) / c

    return jax.vmap(per)(x, y)


if __name__ == "__main__":
    key = jax.random.PRNGKey(0)

    # --- Test 1: small batch, C=8 (matches original spec example) ---------------
    N, C = 4, 8
    x = jax.random.normal(key, (N, C), dtype=jnp.float32)
    y = jnp.array(
        [[3, 0, -1, -1, -1, -1, -1, -1],
         [1, 5, 2, -1, -1, -1, -1, -1],
         [7, -1, -1, -1, -1, -1, -1, -1],
         [0, 1, 2, 3, 4, 5, 6, 7]],
        dtype=jnp.int32,
    )

    loss_mean = multilabel_margin_loss(x, y)                    # default: mean
    loss_per = multilabel_margin_loss(x, y, reduce=False)
    loss_sum = multilabel_margin_loss(x, y, size_average=False)
    jax.block_until_ready((loss_mean, loss_per, loss_sum))

    ref_per = _reference_loss(x, y)
    assert jnp.allclose(loss_per, ref_per, atol=1e-5, rtol=1e-5), (loss_per, ref_per)
    assert jnp.allclose(loss_mean, jnp.mean(ref_per), atol=1e-5, rtol=1e-5)
    assert jnp.allclose(loss_sum, jnp.sum(ref_per), atol=1e-5, rtol=1e-5)

    # 1-D (single sample) path
    loss_1d = multilabel_margin_loss(x[0], y[0], reduce=False)
    jax.block_until_ready(loss_1d)
    assert jnp.allclose(loss_1d, ref_per[0], atol=1e-5, rtol=1e-5)

    # --- Test 2: N not a multiple of 8, C not a multiple of 128, multi-block -----
    N2, C2 = 12, 33
    x2 = jax.random.normal(jax.random.PRNGKey(1), (N2, C2), dtype=jnp.float32)
    counts = [1, 2, 3, 0, 5, 1, 7, 2, 3, 4, 1, 6]
    y2_rows = []
    for i, cnt in enumerate(counts):
        idx = [(i * 7 + 3 * t) % C2 for t in range(cnt)]
        y2_rows.append(idx + [-1] * (C2 - cnt))
    y2 = jnp.array(y2_rows, dtype=jnp.int32)

    loss2_per = multilabel_margin_loss(x2, y2, reduce=False)
    loss2_mean = multilabel_margin_loss(x2, y2)
    jax.block_until_ready((loss2_per, loss2_mean))

    ref2_per = _reference_loss(x2, y2)
    assert jnp.allclose(loss2_per, ref2_per, atol=1e-5, rtol=1e-5), (loss2_per, ref2_per)
    assert jnp.allclose(loss2_mean, jnp.mean(ref2_per), atol=1e-5, rtol=1e-5)

    print("KERNEL_OK")
</pallas_src>

<mosaic_0001>
module attributes {stable_mosaic.version = 11 : i64} {
  func.func @_mlml_kernel(%arg0: i32, %arg1: memref<1x128x8xf32, #tpu.memory_space<vmem>>, %arg2: memref<8x128xi32, #tpu.memory_space<vmem>>, %arg3: memref<1x1x8xf32, #tpu.memory_space<vmem>>) attributes {dimension_semantics = [#tpu.dimension_semantics<parallel>], iteration_bounds = array<i64: 1>, scalar_prefetch = 0 : i64, scratch_operands = 0 : i64, tpu.core_type = #tpu.core_type<tc>, window_params = [{transform_indices = @transform_0, window_bounds = array<i64: 1, 128, 8>}, {transform_indices = @transform_1, window_bounds = array<i64: 8, 128>}, {transform_indices = @transform_2, window_bounds = array<i64: 1, 1, 8>}]} {
    %c0 = arith.constant 0 : index
    %c0_0 = arith.constant 0 : index
    %c0_1 = arith.constant 0 : index
    %0 = vector.load %arg1[%c0, %c0_0, %c0_1] : memref<1x128x8xf32, #tpu.memory_space<vmem>>, vector<1x128x8xf32>
    %1 = vector.shape_cast %0 : vector<1x128x8xf32> to vector<128x8xf32>
    %2 = tpu.iota {dimensions = array<i32: 0>} : vector<128x128xi32>
    %3 = tpu.iota {dimensions = array<i32: 1>} : vector<1x128xi32>
    %4 = tpu.iota {dimensions = array<i32: 1>} : vector<1x8xi32>
    %cst = arith.constant 0.000000e+00 : f32
    %5 = vector.broadcast %cst : f32 to vector<1x8xf32>
    %c0_i32 = arith.constant 0 : i32
    %6 = arith.index_cast %c0_i32 : i32 to index
    %c0_2 = arith.constant 0 : index
    %7 = vector.load %arg2[%6, %c0_2] : memref<8x128xi32, #tpu.memory_space<vmem>>, vector<1x128xi32>
    %c0_i32_3 = arith.constant 0 : i32
    %8 = vector.broadcast %c0_i32_3 : i32 to vector<1x128xi32>
    %9 = arith.cmpi slt, %7, %8 : vector<1x128xi32>
    %c128_i32 = arith.constant 128 : i32
    %10 = vector.broadcast %c128_i32 : i32 to vector<1x128xi32>
    %11 = arith.select %9, %3, %10 : vector<1x128xi1>, vector<1x128xi32>
    %12 = vector.shape_cast %11 : vector<1x128xi32> to vector<1x1x128xi32>
    %cst_4 = arith.constant dense<2147483647> : vector<1xi32>
    %13 = vector.multi_reduction <minsi>, %12, %cst_4 [1, 2] : vector<1x1x128xi32> to vector<1xi32>
    %14 = vector.shape_cast %13 : vector<1xi32> to vector<1x1x1xi32>
    %15 = vector.extract %14[0, 0, 0] : i32 from vector<1x1x1xi32>
    %16 = vector.broadcast %15 : i32 to vector<1x128xi32>
    %17 = arith.cmpi slt, %3, %16 : vector<1x128xi32>
    %18 = arith.extui %17 : vector<1x128xi1> to vector<1x128xi32>
    %19 = arith.sitofp %18 : vector<1x128xi32> to vector<1x128xf32>
    %c0_i32_5 = arith.constant 0 : i32
    %20 = vector.broadcast %c0_i32_5 : i32 to vector<1x128xi32>
    %21 = arith.select %17, %7, %20 : vector<1x128xi1>, vector<1x128xi32>
    %22 = vector.broadcast %c0_i32 : i32 to vector<1x8xi32>
    %23 = arith.cmpi eq, %4, %22 : vector<1x8xi32>
    %24 = arith.extui %23 : vector<1x8xi1> to vector<1x8xi32>
    %25 = arith.sitofp %24 : vector<1x8xi32> to vector<1x8xf32>
    %26 = vector.broadcast %25 : vector<1x8xf32> to vector<128x8xf32>
    %27 = arith.mulf %1, %26 : vector<128x8xf32>
    %cst_6 = arith.constant dense<0.000000e+00> : vector<128xf32>
    %28 = vector.multi_reduction <add>, %27, %cst_6 [1] : vector<128x8xf32> to vector<128xf32>
    %29 = vector.shape_cast %28 : vector<128xf32> to vector<128x1xf32>
    %30 = vector.broadcast %21 : vector<1x128xi32> to vector<128x128xi32>
    %31 = arith.cmpi eq, %2, %30 : vector<128x128xi32>
    %32 = arith.extui %31 : vector<128x128xi1> to vector<128x128xi32>
    %33 = arith.sitofp %32 : vector<128x128xi32> to vector<128x128xf32>
    %34 = vector.broadcast %29 : vector<128x1xf32> to vector<128x128xf32>
    %35 = arith.mulf %33, %34 : vector<128x128xf32>
    %cst_7 = arith.constant dense<0.000000e+00> : vector<128xf32>
    %36 = vector.multi_reduction <add>, %35, %cst_7 [0] : vector<128x128xf32> to vector<128xf32>
    %37 = vector.shape_cast %36 : vector<128xf32> to vector<1x128xf32>
    %38 = vector.broadcast %19 : vector<1x128xf32> to vector<128x128xf32>
    %39 = arith.mulf %33, %38 : vector<128x128xf32>
    %cst_8 = arith.constant dense<0.000000e+00> : vector<128xf32>
    %40 = vector.multi_reduction <add>, %39, %cst_8 [1] : vector<128x128xf32> to vector<128xf32>
    %41 = vector.shape_cast %40 : vector<128xf32> to vector<128x1xf32>
    %cst_9 = arith.constant 0.000000e+00 : f32
    %42 = vector.broadcast %cst_9 : f32 to vector<128x1xf32>
    %43 = arith.cmpf oeq, %41, %42 : vector<128x1xf32>
    %44 = arith.extui %43 : vector<128x1xi1> to vector<128x1xi32>
    %45 = arith.sitofp %44 : vector<128x1xi32> to vector<128x1xf32>
    %cst_10 = arith.constant 1.000000e+00 : f32
    %46 = vector.broadcast %cst_10 : f32 to vector<1x128xf32>
    %47 = arith.subf %46, %37 : vector<1x128xf32>
    %48 = vector.broadcast %47 : vector<1x128xf32> to vector<128x128xf32>
    %49 = vector.broadcast %29 : vector<128x1xf32> to vector<128x128xf32>
    %50 = arith.addf %48, %49 : vector<128x128xf32>
    %cst_11 = arith.constant 0.000000e+00 : f32
    %51 = vector.broadcast %cst_11 : f32 to vector<128x128xf32>
    %52 = arith.maximumf %50, %51 : vector<128x128xf32>
    %53 = vector.broadcast %19 : vector<1x128xf32> to vector<128x128xf32>
    %54 = vector.broadcast %45 : vector<128x1xf32> to vector<128x128xf32>
    %55 = arith.mulf %53, %54 : vector<128x128xf32>
    %56 = arith.mulf %52, %55 : vector<128x128xf32>
    %57 = vector.shape_cast %56 : vector<128x128xf32> to vector<1x128x128xf32>
    %cst_12 = arith.constant dense<0.000000e+00> : vector<1xf32>
    %58 = vector.multi_reduction <add>, %57, %cst_12 [1, 2] : vector<1x128x128xf32> to vector<1xf32>
    %59 = vector.shape_cast %58 : vector<1xf32> to vector<1x1x1xf32>
    %60 = vector.extract %59[0, 0, 0] : f32 from vector<1x1x1xf32>
    %61 = vector.broadcast %c0_i32 : i32 to vector<1x8xi32>
    %62 = arith.cmpi eq, %4, %61 : vector<1x8xi32>
    %cst_13 = arith.constant 0.000000e+00 : f32
    %63 = vector.broadcast %60 : f32 to vector<1x8xf32>
    %64 = vector.broadcast %cst_13 : f32 to vector<1x8xf32>
    %65 = arith.select %62, %63, %64 : vector<1x8xi1>, vector<1x8xf32>
    %66 = arith.addf %5, %65 : vector<1x8xf32>
    %c1_i32 = arith.constant 1 : i32
    %67 = arith.index_cast %c1_i32 : i32 to index
    %c0_14 = arith.constant 0 : index
    %68 = vector.load %arg2[%67, %c0_14] : memref<8x128xi32, #tpu.memory_space<vmem>>, vector<1x128xi32>
    %c0_i32_15 = arith.constant 0 : i32
    %69 = vector.broadcast %c0_i32_15 : i32 to vector<1x128xi32>
    %70 = arith.cmpi slt, %68, %69 : vector<1x128xi32>
    %c128_i32_16 = arith.constant 128 : i32
    %71 = vector.broadcast %c128_i32_16 : i32 to vector<1x128xi32>
    %72 = arith.select %70, %3, %71 : vector<1x128xi1>, vector<1x128xi32>
    %73 = vector.shape_cast %72 : vector<1x128xi32> to vector<1x1x128xi32>
    %cst_17 = arith.constant dense<2147483647> : vector<1xi32>
    %74 = vector.multi_reduction <minsi>, %73, %cst_17 [1, 2] : vector<1x1x128xi32> to vector<1xi32>
    %75 = vector.shape_cast %74 : vector<1xi32> to vector<1x1x1xi32>
    %76 = vector.extract %75[0, 0, 0] : i32 from vector<1x1x1xi32>
    %77 = vector.broadcast %76 : i32 to vector<1x128xi32>
    %78 = arith.cmpi slt, %3, %77 : vector<1x128xi32>
    %79 = arith.extui %78 : vector<1x128xi1> to vector<1x128xi32>
    %80 = arith.sitofp %79 : vector<1x128xi32> to vector<1x128xf32>
    %c0_i32_18 = arith.constant 0 : i32
    %81 = vector.broadcast %c0_i32_18 : i32 to vector<1x128xi32>
    %82 = arith.select %78, %68, %81 : vector<1x128xi1>, vector<1x128xi32>
    %83 = vector.broadcast %c1_i32 : i32 to vector<1x8xi32>
    %84 = arith.cmpi eq, %4, %83 : vector<1x8xi32>
    %85 = arith.extui %84 : vector<1x8xi1> to vector<1x8xi32>
    %86 = arith.sitofp %85 : vector<1x8xi32> to vector<1x8xf32>
    %87 = vector.broadcast %86 : vector<1x8xf32> to vector<128x8xf32>
    %88 = arith.mulf %1, %87 : vector<128x8xf32>
    %cst_19 = arith.constant dense<0.000000e+00> : vector<128xf32>
    %89 = vector.multi_reduction <add>, %88, %cst_19 [1] : vector<128x8xf32> to vector<128xf32>
    %90 = vector.shape_cast %89 : vector<128xf32> to vector<128x1xf32>
    %91 = vector.broadcast %82 : vector<1x128xi32> to vector<128x128xi32>
    %92 = arith.cmpi eq, %2, %91 : vector<128x128xi32>
    %93 = arith.extui %92 : vector<128x128xi1> to vector<128x128xi32>
    %94 = arith.sitofp %93 : vector<128x128xi32> to vector<128x128xf32>
    %95 = vector.broadcast %90 : vector<128x1xf32> to vector<128x128xf32>
    %96 = arith.mulf %94, %95 : vector<128x128xf32>
    %cst_20 = arith.constant dense<0.000000e+00> : vector<128xf32>
    %97 = vector.multi_reduction <add>, %96, %cst_20 [0] : vector<128x128xf32> to vector<128xf32>
    %98 = vector.shape_cast %97 : vector<128xf32> to vector<1x128xf32>
    %99 = vector.broadcast %80 : vector<1x128xf32> to vector<128x128xf32>
    %100 = arith.mulf %94, %99 : vector<128x128xf32>
    %cst_21 = arith.constant dense<0.000000e+00> : vector<128xf32>
    %101 = vector.multi_reduction <add>, %100, %cst_21 [1] : vector<128x128xf32> to vector<128xf32>
    %102 = vector.shape_cast %101 : vector<128xf32> to vector<128x1xf32>
    %cst_22 = arith.constant 0.000000e+00 : f32
    %103 = vector.broadcast %cst_22 : f32 to vector<128x1xf32>
    %104 = arith.cmpf oeq, %102, %103 : vector<128x1xf32>
    %105 = arith.extui %104 : vector<128x1xi1> to vector<128x1xi32>
    %106 = arith.sitofp %105 : vector<128x1xi32> to vector<128x1xf32>
    %cst_23 = arith.constant 1.000000e+00 : f32
    %107 = vector.broadcast %cst_23 : f32 to vector<1x128xf32>
    %108 = arith.subf %107, %98 : vector<1x128xf32>
    %109 = vector.broadcast %108 : vector<1x128xf32> to vector<128x128xf32>
    %110 = vector.broadcast %90 : vector<128x1xf32> to vector<128x128xf32>
    %111 = arith.addf %109, %110 : vector<128x128xf32>
    %cst_24 = arith.constant 0.000000e+00 : f32
    %112 = vector.broadcast %cst_24 : f32 to vector<128x128xf32>
    %113 = arith.maximumf %111, %112 : vector<128x128xf32>
    %114 = vector.broadcast %80 : vector<1x128xf32> to vector<128x128xf32>
    %115 = vector.broadcast %106 : vector<128x1xf32> to vector<128x128xf32>
    %116 = arith.mulf %114, %115 : vector<128x128xf32>
    %117 = arith.mulf %113, %116 : vector<128x128xf32>
    %118 = vector.shape_cast %117 : vector<128x128xf32> to vector<1x128x128xf32>
    %cst_25 = arith.constant dense<0.000000e+00> : vector<1xf32>
    %119 = vector.multi_reduction <add>, %118, %cst_25 [1, 2] : vector<1x128x128xf32> to vector<1xf32>
    %120 = vector.shape_cast %119 : vector<1xf32> to vector<1x1x1xf32>
    %121 = vector.extract %120[0, 0, 0] : f32 from vector<1x1x1xf32>
    %122 = vector.broadcast %c1_i32 : i32 to vector<1x8xi32>
    %123 = arith.cmpi eq, %4, %122 : vector<1x8xi32>
    %cst_26 = arith.constant 0.000000e+00 : f32
    %124 = vector.broadcast %121 : f32 to vector<1x8xf32>
    %125 = vector.broadcast %cst_26 : f32 to vector<1x8xf32>
    %126 = arith.select %123, %124, %125 : vector<1x8xi1>, vector<1x8xf32>
    %127 = arith.addf %66, %126 : vector<1x8xf32>
    %c2_i32 = arith.constant 2 : i32
    %128 = arith.index_cast %c2_i32 : i32 to index
    %c0_27 = arith.constant 0 : index
    %129 = vector.load %arg2[%128, %c0_27] : memref<8x128xi32, #tpu.memory_space<vmem>>, vector<1x128xi32>
    %c0_i32_28 = arith.constant 0 : i32
    %130 = vector.broadcast %c0_i32_28 : i32 to vector<1x128xi32>
    %131 = arith.cmpi slt, %129, %130 : vector<1x128xi32>
    %c128_i32_29 = arith.constant 128 : i32
    %132 = vector.broadcast %c128_i32_29 : i32 to vector<1x128xi32>
    %133 = arith.select %131, %3, %132 : vector<1x128xi1>, vector<1x128xi32>
    %134 = vector.shape_cast %133 : vector<1x128xi32> to vector<1x1x128xi32>
    %cst_30 = arith.constant dense<2147483647> : vector<1xi32>
    %135 = vector.multi_reduction <minsi>, %134, %cst_30 [1, 2] : vector<1x1x128xi32> to vector<1xi32>
    %136 = vector.shape_cast %135 : vector<1xi32> to vector<1x1x1xi32>
    %137 = vector.extract %136[0, 0, 0] : i32 from vector<1x1x1xi32>
    %138 = vector.broadcast %137 : i32 to vector<1x128xi32>
    %139 = arith.cmpi slt, %3, %138 : vector<1x128xi32>
    %140 = arith.extui %139 : vector<1x128xi1> to vector<1x128xi32>
    %141 = arith.sitofp %140 : vector<1x128xi32> to vector<1x128xf32>
    %c0_i32_31 = arith.constant 0 : i32
    %142 = vector.broadcast %c0_i32_31 : i32 to vector<1x128xi32>
    %143 = arith.select %139, %129, %142 : vector<1x128xi1>, vector<1x128xi32>
    %144 = vector.broadcast %c2_i32 : i32 to vector<1x8xi32>
    %145 = arith.cmpi eq, %4, %144 : vector<1x8xi32>
    %146 = arith.extui %145 : vector<1x8xi1> to vector<1x8xi32>
    %147 = arith.sitofp %146 : vector<1x8xi32> to vector<1x8xf32>
    %148 = vector.broadcast %147 : vector<1x8xf32> to vector<128x8xf32>
    %149 = arith.mulf %1, %148 : vector<128x8xf32>
    %cst_32 = arith.constant dense<0.000000e+00> : vector<128xf32>
    %150 = vector.multi_reduction <add>, %149, %cst_32 [1] : vector<128x8xf32> to vector<128xf32>
    %151 = vector.shape_cast %150 : vector<128xf32> to vector<128x1xf32>
    %152 = vector.broadcast %143 : vector<1x128xi32> to vector<128x128xi32>
    %153 = arith.cmpi eq, %2, %152 : vector<128x128xi32>
    %154 = arith.extui %153 : vector<128x128xi1> to vector<128x128xi32>
    %155 = arith.sitofp %154 : vector<128x128xi32> to vector<128x128xf32>
    %156 = vector.broadcast %151 : vector<128x1xf32> to vector<128x128xf32>
    %157 = arith.mulf %155, %156 : vector<128x128xf32>
    %cst_33 = arith.constant dense<0.000000e+00> : vector<128xf32>
    %158 = vector.multi_reduction <add>, %157, %cst_33 [0] : vector<128x128xf32> to vector<128xf32>
    %159 = vector.shape_cast %158 : vector<128xf32> to vector<1x128xf32>
    %160 = vector.broadcast %141 : vector<1x128xf32> to vector<128x128xf32>
    %161 = arith.mulf %155, %160 : vector<128x128xf32>
    %cst_34 = arith.constant dense<0.000000e+00> : vector<128xf32>
    %162 = vector.multi_reduction <add>, %161, %cst_34 [1] : vector<128x128xf32> to vector<128xf32>
    %163 = vector.shape_cast %162 : vector<128xf32> to vector<128x1xf32>
    %cst_35 = arith.constant 0.000000e+00 : f32
    %164 = vector.broadcast %cst_35 : f32 to vector<128x1xf32>
    %165 = arith.cmpf oeq, %163, %164 : vector<128x1xf32>
    %166 = arith.extui %165 : vector<128x1xi1> to vector<128x1xi32>
    %167 = arith.sitofp %166 : vector<128x1xi32> to vector<128x1xf32>
    %cst_36 = arith.constant 1.000000e+00 : f32
    %168 = vector.broadcast %cst_36 : f32 to vector<1x128xf32>
    %169 = arith.subf %168, %159 : vector<1x128xf32>
    %170 = vector.broadcast %169 : vector<1x128xf32> to vector<128x128xf32>
    %171 = vector.broadcast %151 : vector<128x1xf32> to vector<128x128xf32>
    %172 = arith.addf %170, %171 : vector<128x128xf32>
    %cst_37 = arith.constant 0.000000e+00 : f32
    %173 = vector.broadcast %cst_37 : f32 to vector<128x128xf32>
    %174 = arith.maximumf %172, %173 : vector<128x128xf32>
    %175 = vector.broadcast %141 : vector<1x128xf32> to vector<128x128xf32>
    %176 = vector.broadcast %167 : vector<128x1xf32> to vector<128x128xf32>
    %177 = arith.mulf %175, %176 : vector<128x128xf32>
    %178 = arith.mulf %174, %177 : vector<128x128xf32>
    %179 = vector.shape_cast %178 : vector<128x128xf32> to vector<1x128x128xf32>
    %cst_38 = arith.constant dense<0.000000e+00> : vector<1xf32>
    %180 = vector.multi_reduction <add>, %179, %cst_38 [1, 2] : vector<1x128x128xf32> to vector<1xf32>
    %181 = vector.shape_cast %180 : vector<1xf32> to vector<1x1x1xf32>
    %182 = vector.extract %181[0, 0, 0] : f32 from vector<1x1x1xf32>
    %183 = vector.broadcast %c2_i32 : i32 to vector<1x8xi32>
    %184 = arith.cmpi eq, %4, %183 : vector<1x8xi32>
    %cst_39 = arith.constant 0.000000e+00 : f32
    %185 = vector.broadcast %182 : f32 to vector<1x8xf32>
    %186 = vector.broadcast %cst_39 : f32 to vector<1x8xf32>
    %187 = arith.select %184, %185, %186 : vector<1x8xi1>, vector<1x8xf32>
    %188 = arith.addf %127, %187 : vector<1x8xf32>
    %c3_i32 = arith.constant 3 : i32
    %189 = arith.index_cast %c3_i32 : i32 to index
    %c0_40 = arith.constant 0 : index
    %190 = vector.load %arg2[%189, %c0_40] : memref<8x128xi32, #tpu.memory_space<vmem>>, vector<1x128xi32>
    %c0_i32_41 = arith.constant 0 : i32
    %191 = vector.broadcast %c0_i32_41 : i32 to vector<1x128xi32>
    %192 = arith.cmpi slt, %190, %191 : vector<1x128xi32>
    %c128_i32_42 = arith.constant 128 : i32
    %193 = vector.broadcast %c128_i32_42 : i32 to vector<1x128xi32>
    %194 = arith.select %192, %3, %193 : vector<1x128xi1>, vector<1x128xi32>
    %195 = vector.shape_cast %194 : vector<1x128xi32> to vector<1x1x128xi32>
    %cst_43 = arith.constant dense<2147483647> : vector<1xi32>
    %196 = vector.multi_reduction <minsi>, %195, %cst_43 [1, 2] : vector<1x1x128xi32> to vector<1xi32>
    %197 = vector.shape_cast %196 : vector<1xi32> to vector<1x1x1xi32>
    %198 = vector.extract %197[0, 0, 0] : i32 from vector<1x1x1xi32>
    %199 = vector.broadcast %198 : i32 to vector<1x128xi32>
    %200 = arith.cmpi slt, %3, %199 : vector<1x128xi32>
    %201 = arith.extui %200 : vector<1x128xi1> to vector<1x128xi32>
    %202 = arith.sitofp %201 : vector<1x128xi32> to vector<1x128xf32>
    %c0_i32_44 = arith.constant 0 : i32
    %203 = vector.broadcast %c0_i32_44 : i32 to vector<1x128xi32>
    %204 = arith.select %200, %190, %203 : vector<1x128xi1>, vector<1x128xi32>
    %205 = vector.broadcast %c3_i32 : i32 to vector<1x8xi32>
    %206 = arith.cmpi eq, %4, %205 : vector<1x8xi32>
    %207 = arith.extui %206 : vector<1x8xi1> to vector<1x8xi32>
    %208 = arith.sitofp %207 : vector<1x8xi32> to vector<1x8xf32>
    %209 = vector.broadcast %208 : vector<1x8xf32> to vector<128x8xf32>
    %210 = arith.mulf %1, %209 : vector<128x8xf32>
    %cst_45 = arith.constant dense<0.000000e+00> : vector<128xf32>
    %211 = vector.multi_reduction <add>, %210, %cst_45 [1] : vector<128x8xf32> to vector<128xf32>
    %212 = vector.shape_cast %211 : vector<128xf32> to vector<128x1xf32>
    %213 = vector.broadcast %204 : vector<1x128xi32> to vector<128x128xi32>
    %214 = arith.cmpi eq, %2, %213 : vector<128x128xi32>
    %215 = arith.extui %214 : vector<128x128xi1> to vector<128x128xi32>
    %216 = arith.sitofp %215 : vector<128x128xi32> to vector<128x128xf32>
    %217 = vector.broadcast %212 : vector<128x1xf32> to vector<128x128xf32>
    %218 = arith.mulf %216, %217 : vector<128x128xf32>
    %cst_46 = arith.constant dense<0.000000e+00> : vector<128xf32>
    %219 = vector.multi_reduction <add>, %218, %cst_46 [0] : vector<128x128xf32> to vector<128xf32>
    %220 = vector.shape_cast %219 : vector<128xf32> to vector<1x128xf32>
    %221 = vector.broadcast %202 : vector<1x128xf32> to vector<128x128xf32>
    %222 = arith.mulf %216, %221 : vector<128x128xf32>
    %cst_47 = arith.constant dense<0.000000e+00> : vector<128xf32>
    %223 = vector.multi_reduction <add>, %222, %cst_47 [1] : vector<128x128xf32> to vector<128xf32>
    %224 = vector.shape_cast %223 : vector<128xf32> to vector<128x1xf32>
    %cst_48 = arith.constant 0.000000e+00 : f32
    %225 = vector.broadcast %cst_48 : f32 to vector<128x1xf32>
    %226 = arith.cmpf oeq, %224, %225 : vector<128x1xf32>
    %227 = arith.extui %226 : vector<128x1xi1> to vector<128x1xi32>
    %228 = arith.sitofp %227 : vector<128x1xi32> to vector<128x1xf32>
    %cst_49 = arith.constant 1.000000e+00 : f32
    %229 = vector.broadcast %cst_49 : f32 to vector<1x128xf32>
    %230 = arith.subf %229, %220 : vector<1x128xf32>
    %231 = vector.broadcast %230 : vector<1x128xf32> to vector<128x128xf32>
    %232 = vector.broadcast %212 : vector<128x1xf32> to vector<128x128xf32>
    %233 = arith.addf %231, %232 : vector<128x128xf32>
    %cst_50 = arith.constant 0.000000e+00 : f32
    %234 = vector.broadcast %cst_50 : f32 to vector<128x128xf32>
    %235 = arith.maximumf %233, %234 : vector<128x128xf32>
    %236 = vector.broadcast %202 : vector<1x128xf32> to vector<128x128xf32>
    %237 = vector.broadcast %228 : vector<128x1xf32> to vector<128x128xf32>
    %238 = arith.mulf %236, %237 : vector<128x128xf32>
    %239 = arith.mulf %235, %238 : vector<128x128xf32>
    %240 = vector.shape_cast %239 : vector<128x128xf32> to vector<1x128x128xf32>
    %cst_51 = arith.constant dense<0.000000e+00> : vector<1xf32>
    %241 = vector.multi_reduction <add>, %240, %cst_51 [1, 2] : vector<1x128x128xf32> to vector<1xf32>
    %242 = vector.shape_cast %241 : vector<1xf32> to vector<1x1x1xf32>
    %243 = vector.extract %242[0, 0, 0] : f32 from vector<1x1x1xf32>
    %244 = vector.broadcast %c3_i32 : i32 to vector<1x8xi32>
    %245 = arith.cmpi eq, %4, %244 : vector<1x8xi32>
    %cst_52 = arith.constant 0.000000e+00 : f32
    %246 = vector.broadcast %243 : f32 to vector<1x8xf32>
    %247 = vector.broadcast %cst_52 : f32 to vector<1x8xf32>
    %248 = arith.select %245, %246, %247 : vector<1x8xi1>, vector<1x8xf32>
    %249 = arith.addf %188, %248 : vector<1x8xf32>
    %c4_i32 = arith.constant 4 : i32
    %250 = arith.index_cast %c4_i32 : i32 to index
    %c0_53 = arith.constant 0 : index
    %251 = vector.load %arg2[%250, %c0_53] : memref<8x128xi32, #tpu.memory_space<vmem>>, vector<1x128xi32>
    %c0_i32_54 = arith.constant 0 : i32
    %252 = vector.broadcast %c0_i32_54 : i32 to vector<1x128xi32>
    %253 = arith.cmpi slt, %251, %252 : vector<1x128xi32>
    %c128_i32_55 = arith.constant 128 : i32
    %254 = vector.broadcast %c128_i32_55 : i32 to vector<1x128xi32>
    %255 = arith.select %253, %3, %254 : vector<1x128xi1>, vector<1x128xi32>
    %256 = vector.shape_cast %255 : vector<1x128xi32> to vector<1x1x128xi32>
    %cst_56 = arith.constant dense<2147483647> : vector<1xi32>
    %257 = vector.multi_reduction <minsi>, %256, %cst_56 [1, 2] : vector<1x1x128xi32> to vector<1xi32>
    %258 = vector.shape_cast %257 : vector<1xi32> to vector<1x1x1xi32>
    %259 = vector.extract %258[0, 0, 0] : i32 from vector<1x1x1xi32>
    %260 = vector.broadcast %259 : i32 to vector<1x128xi32>
    %261 = arith.cmpi slt, %3, %260 : vector<1x128xi32>
    %262 = arith.extui %261 : vector<1x128xi1> to vector<1x128xi32>
    %263 = arith.sitofp %262 : vector<1x128xi32> to vector<1x128xf32>
    %c0_i32_57 = arith.constant 0 : i32
    %264 = vector.broadcast %c0_i32_57 : i32 to vector<1x128xi32>
    %265 = arith.select %261, %251, %264 : vector<1x128xi1>, vector<1x128xi32>
    %266 = vector.broadcast %c4_i32 : i32 to vector<1x8xi32>
    %267 = arith.cmpi eq, %4, %266 : vector<1x8xi32>
    %268 = arith.extui %267 : vector<1x8xi1> to vector<1x8xi32>
    %269 = arith.sitofp %268 : vector<1x8xi32> to vector<1x8xf32>
    %270 = vector.broadcast %269 : vector<1x8xf32> to vector<128x8xf32>
    %271 = arith.mulf %1, %270 : vector<128x8xf32>
    %cst_58 = arith.constant dense<0.000000e+00> : vector<128xf32>
    %272 = vector.multi_reduction <add>, %271, %cst_58 [1] : vector<128x8xf32> to vector<128xf32>
    %273 = vector.shape_cast %272 : vector<128xf32> to vector<128x1xf32>
    %274 = vector.broadcast %265 : vector<1x128xi32> to vector<128x128xi32>
    %275 = arith.cmpi eq, %2, %274 : vector<128x128xi32>
    %276 = arith.extui %275 : vector<128x128xi1> to vector<128x128xi32>
    %277 = arith.sitofp %276 : vector<128x128xi32> to vector<128x128xf32>
    %278 = vector.broadcast %273 : vector<128x1xf32> to vector<128x128xf32>
    %279 = arith.mulf %277, %278 : vector<128x128xf32>
    %cst_59 = arith.constant dense<0.000000e+00> : vector<128xf32>
    %280 = vector.multi_reduction <add>, %279, %cst_59 [0] : vector<128x128xf32> to vector<128xf32>
    %281 = vector.shape_cast %280 : vector<128xf32> to vector<1x128xf32>
    %282 = vector.broadcast %263 : vector<1x128xf32> to vector<128x128xf32>
    %283 = arith.mulf %277, %282 : vector<128x128xf32>
    %cst_60 = arith.constant dense<0.000000e+00> : vector<128xf32>
    %284 = vector.multi_reduction <add>, %283, %cst_60 [1] : vector<128x128xf32> to vector<128xf32>
    %285 = vector.shape_cast %284 : vector<128xf32> to vector<128x1xf32>
    %cst_61 = arith.constant 0.000000e+00 : f32
    %286 = vector.broadcast %cst_61 : f32 to vector<128x1xf32>
    %287 = arith.cmpf oeq, %285, %286 : vector<128x1xf32>
    %288 = arith.extui %287 : vector<128x1xi1> to vector<128x1xi32>
    %289 = arith.sitofp %288 : vector<128x1xi32> to vector<128x1xf32>
    %cst_62 = arith.constant 1.000000e+00 : f32
    %290 = vector.broadcast %cst_62 : f32 to vector<1x128xf32>
    %291 = arith.subf %290, %281 : vector<1x128xf32>
    %292 = vector.broadcast %291 : vector<1x128xf32> to vector<128x128xf32>
    %293 = vector.broadcast %273 : vector<128x1xf32> to vector<128x128xf32>
    %294 = arith.addf %292, %293 : vector<128x128xf32>
    %cst_63 = arith.constant 0.000000e+00 : f32
    %295 = vector.broadcast %cst_63 : f32 to vector<128x128xf32>
    %296 = arith.maximumf %294, %295 : vector<128x128xf32>
    %297 = vector.broadcast %263 : vector<1x128xf32> to vector<128x128xf32>
    %298 = vector.broadcast %289 : vector<128x1xf32> to vector<128x128xf32>
    %299 = arith.mulf %297, %298 : vector<128x128xf32>
    %300 = arith.mulf %296, %299 : vector<128x128xf32>
    %301 = vector.shape_cast %300 : vector<128x128xf32> to vector<1x128x128xf32>
    %cst_64 = arith.constant dense<0.000000e+00> : vector<1xf32>
    %302 = vector.multi_reduction <add>, %301, %cst_64 [1, 2] : vector<1x128x128xf32> to vector<1xf32>
    %303 = vector.shape_cast %302 : vector<1xf32> to vector<1x1x1xf32>
    %304 = vector.extract %303[0, 0, 0] : f32 from vector<1x1x1xf32>
    %305 = vector.broadcast %c4_i32 : i32 to vector<1x8xi32>
    %306 = arith.cmpi eq, %4, %305 : vector<1x8xi32>
    %cst_65 = arith.constant 0.000000e+00 : f32
    %307 = vector.broadcast %304 : f32 to vector<1x8xf32>
    %308 = vector.broadcast %cst_65 : f32 to vector<1x8xf32>
    %309 = arith.select %306, %307, %308 : vector<1x8xi1>, vector<1x8xf32>
    %310 = arith.addf %249, %309 : vector<1x8xf32>
    %c5_i32 = arith.constant 5 : i32
    %311 = arith.index_cast %c5_i32 : i32 to index
    %c0_66 = arith.constant 0 : index
    %312 = vector.load %arg2[%311, %c0_66] : memref<8x128xi32, #tpu.memory_space<vmem>>, vector<1x128xi32>
    %c0_i32_67 = arith.constant 0 : i32
    %313 = vector.broadcast %c0_i32_67 : i32 to vector<1x128xi32>
    %314 = arith.cmpi slt, %312, %313 : vector<1x128xi32>
    %c128_i32_68 = arith.constant 128 : i32
    %315 = vector.broadcast %c128_i32_68 : i32 to vector<1x128xi32>
    %316 = arith.select %314, %3, %315 : vector<1x128xi1>, vector<1x128xi32>
    %317 = vector.shape_cast %316 : vector<1x128xi32> to vector<1x1x128xi32>
    %cst_69 = arith.constant dense<2147483647> : vector<1xi32>
    %318 = vector.multi_reduction <minsi>, %317, %cst_69 [1, 2] : vector<1x1x128xi32> to vector<1xi32>
    %319 = vector.shape_cast %318 : vector<1xi32> to vector<1x1x1xi32>
    %320 = vector.extract %319[0, 0, 0] : i32 from vector<1x1x1xi32>
    %321 = vector.broadcast %320 : i32 to vector<1x128xi32>
    %322 = arith.cmpi slt, %3, %321 : vector<1x128xi32>
    %323 = arith.extui %322 : vector<1x128xi1> to vector<1x128xi32>
    %324 = arith.sitofp %323 : vector<1x128xi32> to vector<1x128xf32>
    %c0_i32_70 = arith.constant 0 : i32
    %325 = vector.broadcast %c0_i32_70 : i32 to vector<1x128xi32>
    %326 = arith.select %322, %312, %325 : vector<1x128xi1>, vector<1x128xi32>
    %327 = vector.broadcast %c5_i32 : i32 to vector<1x8xi32>
    %328 = arith.cmpi eq, %4, %327 : vector<1x8xi32>
    %329 = arith.extui %328 : vector<1x8xi1> to vector<1x8xi32>
    %330 = arith.sitofp %329 : vector<1x8xi32> to vector<1x8xf32>
    %331 = vector.broadcast %330 : vector<1x8xf32> to vector<128x8xf32>
    %332 = arith.mulf %1, %331 : vector<128x8xf32>
    %cst_71 = arith.constant dense<0.000000e+00> : vector<128xf32>
    %333 = vector.multi_reduction <add>, %332, %cst_71 [1] : vector<128x8xf32> to vector<128xf32>
    %334 = vector.shape_cast %333 : vector<128xf32> to vector<128x1xf32>
    %335 = vector.broadcast %326 : vector<1x128xi32> to vector<128x128xi32>
    %336 = arith.cmpi eq, %2, %335 : vector<128x128xi32>
    %337 = arith.extui %336 : vector<128x128xi1> to vector<128x128xi32>
    %338 = arith.sitofp %337 : vector<128x128xi32> to vector<128x128xf32>
    %339 = vector.broadcast %334 : vector<128x1xf32> to vector<128x128xf32>
    %340 = arith.mulf %338, %339 : vector<128x128xf32>
    %cst_72 = arith.constant dense<0.000000e+00> : vector<128xf32>
    %341 = vector.multi_reduction <add>, %340, %cst_72 [0] : vector<128x128xf32> to vector<128xf32>
    %342 = vector.shape_cast %341 : vector<128xf32> to vector<1x128xf32>
    %343 = vector.broadcast %324 : vector<1x128xf32> to vector<128x128xf32>
    %344 = arith.mulf %338, %343 : vector<128x128xf32>
    %cst_73 = arith.constant dense<0.000000e+00> : vector<128xf32>
    %345 = vector.multi_reduction <add>, %344, %cst_73 [1] : vector<128x128xf32> to vector<128xf32>
    %346 = vector.shape_cast %345 : vector<128xf32> to vector<128x1xf32>
    %cst_74 = arith.constant 0.000000e+00 : f32
    %347 = vector.broadcast %cst_74 : f32 to vector<128x1xf32>
    %348 = arith.cmpf oeq, %346, %347 : vector<128x1xf32>
    %349 = arith.extui %348 : vector<128x1xi1> to vector<128x1xi32>
    %350 = arith.sitofp %349 : vector<128x1xi32> to vector<128x1xf32>
    %cst_75 = arith.constant 1.000000e+00 : f32
    %351 = vector.broadcast %cst_75 : f32 to vector<1x128xf32>
    %352 = arith.subf %351, %342 : vector<1x128xf32>
    %353 = vector.broadcast %352 : vector<1x128xf32> to vector<128x128xf32>
    %354 = vector.broadcast %334 : vector<128x1xf32> to vector<128x128xf32>
    %355 = arith.addf %353, %354 : vector<128x128xf32>
    %cst_76 = arith.constant 0.000000e+00 : f32
    %356 = vector.broadcast %cst_76 : f32 to vector<128x128xf32>
    %357 = arith.maximumf %355, %356 : vector<128x128xf32>
    %358 = vector.broadcast %324 : vector<1x128xf32> to vector<128x128xf32>
    %359 = vector.broadcast %350 : vector<128x1xf32> to vector<128x128xf32>
    %360 = arith.mulf %358, %359 : vector<128x128xf32>
    %361 = arith.mulf %357, %360 : vector<128x128xf32>
    %362 = vector.shape_cast %361 : vector<128x128xf32> to vector<1x128x128xf32>
    %cst_77 = arith.constant dense<0.000000e+00> : vector<1xf32>
    %363 = vector.multi_reduction <add>, %362, %cst_77 [1, 2] : vector<1x128x128xf32> to vector<1xf32>
    %364 = vector.shape_cast %363 : vector<1xf32> to vector<1x1x1xf32>
    %365 = vector.extract %364[0, 0, 0] : f32 from vector<1x1x1xf32>
    %366 = vector.broadcast %c5_i32 : i32 to vector<1x8xi32>
    %367 = arith.cmpi eq, %4, %366 : vector<1x8xi32>
    %cst_78 = arith.constant 0.000000e+00 : f32
    %368 = vector.broadcast %365 : f32 to vector<1x8xf32>
    %369 = vector.broadcast %cst_78 : f32 to vector<1x8xf32>
    %370 = arith.select %367, %368, %369 : vector<1x8xi1>, vector<1x8xf32>
    %371 = arith.addf %310, %370 : vector<1x8xf32>
    %c6_i32 = arith.constant 6 : i32
    %372 = arith.index_cast %c6_i32 : i32 to index
    %c0_79 = arith.constant 0 : index
    %373 = vector.load %arg2[%372, %c0_79] : memref<8x128xi32, #tpu.memory_space<vmem>>, vector<1x128xi32>
    %c0_i32_80 = arith.constant 0 : i32
    %374 = vector.broadcast %c0_i32_80 : i32 to vector<1x128xi32>
    %375 = arith.cmpi slt, %373, %374 : vector<1x128xi32>
    %c128_i32_81 = arith.constant 128 : i32
    %376 = vector.broadcast %c128_i32_81 : i32 to vector<1x128xi32>
    %377 = arith.select %375, %3, %376 : vector<1x128xi1>, vector<1x128xi32>
    %378 = vector.shape_cast %377 : vector<1x128xi32> to vector<1x1x128xi32>
    %cst_82 = arith.constant dense<2147483647> : vector<1xi32>
    %379 = vector.multi_reduction <minsi>, %378, %cst_82 [1, 2] : vector<1x1x128xi32> to vector<1xi32>
    %380 = vector.shape_cast %379 : vector<1xi32> to vector<1x1x1xi32>
    %381 = vector.extract %380[0, 0, 0] : i32 from vector<1x1x1xi32>
    %382 = vector.broadcast %381 : i32 to vector<1x128xi32>
    %383 = arith.cmpi slt, %3, %382 : vector<1x128xi32>
    %384 = arith.extui %383 : vector<1x128xi1> to vector<1x128xi32>
    %385 = arith.sitofp %384 : vector<1x128xi32> to vector<1x128xf32>
    %c0_i32_83 = arith.constant 0 : i32
    %386 = vector.broadcast %c0_i32_83 : i32 to vector<1x128xi32>
    %387 = arith.select %383, %373, %386 : vector<1x128xi1>, vector<1x128xi32>
    %388 = vector.broadcast %c6_i32 : i32 to vector<1x8xi32>
    %389 = arith.cmpi eq, %4, %388 : vector<1x8xi32>
    %390 = arith.extui %389 : vector<1x8xi1> to vector<1x8xi32>
    %391 = arith.sitofp %390 : vector<1x8xi32> to vector<1x8xf32>
    %392 = vector.broadcast %391 : vector<1x8xf32> to vector<128x8xf32>
    %393 = arith.mulf %1, %392 : vector<128x8xf32>
    %cst_84 = arith.constant dense<0.000000e+00> : vector<128xf32>
    %394 = vector.multi_reduction <add>, %393, %cst_84 [1] : vector<128x8xf32> to vector<128xf32>
    %395 = vector.shape_cast %394 : vector<128xf32> to vector<128x1xf32>
    %396 = vector.broadcast %387 : vector<1x128xi32> to vector<128x128xi32>
    %397 = arith.cmpi eq, %2, %396 : vector<128x128xi32>
    %398 = arith.extui %397 : vector<128x128xi1> to vector<128x128xi32>
    %399 = arith.sitofp %398 : vector<128x128xi32> to vector<128x128xf32>
    %400 = vector.broadcast %395 : vector<128x1xf32> to vector<128x128xf32>
    %401 = arith.mulf %399, %400 : vector<128x128xf32>
    %cst_85 = arith.constant dense<0.000000e+00> : vector<128xf32>
    %402 = vector.multi_reduction <add>, %401, %cst_85 [0] : vector<128x128xf32> to vector<128xf32>
    %403 = vector.shape_cast %402 : vector<128xf32> to vector<1x128xf32>
    %404 = vector.broadcast %385 : vector<1x128xf32> to vector<128x128xf32>
    %405 = arith.mulf %399, %404 : vector<128x128xf32>
    %cst_86 = arith.constant dense<0.000000e+00> : vector<128xf32>
    %406 = vector.multi_reduction <add>, %405, %cst_86 [1] : vector<128x128xf32> to vector<128xf32>
    %407 = vector.shape_cast %406 : vector<128xf32> to vector<128x1xf32>
    %cst_87 = arith.constant 0.000000e+00 : f32
    %408 = vector.broadcast %cst_87 : f32 to vector<128x1xf32>
    %409 = arith.cmpf oeq, %407, %408 : vector<128x1xf32>
    %410 = arith.extui %409 : vector<128x1xi1> to vector<128x1xi32>
    %411 = arith.sitofp %410 : vector<128x1xi32> to vector<128x1xf32>
    %cst_88 = arith.constant 1.000000e+00 : f32
    %412 = vector.broadcast %cst_88 : f32 to vector<1x128xf32>
    %413 = arith.subf %412, %403 : vector<1x128xf32>
    %414 = vector.broadcast %413 : vector<1x128xf32> to vector<128x128xf32>
    %415 = vector.broadcast %395 : vector<128x1xf32> to vector<128x128xf32>
    %416 = arith.addf %414, %415 : vector<128x128xf32>
    %cst_89 = arith.constant 0.000000e+00 : f32
    %417 = vector.broadcast %cst_89 : f32 to vector<128x128xf32>
    %418 = arith.maximumf %416, %417 : vector<128x128xf32>
    %419 = vector.broadcast %385 : vector<1x128xf32> to vector<128x128xf32>
    %420 = vector.broadcast %411 : vector<128x1xf32> to vector<128x128xf32>
    %421 = arith.mulf %419, %420 : vector<128x128xf32>
    %422 = arith.mulf %418, %421 : vector<128x128xf32>
    %423 = vector.shape_cast %422 : vector<128x128xf32> to vector<1x128x128xf32>
    %cst_90 = arith.constant dense<0.000000e+00> : vector<1xf32>
    %424 = vector.multi_reduction <add>, %423, %cst_90 [1, 2] : vector<1x128x128xf32> to vector<1xf32>
    %425 = vector.shape_cast %424 : vector<1xf32> to vector<1x1x1xf32>
    %426 = vector.extract %425[0, 0, 0] : f32 from vector<1x1x1xf32>
    %427 = vector.broadcast %c6_i32 : i32 to vector<1x8xi32>
    %428 = arith.cmpi eq, %4, %427 : vector<1x8xi32>
    %cst_91 = arith.constant 0.000000e+00 : f32
    %429 = vector.broadcast %426 : f32 to vector<1x8xf32>
    %430 = vector.broadcast %cst_91 : f32 to vector<1x8xf32>
    %431 = arith.select %428, %429, %430 : vector<1x8xi1>, vector<1x8xf32>
    %432 = arith.addf %371, %431 : vector<1x8xf32>
    %c7_i32 = arith.constant 7 : i32
    %433 = arith.index_cast %c7_i32 : i32 to index
    %c0_92 = arith.constant 0 : index
    %434 = vector.load %arg2[%433, %c0_92] : memref<8x128xi32, #tpu.memory_space<vmem>>, vector<1x128xi32>
    %c0_i32_93 = arith.constant 0 : i32
    %435 = vector.broadcast %c0_i32_93 : i32 to vector<1x128xi32>
    %436 = arith.cmpi slt, %434, %435 : vector<1x128xi32>
    %c128_i32_94 = arith.constant 128 : i32
    %437 = vector.broadcast %c128_i32_94 : i32 to vector<1x128xi32>
    %438 = arith.select %436, %3, %437 : vector<1x128xi1>, vector<1x128xi32>
    %439 = vector.shape_cast %438 : vector<1x128xi32> to vector<1x1x128xi32>
    %cst_95 = arith.constant dense<2147483647> : vector<1xi32>
    %440 = vector.multi_reduction <minsi>, %439, %cst_95 [1, 2] : vector<1x1x128xi32> to vector<1xi32>
    %441 = vector.shape_cast %440 : vector<1xi32> to vector<1x1x1xi32>
    %442 = vector.extract %441[0, 0, 0] : i32 from vector<1x1x1xi32>
    %443 = vector.broadcast %442 : i32 to vector<1x128xi32>
    %444 = arith.cmpi slt, %3, %443 : vector<1x128xi32>
    %445 = arith.extui %444 : vector<1x128xi1> to vector<1x128xi32>
    %446 = arith.sitofp %445 : vector<1x128xi32> to vector<1x128xf32>
    %c0_i32_96 = arith.constant 0 : i32
    %447 = vector.broadcast %c0_i32_96 : i32 to vector<1x128xi32>
    %448 = arith.select %444, %434, %447 : vector<1x128xi1>, vector<1x128xi32>
    %449 = vector.broadcast %c7_i32 : i32 to vector<1x8xi32>
    %450 = arith.cmpi eq, %4, %449 : vector<1x8xi32>
    %451 = arith.extui %450 : vector<1x8xi1> to vector<1x8xi32>
    %452 = arith.sitofp %451 : vector<1x8xi32> to vector<1x8xf32>
    %453 = vector.broadcast %452 : vector<1x8xf32> to vector<128x8xf32>
    %454 = arith.mulf %1, %453 : vector<128x8xf32>
    %cst_97 = arith.constant dense<0.000000e+00> : vector<128xf32>
    %455 = vector.multi_reduction <add>, %454, %cst_97 [1] : vector<128x8xf32> to vector<128xf32>
    %456 = vector.shape_cast %455 : vector<128xf32> to vector<128x1xf32>
    %457 = vector.broadcast %448 : vector<1x128xi32> to vector<128x128xi32>
    %458 = arith.cmpi eq, %2, %457 : vector<128x128xi32>
    %459 = arith.extui %458 : vector<128x128xi1> to vector<128x128xi32>
    %460 = arith.sitofp %459 : vector<128x128xi32> to vector<128x128xf32>
    %461 = vector.broadcast %456 : vector<128x1xf32> to vector<128x128xf32>
    %462 = arith.mulf %460, %461 : vector<128x128xf32>
    %cst_98 = arith.constant dense<0.000000e+00> : vector<128xf32>
    %463 = vector.multi_reduction <add>, %462, %cst_98 [0] : vector<128x128xf32> to vector<128xf32>
    %464 = vector.shape_cast %463 : vector<128xf32> to vector<1x128xf32>
    %465 = vector.broadcast %446 : vector<1x128xf32> to vector<128x128xf32>
    %466 = arith.mulf %460, %465 : vector<128x128xf32>
    %cst_99 = arith.constant dense<0.000000e+00> : vector<128xf32>
    %467 = vector.multi_reduction <add>, %466, %cst_99 [1] : vector<128x128xf32> to vector<128xf32>
    %468 = vector.shape_cast %467 : vector<128xf32> to vector<128x1xf32>
    %cst_100 = arith.constant 0.000000e+00 : f32
    %469 = vector.broadcast %cst_100 : f32 to vector<128x1xf32>
    %470 = arith.cmpf oeq, %468, %469 : vector<128x1xf32>
    %471 = arith.extui %470 : vector<128x1xi1> to vector<128x1xi32>
    %472 = arith.sitofp %471 : vector<128x1xi32> to vector<128x1xf32>
    %cst_101 = arith.constant 1.000000e+00 : f32
    %473 = vector.broadcast %cst_101 : f32 to vector<1x128xf32>
    %474 = arith.subf %473, %464 : vector<1x128xf32>
    %475 = vector.broadcast %474 : vector<1x128xf32> to vector<128x128xf32>
    %476 = vector.broadcast %456 : vector<128x1xf32> to vector<128x128xf32>
    %477 = arith.addf %475, %476 : vector<128x128xf32>
    %cst_102 = arith.constant 0.000000e+00 : f32
    %478 = vector.broadcast %cst_102 : f32 to vector<128x128xf32>
    %479 = arith.maximumf %477, %478 : vector<128x128xf32>
    %480 = vector.broadcast %446 : vector<1x128xf32> to vector<128x128xf32>
    %481 = vector.broadcast %472 : vector<128x1xf32> to vector<128x128xf32>
    %482 = arith.mulf %480, %481 : vector<128x128xf32>
    %483 = arith.mulf %479, %482 : vector<128x128xf32>
    %484 = vector.shape_cast %483 : vector<128x128xf32> to vector<1x128x128xf32>
    %cst_103 = arith.constant dense<0.000000e+00> : vector<1xf32>
    %485 = vector.multi_reduction <add>, %484, %cst_103 [1, 2] : vector<1x128x128xf32> to vector<1xf32>
    %486 = vector.shape_cast %485 : vector<1xf32> to vector<1x1x1xf32>
    %487 = vector.extract %486[0, 0, 0] : f32 from vector<1x1x1xf32>
    %488 = vector.broadcast %c7_i32 : i32 to vector<1x8xi32>
    %489 = arith.cmpi eq, %4, %488 : vector<1x8xi32>
    %cst_104 = arith.constant 0.000000e+00 : f32
    %490 = vector.broadcast %487 : f32 to vector<1x8xf32>
    %491 = vector.broadcast %cst_104 : f32 to vector<1x8xf32>
    %492 = arith.select %489, %490, %491 : vector<1x8xi1>, vector<1x8xf32>
    %493 = arith.addf %432, %492 : vector<1x8xf32>
    %c8_i32 = arith.constant 8 : i32
    %cst_105 = arith.constant 1.250000e-01 : f32
    %494 = vector.broadcast %cst_105 : f32 to vector<1x8xf32>
    %495 = arith.mulf %493, %494 : vector<1x8xf32>
    %c0_106 = arith.constant 0 : index
    %c0_107 = arith.constant 0 : index
    %c0_108 = arith.constant 0 : index
    %496 = vector.load %arg3[%c0_106, %c0_107, %c0_108] : memref<1x1x8xf32, #tpu.memory_space<vmem>>, vector<1x1x8xf32>
    %497 = vector.shape_cast %496 : vector<1x1x8xf32> to vector<1x8xf32>
    %498 = vector.shape_cast %495 : vector<1x8xf32> to vector<1x1x8xf32>
    tpu.vector_store %arg3[%c0_106, %c0_107, %c0_108], %498 {strides = array<i32>} : memref<1x1x8xf32, #tpu.memory_space<vmem>>, vector<1x1x8xf32>,
    return
  }
  func.func @transform_0(%arg0: i32) -> (i32, i32, i32) {
    %c0_i32 = arith.constant 0 : i32
    %c0_i32_0 = arith.constant 0 : i32
    %c0_i32_1 = arith.constant 0 : i32
    return %arg0, %c0_i32, %c0_i32_0 : i32, i32, i32
  }
  func.func @transform_1(%arg0: i32) -> (i32, i32) {
    %c0_i32 = arith.constant 0 : i32
    %c0_i32_0 = arith.constant 0 : i32
    return %arg0, %c0_i32 : i32, i32
  }
  func.func @transform_2(%arg0: i32) -> (i32, i32, i32) {
    %c0_i32 = arith.constant 0 : i32
    %c0_i32_0 = arith.constant 0 : i32
    %c0_i32_1 = arith.constant 0 : i32
    return %arg0, %c0_i32, %c0_i32_0 : i32, i32, i32
  }
}

</mosaic_0001>

<llo_original>
// kernel: tpu_custom_call.1
$region0: #{tpu_custom_call.1}
  #allocation0 [shape = 'u32[]', space=smem, size = 0x4, offset = 0x4, fixed_abs, tag = 'smem constant byte address 0x4 - core index']
  #allocation1 [shape = 'u32[72,128]{1,0:T(1,128)}', space=vmem, size = 0x9000, scoped, tag = 'internal scratch']
  %s0 = inlined_call_operand.vmem [shape: f32[1,128,8], index: 0, kind: input, shape index: {}]
  %s1 = inlined_call_operand.vmem [shape: s32[8,128], index: 1, kind: input, shape index: {}]
  %s2 = inlined_call_operand.hbm [shape: f32[1,1,8], index: 2, kind: output, shape index: {}]
  %s3 = sld [smem:[#allocation0]]
  $region18: #{tpu_custom_call.1} parent=0
    _
  %s5 = ssub.s32 1, %s3
  %s6 = scalar_select 0, %s5, %s3
  $region1: #{tpu_custom_call.1} parent=0
    #allocation2 [shape = 'u8[512]{0}', space=vmem, size = 0x400, scoped, tag = 'output window, operand 0, single buffered']
    #allocation3 [shape = 's32[1]{0}', space=sflag, size = 0x4, scoped, tag = 'scoped memory for tpu_custom_call.1']
    %7 = vsyncpa [#allocation3], 0
    // Predicated region
    $region2: #{tpu_custom_call.1} parent=1 // pred_check
      _
    $region3: #{tpu_custom_call.1} parent=1 // pred_check_branch
      %9 = sbr.rel (0) target = $region5
    $region4: #{tpu_custom_call.1} parent=1 // pred_region
      _
    $region5: #{tpu_custom_call.1} parent=1 // pred_fallthru
      _
    // Predicated region
    $region6: #{tpu_custom_call.1} parent=1 // pred_check
      _
    $region7: #{tpu_custom_call.1} parent=1 // pred_check_branch
      %11 = sbr.rel (0) target = $region9
    $region8: #{tpu_custom_call.1} parent=1 // pred_region
      _
    $region9: #{tpu_custom_call.1} parent=1 // pred_fallthru
      _
    %v12 = vld [vmem:[%s0] sm:$0xff]
    %v13 = vld [vmem:[%s0 + $0x8] sm:$0xff]
    %v14 = vld [vmem:[%s0 + $0x10] sm:$0xff]
    %v15 = vld [vmem:[%s0 + $0x18] sm:$0xff]
    %v16 = vld [vmem:[%s0 + $0x20] sm:$0xff]
    %v17 = vld [vmem:[%s0 + $0x28] sm:$0xff]
    %v18 = vld [vmem:[%s0 + $0x30] sm:$0xff]
    %v19 = vld [vmem:[%s0 + $0x38] sm:$0xff]
    %v20 = vld [vmem:[%s0 + $0x40] sm:$0xff]
    %v21 = vld [vmem:[%s0 + $0x48] sm:$0xff]
    %v22 = vld [vmem:[%s0 + $0x50] sm:$0xff]
    %v23 = vld [vmem:[%s0 + $0x58] sm:$0xff]
    %v24 = vld [vmem:[%s0 + $0x60] sm:$0xff]
    %v25 = vld [vmem:[%s0 + $0x68] sm:$0xff]
    %v26 = vld [vmem:[%s0 + $0x70] sm:$0xff]
    %v27 = vld [vmem:[%s0 + $0x78] sm:$0xff]
    %v28 = vlaneseq
    %v29 = vshrl.u32 %v28, 7
    %v30 = vadd.s32 %v29, 8
    %v31 = vadd.s32 %v29, 16
    %v32 = vadd.s32 %v29, 24
    %v33 = vadd.s32 %v29, 32
    %v34 = vadd.s32 %v29, 40
    %v35 = vadd.s32 %v29, 48
    %v36 = vadd.s32 %v29, 56
    %v37 = vadd.s32 %v29, 64
    %v38 = vadd.s32 %v29, 72
    %v39 = vadd.s32 %v29, 80
    %v40 = vadd.s32 %v29, 88
    %v41 = vadd.s32 %v29, 96
    %v42 = vadd.s32 %v29, 104
    %v43 = vadd.s32 %v29, 112
    %v44 = vadd.s32 %v29, 120
    %v45 = vlaneseq
    %v46 = vand.u32 %v45, 127
    %v47 = vld [vmem:[%s1] sm:$0x1]
    %vm48 = vcmp.lt.s32.totalorder %v47, 0
    %v49 = vsel %vm48, %v46, 128
    %vm50 = vcmask 1040384
    %v51 = vsel %vm50, %v49, 2147483647
    %v52 = vand.u32 %v51, 65535
    %v53 = vshra.s32 %v51, 16
    %v54 = vcvt.s32.f32 %v52
    %v55 = vcvt.s32.f32 %v53
    %56 = vmin.xlane.f32.xlu0 %v55
    %v57 = vpop.xlane.xlu0 %56
    %vm58 = vcmp.eq.f32.partialorder %v55, %v57
    %v59 = vsel %vm58, %v54, inf
    %60 = vmin.xlane.f32.xlu0 %v59
    %v61 = vpop.xlane.xlu0 %60
    %v62 = vcvt.f32.s32 %v61
    %v63 = vcvt.f32.s32 %v57
    %v64 = vshll.u32 %v63, 16
    %v65 = vadd.s32 %v64, %v62
    %v66 = vrot.slane %v65, 4
    %vm67 = vcmp.lt.s32.totalorder %v65, %v66
    %v68 = vsel %vm67, %v65, %v66
    %v69 = vrot.slane %v68, 2
    %vm70 = vcmp.lt.s32.totalorder %v68, %v69
    %v71 = vsel %vm70, %v68, %v69
    %v72 = vrot.slane %v71, 1
    %vm73 = vcmp.lt.s32.totalorder %v71, %v72
    %v74 = vsel %vm73, %v71, %v72
    %s75 = vtos %v74
    %v76 = vstv %s75
    %vm77 = vcmp.lt.s32.totalorder %v46, %v76
    %v78 = vsel %vm77, 1, 0
    %v79 = vcvt.s32.f32 %v78
    %v80 = vsel %vm77, %v47, 0
    %vm81 = vcmp.eq.s32.totalorder %v46, 0
    %v82 = vsel %vm81, 1, 0
    %v83 = vcvt.s32.f32 %v82
    %v84 = vmul.f32 %v12, %v83
    %v85 = vmul.f32 %v13, %v83
    %v86 = vmul.f32 %v14, %v83
    %v87 = vmul.f32 %v15, %v83
    %v88 = vmul.f32 %v16, %v83
    %v89 = vmul.f32 %v17, %v83
    %v90 = vmul.f32 %v18, %v83
    %v91 = vmul.f32 %v19, %v83
    %v92 = vmul.f32 %v20, %v83
    %v93 = vmul.f32 %v21, %v83
    %v94 = vmul.f32 %v22, %v83
    %v95 = vmul.f32 %v23, %v83
    %v96 = vmul.f32 %v24, %v83
    %v97 = vmul.f32 %v25, %v83
    %v98 = vmul.f32 %v26, %v83
    %v99 = vmul.f32 %v27, %v83
    %vm100 = vcmask 64512
    %v101 = vsel %vm100, %v84, 0.0
    %102 = vadd.xlane.f32.xlu0 %v101
    %v103 = vpop.xlane.xlu0 %102
    %v104 = vsel %vm100, %v85, 0.0
    %105 = vadd.xlane.f32.xlu0 %v104
    %v106 = vpop.xlane.xlu0 %105
    %v107 = vsel %vm100, %v86, 0.0
    %108 = vadd.xlane.f32.xlu0 %v107
    %v109 = vpop.xlane.xlu0 %108
    %v110 = vsel %vm100, %v87, 0.0
    %111 = vadd.xlane.f32.xlu0 %v110
    %v112 = vpop.xlane.xlu0 %111
    %v113 = vsel %vm100, %v88, 0.0
    %114 = vadd.xlane.f32.xlu0 %v113
    %v115 = vpop.xlane.xlu0 %114
    %v116 = vsel %vm100, %v89, 0.0
    %117 = vadd.xlane.f32.xlu0 %v116
    %v118 = vpop.xlane.xlu0 %117
    %v119 = vsel %vm100, %v90, 0.0
    %120 = vadd.xlane.f32.xlu0 %v119
    %v121 = vpop.xlane.xlu0 %120
    %v122 = vsel %vm100, %v91, 0.0
    %123 = vadd.xlane.f32.xlu0 %v122
    %v124 = vpop.xlane.xlu0 %123
    %v125 = vsel %vm100, %v92, 0.0
    %126 = vadd.xlane.f32.xlu0 %v125
    %v127 = vpop.xlane.xlu0 %126
    %v128 = vsel %vm100, %v93, 0.0
    %129 = vadd.xlane.f32.xlu0 %v128
    %v130 = vpop.xlane.xlu0 %129
    %v131 = vsel %vm100, %v94, 0.0
    %132 = vadd.xlane.f32.xlu0 %v131
    %v133 = vpop.xlane.xlu0 %132
    %v134 = vsel %vm100, %v95, 0.0
    %135 = vadd.xlane.f32.xlu0 %v134
    %v136 = vpop.xlane.xlu0 %135
    %v137 = vsel %vm100, %v96, 0.0
    %138 = vadd.xlane.f32.xlu0 %v137
    %v139 = vpop.xlane.xlu0 %138
    %v140 = vsel %vm100, %v97, 0.0
    %141 = vadd.xlane.f32.xlu0 %v140
    %v142 = vpop.xlane.xlu0 %141
    %v143 = vsel %vm100, %v98, 0.0
    %144 = vadd.xlane.f32.xlu0 %v143
    %v145 = vpop.xlane.xlu0 %144
    %v146 = vsel %vm100, %v99, 0.0
    %147 = vadd.xlane.f32.xlu0 %v146
    %v148 = vpop.xlane.xlu0 %147
    %v149 = vperm.slane %v80, 0
    %vm150 = vcmp.eq.s32.totalorder %v29, %v149
    %vm151 = vcmp.eq.s32.totalorder %v30, %v149
    %vm152 = vcmp.eq.s32.totalorder %v31, %v149
    %vm153 = vcmp.eq.s32.totalorder %v32, %v149
    %vm154 = vcmp.eq.s32.totalorder %v33, %v149
    %vm155 = vcmp.eq.s32.totalorder %v34, %v149
    %vm156 = vcmp.eq.s32.totalorder %v35, %v149
    %vm157 = vcmp.eq.s32.totalorder %v36, %v149
    %vm158 = vcmp.eq.s32.totalorder %v37, %v149
    %vm159 = vcmp.eq.s32.totalorder %v38, %v149
    %vm160 = vcmp.eq.s32.totalorder %v39, %v149
    %vm161 = vcmp.eq.s32.totalorder %v40, %v149
    %vm162 = vcmp.eq.s32.totalorder %v41, %v149
    %vm163 = vcmp.eq.s32.totalorder %v42, %v149
    %vm164 = vcmp.eq.s32.totalorder %v43, %v149
    %vm165 = vcmp.eq.s32.totalorder %v44, %v149
    %v166 = vsel %vm150, 1, 0
    %v167 = vsel %vm151, 1, 0
    %v168 = vsel %vm152, 1, 0
    %v169 = vsel %vm153, 1, 0
    %v170 = vsel %vm154, 1, 0
    %v171 = vsel %vm155, 1, 0
    %v172 = vsel %vm156, 1, 0
    %v173 = vsel %vm157, 1, 0
    %v174 = vsel %vm158, 1, 0
    %v175 = vsel %vm159, 1, 0
    %v176 = vsel %vm160, 1, 0
    %v177 = vsel %vm161, 1, 0
    %v178 = vsel %vm162, 1, 0
    %v179 = vsel %vm163, 1, 0
    %v180 = vsel %vm164, 1, 0
    %v181 = vsel %vm165, 1, 0
    %v182 = vcvt.s32.f32 %v166
    %v183 = vcvt.s32.f32 %v167
    %v184 = vcvt.s32.f32 %v168
    %v185 = vcvt.s32.f32 %v169
    %v186 = vcvt.s32.f32 %v170
    %v187 = vcvt.s32.f32 %v171
    %v188 = vcvt.s32.f32 %v172
    %v189 = vcvt.s32.f32 %v173
    %v190 = vcvt.s32.f32 %v174
    %v191 = vcvt.s32.f32 %v175
    %v192 = vcvt.s32.f32 %v176
    %v193 = vcvt.s32.f32 %v177
    %v194 = vcvt.s32.f32 %v178
    %v195 = vcvt.s32.f32 %v179
    %v196 = vcvt.s32.f32 %v180
    %v197 = vcvt.s32.f32 %v181
    %v198 = vmul.f32 %v182, %v103
    %v199 = vmul.f32 %v183, %v106
    %v200 = vmul.f32 %v184, %v109
    %v201 = vmul.f32 %v185, %v112
    %v202 = vmul.f32 %v186, %v115
    %v203 = vmul.f32 %v187, %v118
    %v204 = vmul.f32 %v188, %v121
    %v205 = vmul.f32 %v189, %v124
    %v206 = vmul.f32 %v190, %v127
    %v207 = vmul.f32 %v191, %v130
    %v208 = vmul.f32 %v192, %v133
    %v209 = vmul.f32 %v193, %v136
    %v210 = vmul.f32 %v194, %v139
    %v211 = vmul.f32 %v195, %v142
    %v212 = vmul.f32 %v196, %v145
    %v213 = vmul.f32 %v197, %v148
    %v214 = vadd.f32 %v198, %v199
    %v215 = vadd.f32 %v214, %v200
    %v216 = vadd.f32 %v215, %v201
    %v217 = vadd.f32 %v216, %v202
    %v218 = vadd.f32 %v217, %v203
    %v219 = vadd.f32 %v218, %v204
    %v220 = vadd.f32 %v219, %v205
    %v221 = vadd.f32 %v220, %v206
    %v222 = vadd.f32 %v221, %v207
    %v223 = vadd.f32 %v222, %v208
    %v224 = vadd.f32 %v223, %v209
    %v225 = vadd.f32 %v224, %v210
    %v226 = vadd.f32 %v225, %v211
    %v227 = vadd.f32 %v226, %v212
    %v228 = vadd.f32 %v227, %v213
    %v229 = vrot.slane %v228, 4
    %v230 = vadd.f32 %v228, %v229
    %v231 = vrot.slane %v230, 2
    %v232 = vadd.f32 %v230, %v231
    %v233 = vrot.slane %v232, 1
    %v234 = vadd.f32 %v232, %v233
    %v235 = vmul.f32 %v182, %v79
    %v236 = vmul.f32 %v183, %v79
    %v237 = vmul.f32 %v184, %v79
    %v238 = vmul.f32 %v185, %v79
    %v239 = vmul.f32 %v186, %v79
    %v240 = vmul.f32 %v187, %v79
    %v241 = vmul.f32 %v188, %v79
    %v242 = vmul.f32 %v189, %v79
    %v243 = vmul.f32 %v190, %v79
    %v244 = vmul.f32 %v191, %v79
    %v245 = vmul.f32 %v192, %v79
    %v246 = vmul.f32 %v193, %v79
    %v247 = vmul.f32 %v194, %v79
    %v248 = vmul.f32 %v195, %v79
    %v249 = vmul.f32 %v196, %v79
    %v250 = vmul.f32 %v197, %v79
    %251 = vadd.xlane.f32.xlu0 %v235
    %v252 = vpop.xlane.xlu0 %251
    %253 = vadd.xlane.f32.xlu0 %v236
    %v254 = vpop.xlane.xlu0 %253
    %255 = vadd.xlane.f32.xlu0 %v237
    %v256 = vpop.xlane.xlu0 %255
    %257 = vadd.xlane.f32.xlu0 %v238
    %v258 = vpop.xlane.xlu0 %257
    %259 = vadd.xlane.f32.xlu0 %v239
    %v260 = vpop.xlane.xlu0 %259
    %261 = vadd.xlane.f32.xlu0 %v240
    %v262 = vpop.xlane.xlu0 %261
    %263 = vadd.xlane.f32.xlu0 %v241
    %v264 = vpop.xlane.xlu0 %263
    %265 = vadd.xlane.f32.xlu0 %v242
    %v266 = vpop.xlane.xlu0 %265
    %267 = vadd.xlane.f32.xlu0 %v243
    %v268 = vpop.xlane.xlu0 %267
    %269 = vadd.xlane.f32.xlu0 %v244
    %v270 = vpop.xlane.xlu0 %269
    %271 = vadd.xlane.f32.xlu0 %v245
    %v272 = vpop.xlane.xlu0 %271
    %273 = vadd.xlane.f32.xlu0 %v246
    %v274 = vpop.xlane.xlu0 %273
    %275 = vadd.xlane.f32.xlu0 %v247
    %v276 = vpop.xlane.xlu0 %275
    %277 = vadd.xlane.f32.xlu0 %v248
    %v278 = vpop.xlane.xlu0 %277
    %279 = vadd.xlane.f32.xlu0 %v249
    %v280 = vpop.xlane.xlu0 %279
    %281 = vadd.xlane.f32.xlu0 %v250
    %v282 = vpop.xlane.xlu0 %281
    %vm283 = vcmp.eq.f32.partialorder %v252, 0.0
    %vm284 = vcmp.eq.f32.partialorder %v254, 0.0
    %vm285 = vcmp.eq.f32.partialorder %v256, 0.0
    %vm286 = vcmp.eq.f32.partialorder %v258, 0.0
    %vm287 = vcmp.eq.f32.partialorder %v260, 0.0
    %vm288 = vcmp.eq.f32.partialorder %v262, 0.0
    %vm289 = vcmp.eq.f32.partialorder %v264, 0.0
    %vm290 = vcmp.eq.f32.partialorder %v266, 0.0
    %vm291 = vcmp.eq.f32.partialorder %v268, 0.0
    %vm292 = vcmp.eq.f32.partialorder %v270, 0.0
    %vm293 = vcmp.eq.f32.partialorder %v272, 0.0
    %vm294 = vcmp.eq.f32.partialorder %v274, 0.0
    %vm295 = vcmp.eq.f32.partialorder %v276, 0.0
    %vm296 = vcmp.eq.f32.partialorder %v278, 0.0
    %vm297 = vcmp.eq.f32.partialorder %v280, 0.0
    %vm298 = vcmp.eq.f32.partialorder %v282, 0.0
    %v299 = vsel %vm283, 1, 0
    %v300 = vsel %vm284, 1, 0
    %v301 = vsel %vm285, 1, 0
    %v302 = vsel %vm286, 1, 0
    %v303 = vsel %vm287, 1, 0
    %v304 = vsel %vm288, 1, 0
    %v305 = vsel %vm289, 1, 0
    %v306 = vsel %vm290, 1, 0
    %v307 = vsel %vm291, 1, 0
    %v308 = vsel %vm292, 1, 0
    %v309 = vsel %vm293, 1, 0
    %v310 = vsel %vm294, 1, 0
    %v311 = vsel %vm295, 1, 0
    %v312 = vsel %vm296, 1, 0
    %v313 = vsel %vm297, 1, 0
    %v314 = vsel %vm298, 1, 0
    %v315 = vcvt.s32.f32 %v299
    %v316 = vcvt.s32.f32 %v300
    %v317 = vcvt.s32.f32 %v301
    %v318 = vcvt.s32.f32 %v302
    %v319 = vcvt.s32.f32 %v303
    %v320 = vcvt.s32.f32 %v304
    %v321 = vcvt.s32.f32 %v305
    %v322 = vcvt.s32.f32 %v306
    %v323 = vcvt.s32.f32 %v307
    %v324 = vcvt.s32.f32 %v308
    %v325 = vcvt.s32.f32 %v309
    %v326 = vcvt.s32.f32 %v310
    %v327 = vcvt.s32.f32 %v311
    %v328 = vcvt.s32.f32 %v312
    %v329 = vcvt.s32.f32 %v313
    %v330 = vcvt.s32.f32 %v314
    %v331 = vsub.f32 1.0, %v234
    %v332 = vadd.f32 %v331, %v103
    %v333 = vadd.f32 %v331, %v106
    %v334 = vadd.f32 %v331, %v109
    %v335 = vadd.f32 %v331, %v112
    %v336 = vadd.f32 %v331, %v115
    %v337 = vadd.f32 %v331, %v118
    %v338 = vadd.f32 %v331, %v121
    %v339 = vadd.f32 %v331, %v124
    %v340 = vadd.f32 %v331, %v127
    %v341 = vadd.f32 %v331, %v130
    %v342 = vadd.f32 %v331, %v133
    %v343 = vadd.f32 %v331, %v136
    %v344 = vadd.f32 %v331, %v139
    %v345 = vadd.f32 %v331, %v142
    %v346 = vadd.f32 %v331, %v145
    %v347 = vadd.f32 %v331, %v148
    %v348 = vmax.f32 %v332, 0.0
    %v349 = vmax.f32 %v333, 0.0
    %v350 = vmax.f32 %v334, 0.0
    %v351 = vmax.f32 %v335, 0.0
    %v352 = vmax.f32 %v336, 0.0
    %v353 = vmax.f32 %v337, 0.0
    %v354 = vmax.f32 %v338, 0.0
    %v355 = vmax.f32 %v339, 0.0
    %v356 = vmax.f32 %v340, 0.0
    %v357 = vmax.f32 %v341, 0.0
    %v358 = vmax.f32 %v342, 0.0
    %v359 = vmax.f32 %v343, 0.0
    %v360 = vmax.f32 %v344, 0.0
    %v361 = vmax.f32 %v345, 0.0
    %v362 = vmax.f32 %v346, 0.0
    %v363 = vmax.f32 %v347, 0.0
    %v364 = vmul.f32 %v79, %v315
    %v365 = vmul.f32 %v79, %v316
    %v366 = vmul.f32 %v79, %v317
    %v367 = vmul.f32 %v79, %v318
    %v368 = vmul.f32 %v79, %v319
    %v369 = vmul.f32 %v79, %v320
    %v370 = vmul.f32 %v79, %v321
    %v371 = vmul.f32 %v79, %v322
    %v372 = vmul.f32 %v79, %v323
    %v373 = vmul.f32 %v79, %v324
    %v374 = vmul.f32 %v79, %v325
    %v375 = vmul.f32 %v79, %v326
    %v376 = vmul.f32 %v79, %v327
    %v377 = vmul.f32 %v79, %v328
    %v378 = vmul.f32 %v79, %v329
    %v379 = vmul.f32 %v79, %v330
    %v380 = vmul.f32 %v348, %v364
    %v381 = vmul.f32 %v349, %v365
    %v382 = vmul.f32 %v350, %v366
    %v383 = vmul.f32 %v351, %v367
    %v384 = vmul.f32 %v352, %v368
    %v385 = vmul.f32 %v353, %v369
    %v386 = vmul.f32 %v354, %v370
    %v387 = vmul.f32 %v355, %v371
    %v388 = vmul.f32 %v356, %v372
    %v389 = vmul.f32 %v357, %v373
    %v390 = vmul.f32 %v358, %v374
    %v391 = vmul.f32 %v359, %v375
    %v392 = vmul.f32 %v360, %v376
    %v393 = vmul.f32 %v361, %v377
    %v394 = vmul.f32 %v362, %v378
    %v395 = vmul.f32 %v363, %v379
    %v396 = vadd.f32 %v380, %v381
    %v397 = vadd.f32 %v396, %v382
    %v398 = vadd.f32 %v397, %v383
    %v399 = vadd.f32 %v398, %v384
    %v400 = vadd.f32 %v399, %v385
    %v401 = vadd.f32 %v400, %v386
    %v402 = vadd.f32 %v401, %v387
    %v403 = vadd.f32 %v402, %v388
    %v404 = vadd.f32 %v403, %v389
    %v405 = vadd.f32 %v404, %v390
    %v406 = vadd.f32 %v405, %v391
    %v407 = vadd.f32 %v406, %v392
    %v408 = vadd.f32 %v407, %v393
    %v409 = vadd.f32 %v408, %v394
    %v410 = vadd.f32 %v409, %v395
    %411 = vadd.xlane.f32.xlu0 %v410
    %v412 = vpop.xlane.xlu0 %411
    %v413 = vrot.slane %v412, 4
    %v414 = vadd.f32 %v412, %v413
    %v415 = vrot.slane %v414, 2
    %v416 = vadd.f32 %v414, %v415
    %v417 = vrot.slane %v416, 1
    %v418 = vadd.f32 %v416, %v417
    %s419 = vtos %v418
    %v420 = vstv %s419
    %v421 = vsel %vm81, %v420, 0.0
    %v422 = vadd.f32 %v421, 0.0
    %v423 = vld [vmem:[%s1 + $0x1] sm:$0x1]
    %vm424 = vcmp.lt.s32.totalorder %v423, 0
    %v425 = vsel %vm424, %v46, 128
    %v426 = vsel %vm50, %v425, 2147483647
    %v427 = vand.u32 %v426, 65535
    %v428 = vshra.s32 %v426, 16
    %v429 = vcvt.s32.f32 %v427
    %v430 = vcvt.s32.f32 %v428
    %431 = vmin.xlane.f32.xlu0 %v430
    %v432 = vpop.xlane.xlu0 %431
    %vm433 = vcmp.eq.f32.partialorder %v430, %v432
    %v434 = vsel %vm433, %v429, inf
    %435 = vmin.xlane.f32.xlu0 %v434
    %v436 = vpop.xlane.xlu0 %435
    %v437 = vcvt.f32.s32 %v436
    %v438 = vcvt.f32.s32 %v432
    %v439 = vshll.u32 %v438, 16
    %v440 = vadd.s32 %v439, %v437
    %v441 = vrot.slane %v440, 4
    %vm442 = vcmp.lt.s32.totalorder %v440, %v441
    %v443 = vsel %vm442, %v440, %v441
    %v444 = vrot.slane %v443, 2
    %vm445 = vcmp.lt.s32.totalorder %v443, %v444
    %v446 = vsel %vm445, %v443, %v444
    %v447 = vrot.slane %v446, 1
    %vm448 = vcmp.lt.s32.totalorder %v446, %v447
    %v449 = vsel %vm448, %v446, %v447
    %s450 = vtos %v449
    %v451 = vstv %s450
    %vm452 = vcmp.lt.s32.totalorder %v46, %v451
    %v453 = vsel %vm452, 1, 0
    %v454 = vcvt.s32.f32 %v453
    %v455 = vsel %vm452, %v423, 0
    %vm456 = vcmp.eq.s32.totalorder %v46, 1
    %v457 = vsel %vm456, 1, 0
    %v458 = vcvt.s32.f32 %v457
    %v459 = vmul.f32 %v12, %v458
    %v460 = vmul.f32 %v13, %v458
    %v461 = vmul.f32 %v14, %v458
    %v462 = vmul.f32 %v15, %v458
    %v463 = vmul.f32 %v16, %v458
    %v464 = vmul.f32 %v17, %v458
    %v465 = vmul.f32 %v18, %v458
    %v466 = vmul.f32 %v19, %v458
    %v467 = vmul.f32 %v20, %v458
    %v468 = vmul.f32 %v21, %v458
    %v469 = vmul.f32 %v22, %v458
    %v470 = vmul.f32 %v23, %v458
    %v471 = vmul.f32 %v24, %v458
    %v472 = vmul.f32 %v25, %v458
    %v473 = vmul.f32 %v26, %v458
    %v474 = vmul.f32 %v27, %v458
    %v475 = vsel %vm100, %v459, 0.0
    %476 = vadd.xlane.f32.xlu0 %v475
    %v477 = vpop.xlane.xlu0 %476
    %v478 = vsel %vm100, %v460, 0.0
    %479 = vadd.xlane.f32.xlu0 %v478
    %v480 = vpop.xlane.xlu0 %479
    %v481 = vsel %vm100, %v461, 0.0
    %482 = vadd.xlane.f32.xlu0 %v481
    %v483 = vpop.xlane.xlu0 %482
    %v484 = vsel %vm100, %v462, 0.0
    %485 = vadd.xlane.f32.xlu0 %v484
    %v486 = vpop.xlane.xlu0 %485
    %v487 = vsel %vm100, %v463, 0.0
    %488 = vadd.xlane.f32.xlu0 %v487
    %v489 = vpop.xlane.xlu0 %488
    %v490 = vsel %vm100, %v464, 0.0
    %491 = vadd.xlane.f32.xlu0 %v490
    %v492 = vpop.xlane.xlu0 %491
    %v493 = vsel %vm100, %v465, 0.0
    %494 = vadd.xlane.f32.xlu0 %v493
    %v495 = vpop.xlane.xlu0 %494
    %v496 = vsel %vm100, %v466, 0.0
    %497 = vadd.xlane.f32.xlu0 %v496
    %v498 = vpop.xlane.xlu0 %497
    %v499 = vsel %vm100, %v467, 0.0
    %500 = vadd.xlane.f32.xlu0 %v499
    %v501 = vpop.xlane.xlu0 %500
    %v502 = vsel %vm100, %v468, 0.0
    %503 = vadd.xlane.f32.xlu0 %v502
    %v504 = vpop.xlane.xlu0 %503
    %v505 = vsel %vm100, %v469, 0.0
    %506 = vadd.xlane.f32.xlu0 %v505
    %v507 = vpop.xlane.xlu0 %506
    %v508 = vsel %vm100, %v470, 0.0
    %509 = vadd.xlane.f32.xlu0 %v508
    %v510 = vpop.xlane.xlu0 %509
    %v511 = vsel %vm100, %v471, 0.0
    %512 = vadd.xlane.f32.xlu0 %v511
    %v513 = vpop.xlane.xlu0 %512
    %v514 = vsel %vm100, %v472, 0.0
    %515 = vadd.xlane.f32.xlu0 %v514
    %v516 = vpop.xlane.xlu0 %515
    %v517 = vsel %vm100, %v473, 0.0
    %518 = vadd.xlane.f32.xlu0 %v517
    %v519 = vpop.xlane.xlu0 %518
    %v520 = vsel %vm100, %v474, 0.0
    %521 = vadd.xlane.f32.xlu0 %v520
    %v522 = vpop.xlane.xlu0 %521
    %v523 = vperm.slane %v455, 0
    %vm524 = vcmp.eq.s32.totalorder %v29, %v523
    %vm525 = vcmp.eq.s32.totalorder %v30, %v523
    %vm526 = vcmp.eq.s32.totalorder %v31, %v523
    %vm527 = vcmp.eq.s32.totalorder %v32, %v523
    %vm528 = vcmp.eq.s32.totalorder %v33, %v523
    %vm529 = vcmp.eq.s32.totalorder %v34, %v523
    %vm530 = vcmp.eq.s32.totalorder %v35, %v523
    %vm531 = vcmp.eq.s32.totalorder %v36, %v523
    %vm532 = vcmp.eq.s32.totalorder %v37, %v523
    %vm533 = vcmp.eq.s32.totalorder %v38, %v523
    %vm534 = vcmp.eq.s32.totalorder %v39, %v523
    %vm535 = vcmp.eq.s32.totalorder %v40, %v523
    %vm536 = vcmp.eq.s32.totalorder %v41, %v523
    %vm537 = vcmp.eq.s32.totalorder %v42, %v523
    %vm538 = vcmp.eq.s32.totalorder %v43, %v523
    %vm539 = vcmp.eq.s32.totalorder %v44, %v523
    %v540 = vsel %vm524, 1, 0
    %v541 = vsel %vm525, 1, 0
    %v542 = vsel %vm526, 1, 0
    %v543 = vsel %vm527, 1, 0
    %v544 = vsel %vm528, 1, 0
    %v545 = vsel %vm529, 1, 0
    %v546 = vsel %vm530, 1, 0
    %v547 = vsel %vm531, 1, 0
    %v548 = vsel %vm532, 1, 0
    %v549 = vsel %vm533, 1, 0
    %v550 = vsel %vm534, 1, 0
    %v551 = vsel %vm535, 1, 0
    %v552 = vsel %vm536, 1, 0
    %v553 = vsel %vm537, 1, 0
    %v554 = vsel %vm538, 1, 0
    %v555 = vsel %vm539, 1, 0
    %v556 = vcvt.s32.f32 %v540
    %v557 = vcvt.s32.f32 %v541
    %v558 = vcvt.s32.f32 %v542
    %v559 = vcvt.s32.f32 %v543
    %v560 = vcvt.s32.f32 %v544
    %v561 = vcvt.s32.f32 %v545
    %v562 = vcvt.s32.f32 %v546
    %v563 = vcvt.s32.f32 %v547
    %v564 = vcvt.s32.f32 %v548
    %v565 = vcvt.s32.f32 %v549
    %v566 = vcvt.s32.f32 %v550
    %v567 = vcvt.s32.f32 %v551
    %v568 = vcvt.s32.f32 %v552
    %v569 = vcvt.s32.f32 %v553
    %v570 = vcvt.s32.f32 %v554
    %v571 = vcvt.s32.f32 %v555
    %v572 = vmul.f32 %v556, %v477
    %v573 = vmul.f32 %v557, %v480
    %v574 = vmul.f32 %v558, %v483
    %v575 = vmul.f32 %v559, %v486
    %v576 = vmul.f32 %v560, %v489
    %v577 = vmul.f32 %v561, %v492
    %v578 = vmul.f32 %v562, %v495
    %v579 = vmul.f32 %v563, %v498
    %v580 = vmul.f32 %v564, %v501
    %v581 = vmul.f32 %v565, %v504
    %v582 = vmul.f32 %v566, %v507
    %v583 = vmul.f32 %v567, %v510
    %v584 = vmul.f32 %v568, %v513
    %v585 = vmul.f32 %v569, %v516
    %v586 = vmul.f32 %v570, %v519
    %v587 = vmul.f32 %v571, %v522
    %v588 = vadd.f32 %v572, %v573
    %v589 = vadd.f32 %v588, %v574
    %v590 = vadd.f32 %v589, %v575
    %v591 = vadd.f32 %v590, %v576
    %v592 = vadd.f32 %v591, %v577
    %v593 = vadd.f32 %v592, %v578
    %v594 = vadd.f32 %v593, %v579
    %v595 = vadd.f32 %v594, %v580
    %v596 = vadd.f32 %v595, %v581
    %v597 = vadd.f32 %v596, %v582
    %v598 = vadd.f32 %v597, %v583
    %v599 = vadd.f32 %v598, %v584
    %v600 = vadd.f32 %v599, %v585
    %v601 = vadd.f32 %v600, %v586
    %v602 = vadd.f32 %v601, %v587
    %v603 = vrot.slane %v602, 4
    %v604 = vadd.f32 %v602, %v603
    %v605 = vrot.slane %v604, 2
    %v606 = vadd.f32 %v604, %v605
    %v607 = vrot.slane %v606, 1
    %v608 = vadd.f32 %v606, %v607
    %v609 = vmul.f32 %v556, %v454
    %v610 = vmul.f32 %v557, %v454
    %v611 = vmul.f32 %v558, %v454
    %v612 = vmul.f32 %v559, %v454
    %v613 = vmul.f32 %v560, %v454
    %v614 = vmul.f32 %v561, %v454
    %v615 = vmul.f32 %v562, %v454
    %v616 = vmul.f32 %v563, %v454
    %v617 = vmul.f32 %v564, %v454
    %v618 = vmul.f32 %v565, %v454
    %v619 = vmul.f32 %v566, %v454
    %v620 = vmul.f32 %v567, %v454
    %v621 = vmul.f32 %v568, %v454
    %v622 = vmul.f32 %v569, %v454
    %v623 = vmul.f32 %v570, %v454
    %v624 = vmul.f32 %v571, %v454
    %625 = vadd.xlane.f32.xlu0 %v609
    %v626 = vpop.xlane.xlu0 %625
    %627 = vadd.xlane.f32.xlu0 %v610
    %v628 = vpop.xlane.xlu0 %627
    %629 = vadd.xlane.f32.xlu0 %v611
    %v630 = vpop.xlane.xlu0 %629
    %631 = vadd.xlane.f32.xlu0 %v612
    %v632 = vpop.xlane.xlu0 %631
    %633 = vadd.xlane.f32.xlu0 %v613
    %v634 = vpop.xlane.xlu0 %633
    %635 = vadd.xlane.f32.xlu0 %v614
    %v636 = vpop.xlane.xlu0 %635
    %637 = vadd.xlane.f32.xlu0 %v615
    %v638 = vpop.xlane.xlu0 %637
    %639 = vadd.xlane.f32.xlu0 %v616
    %v640 = vpop.xlane.xlu0 %639
    %641 = vadd.xlane.f32.xlu0 %v617
    %v642 = vpop.xlane.xlu0 %641
    %643 = vadd.xlane.f32.xlu0 %v618
    %v644 = vpop.xlane.xlu0 %643
    %645 = vadd.xlane.f32.xlu0 %v619
    %v646 = vpop.xlane.xlu0 %645
    %647 = vadd.xlane.f32.xlu0 %v620
    %v648 = vpop.xlane.xlu0 %647
    %649 = vadd.xlane.f32.xlu0 %v621
    %v650 = vpop.xlane.xlu0 %649
    %651 = vadd.xlane.f32.xlu0 %v622
    %v652 = vpop.xlane.xlu0 %651
    %653 = vadd.xlane.f32.xlu0 %v623
    %v654 = vpop.xlane.xlu0 %653
    %655 = vadd.xlane.f32.xlu0 %v624
    %v656 = vpop.xlane.xlu0 %655
    %vm657 = vcmp.eq.f32.partialorder %v626, 0.0
    %vm658 = vcmp.eq.f32.partialorder %v628, 0.0
    %vm659 = vcmp.eq.f32.partialorder %v630, 0.0
    %vm660 = vcmp.eq.f32.partialorder %v632, 0.0
    %vm661 = vcmp.eq.f32.partialorder %v634, 0.0
    %vm662 = vcmp.eq.f32.partialorder %v636, 0.0
    %vm663 = vcmp.eq.f32.partialorder %v638, 0.0
    %vm664 = vcmp.eq.f32.partialorder %v640, 0.0
    %vm665 = vcmp.eq.f32.partialorder %v642, 0.0
    %vm666 = vcmp.eq.f32.partialorder %v644, 0.0
    %vm667 = vcmp.eq.f32.partialorder %v646, 0.0
    %vm668 = vcmp.eq.f32.partialorder %v648, 0.0
    %vm669 = vcmp.eq.f32.partialorder %v650, 0.0
    %vm670 = vcmp.eq.f32.partialorder %v652, 0.0
    %vm671 = vcmp.eq.f32.partialorder %v654, 0.0
    %vm672 = vcmp.eq.f32.partialorder %v656, 0.0
    %v673 = vsel %vm657, 1, 0
    %v674 = vsel %vm658, 1, 0
    %v675 = vsel %vm659, 1, 0
    %v676 = vsel %vm660, 1, 0
    %v677 = vsel %vm661, 1, 0
    %v678 = vsel %vm662, 1, 0
    %v679 = vsel %vm663, 1, 0
    %v680 = vsel %vm664, 1, 0
    %v681 = vsel %vm665, 1, 0
    %v682 = vsel %vm666, 1, 0
    %v683 = vsel %vm667, 1, 0
    %v684 = vsel %vm668, 1, 0
    %v685 = vsel %vm669, 1, 0
    %v686 = vsel %vm670, 1, 0
    %v687 = vsel %vm671, 1, 0
    %v688 = vsel %vm672, 1, 0
    %v689 = vcvt.s32.f32 %v673
    %v690 = vcvt.s32.f32 %v674
    %v691 = vcvt.s32.f32 %v675
    %v692 = vcvt.s32.f32 %v676
    %v693 = vcvt.s32.f32 %v677
    %v694 = vcvt.s32.f32 %v678
    %v695 = vcvt.s32.f32 %v679
    %v696 = vcvt.s32.f32 %v680
    %v697 = vcvt.s32.f32 %v681
    %v698 = vcvt.s32.f32 %v682
    %v699 = vcvt.s32.f32 %v683
    %v700 = vcvt.s32.f32 %v684
    %v701 = vcvt.s32.f32 %v685
    %v702 = vcvt.s32.f32 %v686
    %v703 = vcvt.s32.f32 %v687
    %v704 = vcvt.s32.f32 %v688
    %v705 = vsub.f32 1.0, %v608
    %v706 = vadd.f32 %v705, %v477
    %v707 = vadd.f32 %v705, %v480
    %v708 = vadd.f32 %v705, %v483
    %v709 = vadd.f32 %v705, %v486
    %v710 = vadd.f32 %v705, %v489
    %v711 = vadd.f32 %v705, %v492
    %v712 = vadd.f32 %v705, %v495
    %v713 = vadd.f32 %v705, %v498
    %v714 = vadd.f32 %v705, %v501
    %v715 = vadd.f32 %v705, %v504
    %v716 = vadd.f32 %v705, %v507
    %v717 = vadd.f32 %v705, %v510
    %v718 = vadd.f32 %v705, %v513
    %v719 = vadd.f32 %v705, %v516
    %v720 = vadd.f32 %v705, %v519
    %v721 = vadd.f32 %v705, %v522
    %v722 = vmax.f32 %v706, 0.0
    %v723 = vmax.f32 %v707, 0.0
    %v724 = vmax.f32 %v708, 0.0
    %v725 = vmax.f32 %v709, 0.0
    %v726 = vmax.f32 %v710, 0.0
    %v727 = vmax.f32 %v711, 0.0
    %v728 = vmax.f32 %v712, 0.0
    %v729 = vmax.f32 %v713, 0.0
    %v730 = vmax.f32 %v714, 0.0
    %v731 = vmax.f32 %v715, 0.0
    %v732 = vmax.f32 %v716, 0.0
    %v733 = vmax.f32 %v717, 0.0
    %v734 = vmax.f32 %v718, 0.0
    %v735 = vmax.f32 %v719, 0.0
    %v736 = vmax.f32 %v720, 0.0
    %v737 = vmax.f32 %v721, 0.0
    %v738 = vmul.f32 %v454, %v689
    %v739 = vmul.f32 %v454, %v690
    %v740 = vmul.f32 %v454, %v691
    %v741 = vmul.f32 %v454, %v692
    %v742 = vmul.f32 %v454, %v693
    %v743 = vmul.f32 %v454, %v694
    %v744 = vmul.f32 %v454, %v695
    %v745 = vmul.f32 %v454, %v696
    %v746 = vmul.f32 %v454, %v697
    %v747 = vmul.f32 %v454, %v698
    %v748 = vmul.f32 %v454, %v699
    %v749 = vmul.f32 %v454, %v700
    %v750 = vmul.f32 %v454, %v701
    %v751 = vmul.f32 %v454, %v702
    %v752 = vmul.f32 %v454, %v703
    %v753 = vmul.f32 %v454, %v704
    %v754 = vmul.f32 %v722, %v738
    %v755 = vmul.f32 %v723, %v739
    %v756 = vmul.f32 %v724, %v740
    %v757 = vmul.f32 %v725, %v741
    %v758 = vmul.f32 %v726, %v742
    %v759 = vmul.f32 %v727, %v743
    %v760 = vmul.f32 %v728, %v744
    %v761 = vmul.f32 %v729, %v745
    %v762 = vmul.f32 %v730, %v746
    %v763 = vmul.f32 %v731, %v747
    %v764 = vmul.f32 %v732, %v748
    %v765 = vmul.f32 %v733, %v749
    %v766 = vmul.f32 %v734, %v750
    %v767 = vmul.f32 %v735, %v751
    %v768 = vmul.f32 %v736, %v752
    %v769 = vmul.f32 %v737, %v753
    %v770 = vadd.f32 %v754, %v755
    %v771 = vadd.f32 %v770, %v756
    %v772 = vadd.f32 %v771, %v757
    %v773 = vadd.f32 %v772, %v758
    %v774 = vadd.f32 %v773, %v759
    %v775 = vadd.f32 %v774, %v760
    %v776 = vadd.f32 %v775, %v761
    %v777 = vadd.f32 %v776, %v762
    %v778 = vadd.f32 %v777, %v763
    %v779 = vadd.f32 %v778, %v764
    %v780 = vadd.f32 %v779, %v765
    %v781 = vadd.f32 %v780, %v766
    %v782 = vadd.f32 %v781, %v767
    %v783 = vadd.f32 %v782, %v768
    %v784 = vadd.f32 %v783, %v769
    %785 = vadd.xlane.f32.xlu0 %v784
    %v786 = vpop.xlane.xlu0 %785
    %v787 = vrot.slane %v786, 4
    %v788 = vadd.f32 %v786, %v787
    %v789 = vrot.slane %v788, 2
    %v790 = vadd.f32 %v788, %v789
    %v791 = vrot.slane %v790, 1
    %v792 = vadd.f32 %v790, %v791
    %s793 = vtos %v792
    %v794 = vstv %s793
    %v795 = vsel %vm456, %v794, 0.0
    %v796 = vadd.f32 %v422, %v795
    %v797 = vld [vmem:[%s1 + $0x2] sm:$0x1]
    %vm798 = vcmp.lt.s32.totalorder %v797, 0
    %v799 = vsel %vm798, %v46, 128
    %v800 = vsel %vm50, %v799, 2147483647
    %v801 = vand.u32 %v800, 65535
    %v802 = vshra.s32 %v800, 16
    %v803 = vcvt.s32.f32 %v801
    %v804 = vcvt.s32.f32 %v802
    %805 = vmin.xlane.f32.xlu0 %v804
    %v806 = vpop.xlane.xlu0 %805
    %vm807 = vcmp.eq.f32.partialorder %v804, %v806
    %v808 = vsel %vm807, %v803, inf
    %809 = vmin.xlane.f32.xlu0 %v808
    %v810 = vpop.xlane.xlu0 %809
    %v811 = vcvt.f32.s32 %v810
    %v812 = vcvt.f32.s32 %v806
    %v813 = vshll.u32 %v812, 16
    %v814 = vadd.s32 %v813, %v811
    %v815 = vrot.slane %v814, 4
    %vm816 = vcmp.lt.s32.totalorder %v814, %v815
    %v817 = vsel %vm816, %v814, %v815
    %v818 = vrot.slane %v817, 2
    %vm819 = vcmp.lt.s32.totalorder %v817, %v818
    %v820 = vsel %vm819, %v817, %v818
    %v821 = vrot.slane %v820, 1
    %vm822 = vcmp.lt.s32.totalorder %v820, %v821
    %v823 = vsel %vm822, %v820, %v821
    %s824 = vtos %v823
    %v825 = vstv %s824
    %vm826 = vcmp.lt.s32.totalorder %v46, %v825
    %v827 = vsel %vm826, 1, 0
    %v828 = vcvt.s32.f32 %v827
    %v829 = vsel %vm826, %v797, 0
    %vm830 = vcmp.eq.s32.totalorder %v46, 2
    %v831 = vsel %vm830, 1, 0
    %v832 = vcvt.s32.f32 %v831
    %v833 = vmul.f32 %v12, %v832
    %v834 = vmul.f32 %v13, %v832
    %v835 = vmul.f32 %v14, %v832
    %v836 = vmul.f32 %v15, %v832
    %v837 = vmul.f32 %v16, %v832
    %v838 = vmul.f32 %v17, %v832
    %v839 = vmul.f32 %v18, %v832
    %v840 = vmul.f32 %v19, %v832
    %v841 = vmul.f32 %v20, %v832
    %v842 = vmul.f32 %v21, %v832
    %v843 = vmul.f32 %v22, %v832
    %v844 = vmul.f32 %v23, %v832
    %v845 = vmul.f32 %v24, %v832
    %v846 = vmul.f32 %v25, %v832
    %v847 = vmul.f32 %v26, %v832
    %v848 = vmul.f32 %v27, %v832
    %v849 = vsel %vm100, %v833, 0.0
    %850 = vadd.xlane.f32.xlu0 %v849
    %v851 = vpop.xlane.xlu0 %850
    %v852 = vsel %vm100, %v834, 0.0
    %853 = vadd.xlane.f32.xlu0 %v852
    %v854 = vpop.xlane.xlu0 %853
    %v855 = vsel %vm100, %v835, 0.0
    %856 = vadd.xlane.f32.xlu0 %v855
    %v857 = vpop.xlane.xlu0 %856
    %v858 = vsel %vm100, %v836, 0.0
    %859 = vadd.xlane.f32.xlu0 %v858
    %v860 = vpop.xlane.xlu0 %859
    %v861 = vsel %vm100, %v837, 0.0
    %862 = vadd.xlane.f32.xlu0 %v861
    %v863 = vpop.xlane.xlu0 %862
    %v864 = vsel %vm100, %v838, 0.0
    %865 = vadd.xlane.f32.xlu0 %v864
    %v866 = vpop.xlane.xlu0 %865
    %v867 = vsel %vm100, %v839, 0.0
    %868 = vadd.xlane.f32.xlu0 %v867
    %v869 = vpop.xlane.xlu0 %868
    %v870 = vsel %vm100, %v840, 0.0
    %871 = vadd.xlane.f32.xlu0 %v870
    %v872 = vpop.xlane.xlu0 %871
    %v873 = vsel %vm100, %v841, 0.0
    %874 = vadd.xlane.f32.xlu0 %v873
    %v875 = vpop.xlane.xlu0 %874
    %v876 = vsel %vm100, %v842, 0.0
    %877 = vadd.xlane.f32.xlu0 %v876
    %v878 = vpop.xlane.xlu0 %877
    %v879 = vsel %vm100, %v843, 0.0
    %880 = vadd.xlane.f32.xlu0 %v879
    %v881 = vpop.xlane.xlu0 %880
    %v882 = vsel %vm100, %v844, 0.0
    %883 = vadd.xlane.f32.xlu0 %v882
    %v884 = vpop.xlane.xlu0 %883
    %v885 = vsel %vm100, %v845, 0.0
    %886 = vadd.xlane.f32.xlu0 %v885
    %v887 = vpop.xlane.xlu0 %886
    %v888 = vsel %vm100, %v846, 0.0
    %889 = vadd.xlane.f32.xlu0 %v888
    %v890 = vpop.xlane.xlu0 %889
    %v891 = vsel %vm100, %v847, 0.0
    %892 = vadd.xlane.f32.xlu0 %v891
    %v893 = vpop.xlane.xlu0 %892
    %v894 = vsel %vm100, %v848, 0.0
    %895 = vadd.xlane.f32.xlu0 %v894
    %v896 = vpop.xlane.xlu0 %895
    %v897 = vperm.slane %v829, 0
    %vm898 = vcmp.eq.s32.totalorder %v29, %v897
    %vm899 = vcmp.eq.s32.totalorder %v30, %v897
    %vm900 = vcmp.eq.s32.totalorder %v31, %v897
    %vm901 = vcmp.eq.s32.totalorder %v32, %v897
    %vm902 = vcmp.eq.s32.totalorder %v33, %v897
    %vm903 = vcmp.eq.s32.totalorder %v34, %v897
    %vm904 = vcmp.eq.s32.totalorder %v35, %v897
    %vm905 = vcmp.eq.s32.totalorder %v36, %v897
    %vm906 = vcmp.eq.s32.totalorder %v37, %v897
    %vm907 = vcmp.eq.s32.totalorder %v38, %v897
    %vm908 = vcmp.eq.s32.totalorder %v39, %v897
    %vm909 = vcmp.eq.s32.totalorder %v40, %v897
    %vm910 = vcmp.eq.s32.totalorder %v41, %v897
    %vm911 = vcmp.eq.s32.totalorder %v42, %v897
    %vm912 = vcmp.eq.s32.totalorder %v43, %v897
    %vm913 = vcmp.eq.s32.totalorder %v44, %v897
    %v914 = vsel %vm898, 1, 0
    %v915 = vsel %vm899, 1, 0
    %v916 = vsel %vm900, 1, 0
    %v917 = vsel %vm901, 1, 0
    %v918 = vsel %vm902, 1, 0
    %v919 = vsel %vm903, 1, 0
    %v920 = vsel %vm904, 1, 0
    %v921 = vsel %vm905, 1, 0
    %v922 = vsel %vm906, 1, 0
    %v923 = vsel %vm907, 1, 0
    %v924 = vsel %vm908, 1, 0
    %v925 = vsel %vm909, 1, 0
    %v926 = vsel %vm910, 1, 0
    %v927 = vsel %vm911, 1, 0
    %v928 = vsel %vm912, 1, 0
    %v929 = vsel %vm913, 1, 0
    %v930 = vcvt.s32.f32 %v914
    %v931 = vcvt.s32.f32 %v915
    %v932 = vcvt.s32.f32 %v916
    %v933 = vcvt.s32.f32 %v917
    %v934 = vcvt.s32.f32 %v918
    %v935 = vcvt.s32.f32 %v919
    %v936 = vcvt.s32.f32 %v920
    %v937 = vcvt.s32.f32 %v921
    %v938 = vcvt.s32.f32 %v922
    %v939 = vcvt.s32.f32 %v923
    %v940 = vcvt.s32.f32 %v924
    %v941 = vcvt.s32.f32 %v925
    %v942 = vcvt.s32.f32 %v926
    %v943 = vcvt.s32.f32 %v927
    %v944 = vcvt.s32.f32 %v928
    %v945 = vcvt.s32.f32 %v929
    %v946 = vmul.f32 %v930, %v851
    %v947 = vmul.f32 %v931, %v854
    %v948 = vmul.f32 %v932, %v857
    %v949 = vmul.f32 %v933, %v860
    %v950 = vmul.f32 %v934, %v863
    %v951 = vmul.f32 %v935, %v866
    %v952 = vmul.f32 %v936, %v869
    %v953 = vmul.f32 %v937, %v872
    %v954 = vmul.f32 %v938, %v875
    %v955 = vmul.f32 %v939, %v878
    %v956 = vmul.f32 %v940, %v881
    %v957 = vmul.f32 %v941, %v884
    %v958 = vmul.f32 %v942, %v887
    %v959 = vmul.f32 %v943, %v890
    %v960 = vmul.f32 %v944, %v893
    %v961 = vmul.f32 %v945, %v896
    %v962 = vadd.f32 %v946, %v947
    %v963 = vadd.f32 %v962, %v948
    %v964 = vadd.f32 %v963, %v949
    %v965 = vadd.f32 %v964, %v950
    %v966 = vadd.f32 %v965, %v951
    %v967 = vadd.f32 %v966, %v952
    %v968 = vadd.f32 %v967, %v953
    %v969 = vadd.f32 %v968, %v954
    %v970 = vadd.f32 %v969, %v955
    %v971 = vadd.f32 %v970, %v956
    %v972 = vadd.f32 %v971, %v957
    %v973 = vadd.f32 %v972, %v958
    %v974 = vadd.f32 %v973, %v959
    %v975 = vadd.f32 %v974, %v960
    %v976 = vadd.f32 %v975, %v961
    %v977 = vrot.slane %v976, 4
    %v978 = vadd.f32 %v976, %v977
    %v979 = vrot.slane %v978, 2
    %v980 = vadd.f32 %v978, %v979
    %v981 = vrot.slane %v980, 1
    %v982 = vadd.f32 %v980, %v981
    %v983 = vmul.f32 %v930, %v828
    %v984 = vmul.f32 %v931, %v828
    %v985 = vmul.f32 %v932, %v828
    %v986 = vmul.f32 %v933, %v828
    %v987 = vmul.f32 %v934, %v828
    %v988 = vmul.f32 %v935, %v828
    %v989 = vmul.f32 %v936, %v828
    %v990 = vmul.f32 %v937, %v828
    %v991 = vmul.f32 %v938, %v828
    %v992 = vmul.f32 %v939, %v828
    %v993 = vmul.f32 %v940, %v828
    %v994 = vmul.f32 %v941, %v828
    %v995 = vmul.f32 %v942, %v828
    %v996 = vmul.f32 %v943, %v828
    %v997 = vmul.f32 %v944, %v828
    %v998 = vmul.f32 %v945, %v828
    %999 = vadd.xlane.f32.xlu0 %v983
    %v1000 = vpop.xlane.xlu0 %999
    %1001 = vadd.xlane.f32.xlu0 %v984
    %v1002 = vpop.xlane.xlu0 %1001
    %1003 = vadd.xlane.f32.xlu0 %v985
    %v1004 = vpop.xlane.xlu0 %1003
    %1005 = vadd.xlane.f32.xlu0 %v986
    %v1006 = vpop.xlane.xlu0 %1005
    %1007 = vadd.xlane.f32.xlu0 %v987
    %v1008 = vpop.xlane.xlu0 %1007
    %1009 = vadd.xlane.f32.xlu0 %v988
    %v1010 = vpop.xlane.xlu0 %1009
    %1011 = vadd.xlane.f32.xlu0 %v989
    %v1012 = vpop.xlane.xlu0 %1011
    %1013 = vadd.xlane.f32.xlu0 %v990
    %v1014 = vpop.xlane.xlu0 %1013
    %1015 = vadd.xlane.f32.xlu0 %v991
    %v1016 = vpop.xlane.xlu0 %1015
    %1017 = vadd.xlane.f32.xlu0 %v992
    %v1018 = vpop.xlane.xlu0 %1017
    %1019 = vadd.xlane.f32.xlu0 %v993
    %v1020 = vpop.xlane.xlu0 %1019
    %1021 = vadd.xlane.f32.xlu0 %v994
    %v1022 = vpop.xlane.xlu0 %1021
    %1023 = vadd.xlane.f32.xlu0 %v995
    %v1024 = vpop.xlane.xlu0 %1023
    %1025 = vadd.xlane.f32.xlu0 %v996
    %v1026 = vpop.xlane.xlu0 %1025
    %1027 = vadd.xlane.f32.xlu0 %v997
    %v1028 = vpop.xlane.xlu0 %1027
    %1029 = vadd.xlane.f32.xlu0 %v998
    %v1030 = vpop.xlane.xlu0 %1029
    %vm1031 = vcmp.eq.f32.partialorder %v1000, 0.0
    %vm1032 = vcmp.eq.f32.partialorder %v1002, 0.0
    %vm1033 = vcmp.eq.f32.partialorder %v1004, 0.0
    %vm1034 = vcmp.eq.f32.partialorder %v1006, 0.0
    %vm1035 = vcmp.eq.f32.partialorder %v1008, 0.0
    %vm1036 = vcmp.eq.f32.partialorder %v1010, 0.0
    %vm1037 = vcmp.eq.f32.partialorder %v1012, 0.0
    %vm1038 = vcmp.eq.f32.partialorder %v1014, 0.0
    %vm1039 = vcmp.eq.f32.partialorder %v1016, 0.0
    %vm1040 = vcmp.eq.f32.partialorder %v1018, 0.0
    %vm1041 = vcmp.eq.f32.partialorder %v1020, 0.0
    %vm1042 = vcmp.eq.f32.partialorder %v1022, 0.0
    %vm1043 = vcmp.eq.f32.partialorder %v1024, 0.0
    %vm1044 = vcmp.eq.f32.partialorder %v1026, 0.0
    %vm1045 = vcmp.eq.f32.partialorder %v1028, 0.0
    %vm1046 = vcmp.eq.f32.partialorder %v1030, 0.0
    %v1047 = vsel %vm1031, 1, 0
    %v1048 = vsel %vm1032, 1, 0
    %v1049 = vsel %vm1033, 1, 0
    %v1050 = vsel %vm1034, 1, 0
    %v1051 = vsel %vm1035, 1, 0
    %v1052 = vsel %vm1036, 1, 0
    %v1053 = vsel %vm1037, 1, 0
    %v1054 = vsel %vm1038, 1, 0
    %v1055 = vsel %vm1039, 1, 0
    %v1056 = vsel %vm1040, 1, 0
    %v1057 = vsel %vm1041, 1, 0
    %v1058 = vsel %vm1042, 1, 0
    %v1059 = vsel %vm1043, 1, 0
    %v1060 = vsel %vm1044, 1, 0
    %v1061 = vsel %vm1045, 1, 0
    %v1062 = vsel %vm1046, 1, 0
    %v1063 = vcvt.s32.f32 %v1047
    %v1064 = vcvt.s32.f32 %v1048
    %v1065 = vcvt.s32.f32 %v1049
    %v1066 = vcvt.s32.f32 %v1050
    %v1067 = vcvt.s32.f32 %v1051
    %v1068 = vcvt.s32.f32 %v1052
    %v1069 = vcvt.s32.f32 %v1053
    %v1070 = vcvt.s32.f32 %v1054
    %v1071 = vcvt.s32.f32 %v1055
    %v1072 = vcvt.s32.f32 %v1056
    %v1073 = vcvt.s32.f32 %v1057
    %v1074 = vcvt.s32.f32 %v1058
    %v1075 = vcvt.s32.f32 %v1059
    %v1076 = vcvt.s32.f32 %v1060
    %v1077 = vcvt.s32.f32 %v1061
    %v1078 = vcvt.s32.f32 %v1062
    %v1079 = vsub.f32 1.0, %v982
    %v1080 = vadd.f32 %v1079, %v851
    %v1081 = vadd.f32 %v1079, %v854
    %v1082 = vadd.f32 %v1079, %v857
    %v1083 = vadd.f32 %v1079, %v860
    %v1084 = vadd.f32 %v1079, %v863
    %v1085 = vadd.f32 %v1079, %v866
    %v1086 = vadd.f32 %v1079, %v869
    %v1087 = vadd.f32 %v1079, %v872
    %v1088 = vadd.f32 %v1079, %v875
    %v1089 = vadd.f32 %v1079, %v878
    %v1090 = vadd.f32 %v1079, %v881
    %v1091 = vadd.f32 %v1079, %v884
    %v1092 = vadd.f32 %v1079, %v887
    %v1093 = vadd.f32 %v1079, %v890
    %v1094 = vadd.f32 %v1079, %v893
    %v1095 = vadd.f32 %v1079, %v896
    %v1096 = vmax.f32 %v1080, 0.0
    %v1097 = vmax.f32 %v1081, 0.0
    %v1098 = vmax.f32 %v1082, 0.0
    %v1099 = vmax.f32 %v1083, 0.0
    %v1100 = vmax.f32 %v1084, 0.0
    %v1101 = vmax.f32 %v1085, 0.0
    %v1102 = vmax.f32 %v1086, 0.0
    %v1103 = vmax.f32 %v1087, 0.0
    %v1104 = vmax.f32 %v1088, 0.0
    %v1105 = vmax.f32 %v1089, 0.0
    %v1106 = vmax.f32 %v1090, 0.0
    %v1107 = vmax.f32 %v1091, 0.0
    %v1108 = vmax.f32 %v1092, 0.0
    %v1109 = vmax.f32 %v1093, 0.0
    %v1110 = vmax.f32 %v1094, 0.0
    %v1111 = vmax.f32 %v1095, 0.0
    %v1112 = vmul.f32 %v828, %v1063
    %v1113 = vmul.f32 %v828, %v1064
    %v1114 = vmul.f32 %v828, %v1065
    %v1115 = vmul.f32 %v828, %v1066
    %v1116 = vmul.f32 %v828, %v1067
    %v1117 = vmul.f32 %v828, %v1068
    %v1118 = vmul.f32 %v828, %v1069
    %v1119 = vmul.f32 %v828, %v1070
    %v1120 = vmul.f32 %v828, %v1071
    %v1121 = vmul.f32 %v828, %v1072
    %v1122 = vmul.f32 %v828, %v1073
    %v1123 = vmul.f32 %v828, %v1074
    %v1124 = vmul.f32 %v828, %v1075
    %v1125 = vmul.f32 %v828, %v1076
    %v1126 = vmul.f32 %v828, %v1077
    %v1127 = vmul.f32 %v828, %v1078
    %v1128 = vmul.f32 %v1096, %v1112
    %v1129 = vmul.f32 %v1097, %v1113
    %v1130 = vmul.f32 %v1098, %v1114
    %v1131 = vmul.f32 %v1099, %v1115
    %v1132 = vmul.f32 %v1100, %v1116
    %v1133 = vmul.f32 %v1101, %v1117
    %v1134 = vmul.f32 %v1102, %v1118
    %v1135 = vmul.f32 %v1103, %v1119
    %v1136 = vmul.f32 %v1104, %v1120
    %v1137 = vmul.f32 %v1105, %v1121
    %v1138 = vmul.f32 %v1106, %v1122
    %v1139 = vmul.f32 %v1107, %v1123
    %v1140 = vmul.f32 %v1108, %v1124
    %v1141 = vmul.f32 %v1109, %v1125
    %v1142 = vmul.f32 %v1110, %v1126
    %v1143 = vmul.f32 %v1111, %v1127
    %v1144 = vadd.f32 %v1128, %v1129
    %v1145 = vadd.f32 %v1144, %v1130
    %v1146 = vadd.f32 %v1145, %v1131
    %v1147 = vadd.f32 %v1146, %v1132
    %v1148 = vadd.f32 %v1147, %v1133
    %v1149 = vadd.f32 %v1148, %v1134
    %v1150 = vadd.f32 %v1149, %v1135
    %v1151 = vadd.f32 %v1150, %v1136
    %v1152 = vadd.f32 %v1151, %v1137
    %v1153 = vadd.f32 %v1152, %v1138
    %v1154 = vadd.f32 %v1153, %v1139
    %v1155 = vadd.f32 %v1154, %v1140
    %v1156 = vadd.f32 %v1155, %v1141
    %v1157 = vadd.f32 %v1156, %v1142
    %v1158 = vadd.f32 %v1157, %v1143
    %1159 = vadd.xlane.f32.xlu0 %v1158
    %v1160 = vpop.xlane.xlu0 %1159
    %v1161 = vrot.slane %v1160, 4
    %v1162 = vadd.f32 %v1160, %v1161
    %v1163 = vrot.slane %v1162, 2
    %v1164 = vadd.f32 %v1162, %v1163
    %v1165 = vrot.slane %v1164, 1
    %v1166 = vadd.f32 %v1164, %v1165
    %s1167 = vtos %v1166
    %v1168 = vstv %s1167
    %v1169 = vsel %vm830, %v1168, 0.0
    %v1170 = vadd.f32 %v796, %v1169
    %v1171 = vld [vmem:[%s1 + $0x3] sm:$0x1]
    %vm1172 = vcmp.lt.s32.totalorder %v1171, 0
    %v1173 = vsel %vm1172, %v46, 128
    %v1174 = vsel %vm50, %v1173, 2147483647
    %v1175 = vand.u32 %v1174, 65535
    %v1176 = vshra.s32 %v1174, 16
    %v1177 = vcvt.s32.f32 %v1175
    %v1178 = vcvt.s32.f32 %v1176
    %1179 = vmin.xlane.f32.xlu0 %v1178
    %v1180 = vpop.xlane.xlu0 %1179
    %vm1181 = vcmp.eq.f32.partialorder %v1178, %v1180
    %v1182 = vsel %vm1181, %v1177, inf
    %1183 = vmin.xlane.f32.xlu0 %v1182
    %v1184 = vpop.xlane.xlu0 %1183
    %v1185 = vcvt.f32.s32 %v1184
    %v1186 = vcvt.f32.s32 %v1180
    %v1187 = vshll.u32 %v1186, 16
    %v1188 = vadd.s32 %v1187, %v1185
    %v1189 = vrot.slane %v1188, 4
    %vm1190 = vcmp.lt.s32.totalorder %v1188, %v1189
    %v1191 = vsel %vm1190, %v1188, %v1189
    %v1192 = vrot.slane %v1191, 2
    %vm1193 = vcmp.lt.s32.totalorder %v1191, %v1192
    %v1194 = vsel %vm1193, %v1191, %v1192
    %v1195 = vrot.slane %v1194, 1
    %vm1196 = vcmp.lt.s32.totalorder %v1194, %v1195
    %v1197 = vsel %vm1196, %v1194, %v1195
    %s1198 = vtos %v1197
    %v1199 = vstv %s1198
    %vm1200 = vcmp.lt.s32.totalorder %v46, %v1199
    %v1201 = vsel %vm1200, 1, 0
    %v1202 = vcvt.s32.f32 %v1201
    %v1203 = vsel %vm1200, %v1171, 0
    %vm1204 = vcmp.eq.s32.totalorder %v46, 3
    %v1205 = vsel %vm1204, 1, 0
    %v1206 = vcvt.s32.f32 %v1205
    %v1207 = vmul.f32 %v12, %v1206
    %v1208 = vmul.f32 %v13, %v1206
    %v1209 = vmul.f32 %v14, %v1206
    %v1210 = vmul.f32 %v15, %v1206
    %v1211 = vmul.f32 %v16, %v1206
    %v1212 = vmul.f32 %v17, %v1206
    %v1213 = vmul.f32 %v18, %v1206
    %v1214 = vmul.f32 %v19, %v1206
    %v1215 = vmul.f32 %v20, %v1206
    %v1216 = vmul.f32 %v21, %v1206
    %v1217 = vmul.f32 %v22, %v1206
    %v1218 = vmul.f32 %v23, %v1206
    %v1219 = vmul.f32 %v24, %v1206
    %v1220 = vmul.f32 %v25, %v1206
    %v1221 = vmul.f32 %v26, %v1206
    %v1222 = vmul.f32 %v27, %v1206
    %v1223 = vsel %vm100, %v1207, 0.0
    %1224 = vadd.xlane.f32.xlu0 %v1223
    %v1225 = vpop.xlane.xlu0 %1224
    %v1226 = vsel %vm100, %v1208, 0.0
    %1227 = vadd.xlane.f32.xlu0 %v1226
    %v1228 = vpop.xlane.xlu0 %1227
    %v1229 = vsel %vm100, %v1209, 0.0
    %1230 = vadd.xlane.f32.xlu0 %v1229
    %v1231 = vpop.xlane.xlu0 %1230
    %v1232 = vsel %vm100, %v1210, 0.0
    %1233 = vadd.xlane.f32.xlu0 %v1232
    %v1234 = vpop.xlane.xlu0 %1233
    %v1235 = vsel %vm100, %v1211, 0.0
    %1236 = vadd.xlane.f32.xlu0 %v1235
    %v1237 = vpop.xlane.xlu0 %1236
    %v1238 = vsel %vm100, %v1212, 0.0
    %1239 = vadd.xlane.f32.xlu0 %v1238
    %v1240 = vpop.xlane.xlu0 %1239
    %v1241 = vsel %vm100, %v1213, 0.0
    %1242 = vadd.xlane.f32.xlu0 %v1241
    %v1243 = vpop.xlane.xlu0 %1242
    %v1244 = vsel %vm100, %v1214, 0.0
    %1245 = vadd.xlane.f32.xlu0 %v1244
    %v1246 = vpop.xlane.xlu0 %1245
    %v1247 = vsel %vm100, %v1215, 0.0
    %1248 = vadd.xlane.f32.xlu0 %v1247
    %v1249 = vpop.xlane.xlu0 %1248
    %v1250 = vsel %vm100, %v1216, 0.0
    %1251 = vadd.xlane.f32.xlu0 %v1250
    %v1252 = vpop.xlane.xlu0 %1251
    %v1253 = vsel %vm100, %v1217, 0.0
    %1254 = vadd.xlane.f32.xlu0 %v1253
    %v1255 = vpop.xlane.xlu0 %1254
    %v1256 = vsel %vm100, %v1218, 0.0
    %1257 = vadd.xlane.f32.xlu0 %v1256
    %v1258 = vpop.xlane.xlu0 %1257
    %v1259 = vsel %vm100, %v1219, 0.0
    %1260 = vadd.xlane.f32.xlu0 %v1259
    %v1261 = vpop.xlane.xlu0 %1260
    %v1262 = vsel %vm100, %v1220, 0.0
    %1263 = vadd.xlane.f32.xlu0 %v1262
    %v1264 = vpop.xlane.xlu0 %1263
    %v1265 = vsel %vm100, %v1221, 0.0
    %1266 = vadd.xlane.f32.xlu0 %v1265
    %v1267 = vpop.xlane.xlu0 %1266
    %v1268 = vsel %vm100, %v1222, 0.0
    %1269 = vadd.xlane.f32.xlu0 %v1268
    %v1270 = vpop.xlane.xlu0 %1269
    %v1271 = vperm.slane %v1203, 0
    %vm1272 = vcmp.eq.s32.totalorder %v29, %v1271
    %vm1273 = vcmp.eq.s32.totalorder %v30, %v1271
    %vm1274 = vcmp.eq.s32.totalorder %v31, %v1271
    %vm1275 = vcmp.eq.s32.totalorder %v32, %v1271
    %vm1276 = vcmp.eq.s32.totalorder %v33, %v1271
    %vm1277 = vcmp.eq.s32.totalorder %v34, %v1271
    %vm1278 = vcmp.eq.s32.totalorder %v35, %v1271
    %vm1279 = vcmp.eq.s32.totalorder %v36, %v1271
    %vm1280 = vcmp.eq.s32.totalorder %v37, %v1271
    %vm1281 = vcmp.eq.s32.totalorder %v38, %v1271
    %vm1282 = vcmp.eq.s32.totalorder %v39, %v1271
    %vm1283 = vcmp.eq.s32.totalorder %v40, %v1271
    %vm1284 = vcmp.eq.s32.totalorder %v41, %v1271
    %vm1285 = vcmp.eq.s32.totalorder %v42, %v1271
    %vm1286 = vcmp.eq.s32.totalorder %v43, %v1271
    %vm1287 = vcmp.eq.s32.totalorder %v44, %v1271
    %v1288 = vsel %vm1272, 1, 0
    %v1289 = vsel %vm1273, 1, 0
    %v1290 = vsel %vm1274, 1, 0
    %v1291 = vsel %vm1275, 1, 0
    %v1292 = vsel %vm1276, 1, 0
    %v1293 = vsel %vm1277, 1, 0
    %v1294 = vsel %vm1278, 1, 0
    %v1295 = vsel %vm1279, 1, 0
    %v1296 = vsel %vm1280, 1, 0
    %v1297 = vsel %vm1281, 1, 0
    %v1298 = vsel %vm1282, 1, 0
    %v1299 = vsel %vm1283, 1, 0
    %v1300 = vsel %vm1284, 1, 0
    %v1301 = vsel %vm1285, 1, 0
    %v1302 = vsel %vm1286, 1, 0
    %v1303 = vsel %vm1287, 1, 0
    %v1304 = vcvt.s32.f32 %v1288
    %v1305 = vcvt.s32.f32 %v1289
    %v1306 = vcvt.s32.f32 %v1290
    %v1307 = vcvt.s32.f32 %v1291
    %v1308 = vcvt.s32.f32 %v1292
    %v1309 = vcvt.s32.f32 %v1293
    %v1310 = vcvt.s32.f32 %v1294
    %v1311 = vcvt.s32.f32 %v1295
    %v1312 = vcvt.s32.f32 %v1296
    %v1313 = vcvt.s32.f32 %v1297
    %v1314 = vcvt.s32.f32 %v1298
    %v1315 = vcvt.s32.f32 %v1299
    %v1316 = vcvt.s32.f32 %v1300
    %v1317 = vcvt.s32.f32 %v1301
    %v1318 = vcvt.s32.f32 %v1302
    %v1319 = vcvt.s32.f32 %v1303
    %v1320 = vmul.f32 %v1304, %v1225
    %v1321 = vmul.f32 %v1305, %v1228
    %v1322 = vmul.f32 %v1306, %v1231
    %v1323 = vmul.f32 %v1307, %v1234
    %v1324 = vmul.f32 %v1308, %v1237
    %v1325 = vmul.f32 %v1309, %v1240
    %v1326 = vmul.f32 %v1310, %v1243
    %v1327 = vmul.f32 %v1311, %v1246
    %v1328 = vmul.f32 %v1312, %v1249
    %v1329 = vmul.f32 %v1313, %v1252
    %v1330 = vmul.f32 %v1314, %v1255
    %v1331 = vmul.f32 %v1315, %v1258
    %v1332 = vmul.f32 %v1316, %v1261
    %v1333 = vmul.f32 %v1317, %v1264
    %v1334 = vmul.f32 %v1318, %v1267
    %v1335 = vmul.f32 %v1319, %v1270
    %v1336 = vadd.f32 %v1320, %v1321
    %v1337 = vadd.f32 %v1336, %v1322
    %v1338 = vadd.f32 %v1337, %v1323
    %v1339 = vadd.f32 %v1338, %v1324
    %v1340 = vadd.f32 %v1339, %v1325
    %v1341 = vadd.f32 %v1340, %v1326
    %v1342 = vadd.f32 %v1341, %v1327
    %v1343 = vadd.f32 %v1342, %v1328
    %v1344 = vadd.f32 %v1343, %v1329
    %v1345 = vadd.f32 %v1344, %v1330
    %v1346 = vadd.f32 %v1345, %v1331
    %v1347 = vadd.f32 %v1346, %v1332
    %v1348 = vadd.f32 %v1347, %v1333
    %v1349 = vadd.f32 %v1348, %v1334
    %v1350 = vadd.f32 %v1349, %v1335
    %v1351 = vrot.slane %v1350, 4
    %v1352 = vadd.f32 %v1350, %v1351
    %v1353 = vrot.slane %v1352, 2
    %v1354 = vadd.f32 %v1352, %v1353
    %v1355 = vrot.slane %v1354, 1
    %v1356 = vadd.f32 %v1354, %v1355
    %v1357 = vmul.f32 %v1304, %v1202
    %v1358 = vmul.f32 %v1305, %v1202
    %v1359 = vmul.f32 %v1306, %v1202
    %v1360 = vmul.f32 %v1307, %v1202
    %v1361 = vmul.f32 %v1308, %v1202
    %v1362 = vmul.f32 %v1309, %v1202
    %v1363 = vmul.f32 %v1310, %v1202
    %v1364 = vmul.f32 %v1311, %v1202
    %v1365 = vmul.f32 %v1312, %v1202
    %v1366 = vmul.f32 %v1313, %v1202
    %v1367 = vmul.f32 %v1314, %v1202
    %v1368 = vmul.f32 %v1315, %v1202
    %v1369 = vmul.f32 %v1316, %v1202
    %v1370 = vmul.f32 %v1317, %v1202
    %v1371 = vmul.f32 %v1318, %v1202
    %v1372 = vmul.f32 %v1319, %v1202
    %1373 = vadd.xlane.f32.xlu0 %v1357
    %v1374 = vpop.xlane.xlu0 %1373
    %1375 = vadd.xlane.f32.xlu0 %v1358
    %v1376 = vpop.xlane.xlu0 %1375
    %1377 = vadd.xlane.f32.xlu0 %v1359
    %v1378 = vpop.xlane.xlu0 %1377
    %1379 = vadd.xlane.f32.xlu0 %v1360
    %v1380 = vpop.xlane.xlu0 %1379
    %1381 = vadd.xlane.f32.xlu0 %v1361
    %v1382 = vpop.xlane.xlu0 %1381
    %1383 = vadd.xlane.f32.xlu0 %v1362
    %v1384 = vpop.xlane.xlu0 %1383
    %1385 = vadd.xlane.f32.xlu0 %v1363
    %v1386 = vpop.xlane.xlu0 %1385
    %1387 = vadd.xlane.f32.xlu0 %v1364
    %v1388 = vpop.xlane.xlu0 %1387
    %1389 = vadd.xlane.f32.xlu0 %v1365
    %v1390 = vpop.xlane.xlu0 %1389
    %1391 = vadd.xlane.f32.xlu0 %v1366
    %v1392 = vpop.xlane.xlu0 %1391
    %1393 = vadd.xlane.f32.xlu0 %v1367
    %v1394 = vpop.xlane.xlu0 %1393
    %1395 = vadd.xlane.f32.xlu0 %v1368
    %v1396 = vpop.xlane.xlu0 %1395
    %1397 = vadd.xlane.f32.xlu0 %v1369
    %v1398 = vpop.xlane.xlu0 %1397
    %1399 = vadd.xlane.f32.xlu0 %v1370
    %v1400 = vpop.xlane.xlu0 %1399
    %1401 = vadd.xlane.f32.xlu0 %v1371
    %v1402 = vpop.xlane.xlu0 %1401
    %1403 = vadd.xlane.f32.xlu0 %v1372
    %v1404 = vpop.xlane.xlu0 %1403
    %vm1405 = vcmp.eq.f32.partialorder %v1374, 0.0
    %vm1406 = vcmp.eq.f32.partialorder %v1376, 0.0
    %vm1407 = vcmp.eq.f32.partialorder %v1378, 0.0
    %vm1408 = vcmp.eq.f32.partialorder %v1380, 0.0
    %vm1409 = vcmp.eq.f32.partialorder %v1382, 0.0
    %vm1410 = vcmp.eq.f32.partialorder %v1384, 0.0
    %vm1411 = vcmp.eq.f32.partialorder %v1386, 0.0
    %vm1412 = vcmp.eq.f32.partialorder %v1388, 0.0
    %vm1413 = vcmp.eq.f32.partialorder %v1390, 0.0
    %vm1414 = vcmp.eq.f32.partialorder %v1392, 0.0
    %vm1415 = vcmp.eq.f32.partialorder %v1394, 0.0
    %vm1416 = vcmp.eq.f32.partialorder %v1396, 0.0
    %vm1417 = vcmp.eq.f32.partialorder %v1398, 0.0
    %vm1418 = vcmp.eq.f32.partialorder %v1400, 0.0
    %vm1419 = vcmp.eq.f32.partialorder %v1402, 0.0
    %vm1420 = vcmp.eq.f32.partialorder %v1404, 0.0
    %v1421 = vsel %vm1405, 1, 0
    %v1422 = vsel %vm1406, 1, 0
    %v1423 = vsel %vm1407, 1, 0
    %v1424 = vsel %vm1408, 1, 0
    %v1425 = vsel %vm1409, 1, 0
    %v1426 = vsel %vm1410, 1, 0
    %v1427 = vsel %vm1411, 1, 0
    %v1428 = vsel %vm1412, 1, 0
    %v1429 = vsel %vm1413, 1, 0
    %v1430 = vsel %vm1414, 1, 0
    %v1431 = vsel %vm1415, 1, 0
    %v1432 = vsel %vm1416, 1, 0
    %v1433 = vsel %vm1417, 1, 0
    %v1434 = vsel %vm1418, 1, 0
    %v1435 = vsel %vm1419, 1, 0
    %v1436 = vsel %vm1420, 1, 0
    %v1437 = vcvt.s32.f32 %v1421
    %v1438 = vcvt.s32.f32 %v1422
    %v1439 = vcvt.s32.f32 %v1423
    %v1440 = vcvt.s32.f32 %v1424
    %v1441 = vcvt.s32.f32 %v1425
    %v1442 = vcvt.s32.f32 %v1426
    %v1443 = vcvt.s32.f32 %v1427
    %v1444 = vcvt.s32.f32 %v1428
    %v1445 = vcvt.s32.f32 %v1429
    %v1446 = vcvt.s32.f32 %v1430
    %v1447 = vcvt.s32.f32 %v1431
    %v1448 = vcvt.s32.f32 %v1432
    %v1449 = vcvt.s32.f32 %v1433
    %v1450 = vcvt.s32.f32 %v1434
    %v1451 = vcvt.s32.f32 %v1435
    %v1452 = vcvt.s32.f32 %v1436
    %v1453 = vsub.f32 1.0, %v1356
    %v1454 = vadd.f32 %v1453, %v1225
    %v1455 = vadd.f32 %v1453, %v1228
    %v1456 = vadd.f32 %v1453, %v1231
    %v1457 = vadd.f32 %v1453, %v1234
    %v1458 = vadd.f32 %v1453, %v1237
    %v1459 = vadd.f32 %v1453, %v1240
    %v1460 = vadd.f32 %v1453, %v1243
    %v1461 = vadd.f32 %v1453, %v1246
    %v1462 = vadd.f32 %v1453, %v1249
    %v1463 = vadd.f32 %v1453, %v1252
    %v1464 = vadd.f32 %v1453, %v1255
    %v1465 = vadd.f32 %v1453, %v1258
    %v1466 = vadd.f32 %v1453, %v1261
    %v1467 = vadd.f32 %v1453, %v1264
    %v1468 = vadd.f32 %v1453, %v1267
    %v1469 = vadd.f32 %v1453, %v1270
    %v1470 = vmax.f32 %v1454, 0.0
    %v1471 = vmax.f32 %v1455, 0.0
    %v1472 = vmax.f32 %v1456, 0.0
    %v1473 = vmax.f32 %v1457, 0.0
    %v1474 = vmax.f32 %v1458, 0.0
    %v1475 = vmax.f32 %v1459, 0.0
    %v1476 = vmax.f32 %v1460, 0.0
    %v1477 = vmax.f32 %v1461, 0.0
    %v1478 = vmax.f32 %v1462, 0.0
    %v1479 = vmax.f32 %v1463, 0.0
    %v1480 = vmax.f32 %v1464, 0.0
    %v1481 = vmax.f32 %v1465, 0.0
    %v1482 = vmax.f32 %v1466, 0.0
    %v1483 = vmax.f32 %v1467, 0.0
    %v1484 = vmax.f32 %v1468, 0.0
    %v1485 = vmax.f32 %v1469, 0.0
    %v1486 = vmul.f32 %v1202, %v1437
    %v1487 = vmul.f32 %v1202, %v1438
    %v1488 = vmul.f32 %v1202, %v1439
    %v1489 = vmul.f32 %v1202, %v1440
    %v1490 = vmul.f32 %v1202, %v1441
    %v1491 = vmul.f32 %v1202, %v1442
    %v1492 = vmul.f32 %v1202, %v1443
    %v1493 = vmul.f32 %v1202, %v1444
    %v1494 = vmul.f32 %v1202, %v1445
    %v1495 = vmul.f32 %v1202, %v1446
    %v1496 = vmul.f32 %v1202, %v1447
    %v1497 = vmul.f32 %v1202, %v1448
    %v1498 = vmul.f32 %v1202, %v1449
    %v1499 = vmul.f32 %v1202, %v1450
    %v1500 = vmul.f32 %v1202, %v1451
    %v1501 = vmul.f32 %v1202, %v1452
    %v1502 = vmul.f32 %v1470, %v1486
    %v1503 = vmul.f32 %v1471, %v1487
    %v1504 = vmul.f32 %v1472, %v1488
    %v1505 = vmul.f32 %v1473, %v1489
    %v1506 = vmul.f32 %v1474, %v1490
    %v1507 = vmul.f32 %v1475, %v1491
    %v1508 = vmul.f32 %v1476, %v1492
    %v1509 = vmul.f32 %v1477, %v1493
    %v1510 = vmul.f32 %v1478, %v1494
    %v1511 = vmul.f32 %v1479, %v1495
    %v1512 = vmul.f32 %v1480, %v1496
    %v1513 = vmul.f32 %v1481, %v1497
    %v1514 = vmul.f32 %v1482, %v1498
    %v1515 = vmul.f32 %v1483, %v1499
    %v1516 = vmul.f32 %v1484, %v1500
    %v1517 = vmul.f32 %v1485, %v1501
    %v1518 = vadd.f32 %v1502, %v1503
    %v1519 = vadd.f32 %v1518, %v1504
    %v1520 = vadd.f32 %v1519, %v1505
    %v1521 = vadd.f32 %v1520, %v1506
    %v1522 = vadd.f32 %v1521, %v1507
    %v1523 = vadd.f32 %v1522, %v1508
    %v1524 = vadd.f32 %v1523, %v1509
    %v1525 = vadd.f32 %v1524, %v1510
    %v1526 = vadd.f32 %v1525, %v1511
    %v1527 = vadd.f32 %v1526, %v1512
    %v1528 = vadd.f32 %v1527, %v1513
    %v1529 = vadd.f32 %v1528, %v1514
    %v1530 = vadd.f32 %v1529, %v1515
    %v1531 = vadd.f32 %v1530, %v1516
    %v1532 = vadd.f32 %v1531, %v1517
    %1533 = vadd.xlane.f32.xlu0 %v1532
    %v1534 = vpop.xlane.xlu0 %1533
    %v1535 = vrot.slane %v1534, 4
    %v1536 = vadd.f32 %v1534, %v1535
    %v1537 = vrot.slane %v1536, 2
    %v1538 = vadd.f32 %v1536, %v1537
    %v1539 = vrot.slane %v1538, 1
    %v1540 = vadd.f32 %v1538, %v1539
    %s1541 = vtos %v1540
    %v1542 = vstv %s1541
    %v1543 = vsel %vm1204, %v1542, 0.0
    %v1544 = vadd.f32 %v1170, %v1543
    %v1545 = vld [vmem:[%s1 + $0x4] sm:$0x1]
    %vm1546 = vcmp.lt.s32.totalorder %v1545, 0
    %v1547 = vsel %vm1546, %v46, 128
    %v1548 = vsel %vm50, %v1547, 2147483647
    %v1549 = vand.u32 %v1548, 65535
    %v1550 = vshra.s32 %v1548, 16
    %v1551 = vcvt.s32.f32 %v1549
    %v1552 = vcvt.s32.f32 %v1550
    %1553 = vmin.xlane.f32.xlu0 %v1552
    %v1554 = vpop.xlane.xlu0 %1553
    %vm1555 = vcmp.eq.f32.partialorder %v1552, %v1554
    %v1556 = vsel %vm1555, %v1551, inf
    %1557 = vmin.xlane.f32.xlu0 %v1556
    %v1558 = vpop.xlane.xlu0 %1557
    %v1559 = vcvt.f32.s32 %v1558
    %v1560 = vcvt.f32.s32 %v1554
    %v1561 = vshll.u32 %v1560, 16
    %v1562 = vadd.s32 %v1561, %v1559
    %v1563 = vrot.slane %v1562, 4
    %vm1564 = vcmp.lt.s32.totalorder %v1562, %v1563
    %v1565 = vsel %vm1564, %v1562, %v1563
    %v1566 = vrot.slane %v1565, 2
    %vm1567 = vcmp.lt.s32.totalorder %v1565, %v1566
    %v1568 = vsel %vm1567, %v1565, %v1566
    %v1569 = vrot.slane %v1568, 1
    %vm1570 = vcmp.lt.s32.totalorder %v1568, %v1569
    %v1571 = vsel %vm1570, %v1568, %v1569
    %s1572 = vtos %v1571
    %v1573 = vstv %s1572
    %vm1574 = vcmp.lt.s32.totalorder %v46, %v1573
    %v1575 = vsel %vm1574, 1, 0
    %v1576 = vcvt.s32.f32 %v1575
    %v1577 = vsel %vm1574, %v1545, 0
    %vm1578 = vcmp.eq.s32.totalorder %v46, 4
    %v1579 = vsel %vm1578, 1, 0
    %v1580 = vcvt.s32.f32 %v1579
    %v1581 = vmul.f32 %v12, %v1580
    %v1582 = vmul.f32 %v13, %v1580
    %v1583 = vmul.f32 %v14, %v1580
    %v1584 = vmul.f32 %v15, %v1580
    %v1585 = vmul.f32 %v16, %v1580
    %v1586 = vmul.f32 %v17, %v1580
    %v1587 = vmul.f32 %v18, %v1580
    %v1588 = vmul.f32 %v19, %v1580
    %v1589 = vmul.f32 %v20, %v1580
    %v1590 = vmul.f32 %v21, %v1580
    %v1591 = vmul.f32 %v22, %v1580
    %v1592 = vmul.f32 %v23, %v1580
    %v1593 = vmul.f32 %v24, %v1580
    %v1594 = vmul.f32 %v25, %v1580
    %v1595 = vmul.f32 %v26, %v1580
    %v1596 = vmul.f32 %v27, %v1580
    %v1597 = vsel %vm100, %v1581, 0.0
    %1598 = vadd.xlane.f32.xlu0 %v1597
    %v1599 = vpop.xlane.xlu0 %1598
    %v1600 = vsel %vm100, %v1582, 0.0
    %1601 = vadd.xlane.f32.xlu0 %v1600
    %v1602 = vpop.xlane.xlu0 %1601
    %v1603 = vsel %vm100, %v1583, 0.0
    %1604 = vadd.xlane.f32.xlu0 %v1603
    %v1605 = vpop.xlane.xlu0 %1604
    %v1606 = vsel %vm100, %v1584, 0.0
    %1607 = vadd.xlane.f32.xlu0 %v1606
    %v1608 = vpop.xlane.xlu0 %1607
    %v1609 = vsel %vm100, %v1585, 0.0
    %1610 = vadd.xlane.f32.xlu0 %v1609
    %v1611 = vpop.xlane.xlu0 %1610
    %v1612 = vsel %vm100, %v1586, 0.0
    %1613 = vadd.xlane.f32.xlu0 %v1612
    %v1614 = vpop.xlane.xlu0 %1613
    %v1615 = vsel %vm100, %v1587, 0.0
    %1616 = vadd.xlane.f32.xlu0 %v1615
    %v1617 = vpop.xlane.xlu0 %1616
    %v1618 = vsel %vm100, %v1588, 0.0
    %1619 = vadd.xlane.f32.xlu0 %v1618
    %v1620 = vpop.xlane.xlu0 %1619
    %v1621 = vsel %vm100, %v1589, 0.0
    %1622 = vadd.xlane.f32.xlu0 %v1621
    %v1623 = vpop.xlane.xlu0 %1622
    %v1624 = vsel %vm100, %v1590, 0.0
    %1625 = vadd.xlane.f32.xlu0 %v1624
    %v1626 = vpop.xlane.xlu0 %1625
    %v1627 = vsel %vm100, %v1591, 0.0
    %1628 = vadd.xlane.f32.xlu0 %v1627
    %v1629 = vpop.xlane.xlu0 %1628
    %v1630 = vsel %vm100, %v1592, 0.0
    %1631 = vadd.xlane.f32.xlu0 %v1630
    %v1632 = vpop.xlane.xlu0 %1631
    %v1633 = vsel %vm100, %v1593, 0.0
    %1634 = vadd.xlane.f32.xlu0 %v1633
    %v1635 = vpop.xlane.xlu0 %1634
    %v1636 = vsel %vm100, %v1594, 0.0
    %1637 = vadd.xlane.f32.xlu0 %v1636
    %v1638 = vpop.xlane.xlu0 %1637
    %v1639 = vsel %vm100, %v1595, 0.0
    %1640 = vadd.xlane.f32.xlu0 %v1639
    %v1641 = vpop.xlane.xlu0 %1640
    %v1642 = vsel %vm100, %v1596, 0.0
    %1643 = vadd.xlane.f32.xlu0 %v1642
    %v1644 = vpop.xlane.xlu0 %1643
    %v1645 = vperm.slane %v1577, 0
    %vm1646 = vcmp.eq.s32.totalorder %v29, %v1645
    %vm1647 = vcmp.eq.s32.totalorder %v30, %v1645
    %vm1648 = vcmp.eq.s32.totalorder %v31, %v1645
    %vm1649 = vcmp.eq.s32.totalorder %v32, %v1645
    %vm1650 = vcmp.eq.s32.totalorder %v33, %v1645
    %vm1651 = vcmp.eq.s32.totalorder %v34, %v1645
    %vm1652 = vcmp.eq.s32.totalorder %v35, %v1645
    %vm1653 = vcmp.eq.s32.totalorder %v36, %v1645
    %vm1654 = vcmp.eq.s32.totalorder %v37, %v1645
    %vm1655 = vcmp.eq.s32.totalorder %v38, %v1645
    %vm1656 = vcmp.eq.s32.totalorder %v39, %v1645
    %vm1657 = vcmp.eq.s32.totalorder %v40, %v1645
    %vm1658 = vcmp.eq.s32.totalorder %v41, %v1645
    %vm1659 = vcmp.eq.s32.totalorder %v42, %v1645
    %vm1660 = vcmp.eq.s32.totalorder %v43, %v1645
    %vm1661 = vcmp.eq.s32.totalorder %v44, %v1645
    %v1662 = vsel %vm1646, 1, 0
    %v1663 = vsel %vm1647, 1, 0
    %v1664 = vsel %vm1648, 1, 0
    %v1665 = vsel %vm1649, 1, 0
    %v1666 = vsel %vm1650, 1, 0
    %v1667 = vsel %vm1651, 1, 0
    %v1668 = vsel %vm1652, 1, 0
    %v1669 = vsel %vm1653, 1, 0
    %v1670 = vsel %vm1654, 1, 0
    %v1671 = vsel %vm1655, 1, 0
    %v1672 = vsel %vm1656, 1, 0
    %v1673 = vsel %vm1657, 1, 0
    %v1674 = vsel %vm1658, 1, 0
    %v1675 = vsel %vm1659, 1, 0
    %v1676 = vsel %vm1660, 1, 0
    %v1677 = vsel %vm1661, 1, 0
    %v1678 = vcvt.s32.f32 %v1662
    %v1679 = vcvt.s32.f32 %v1663
    %v1680 = vcvt.s32.f32 %v1664
    %v1681 = vcvt.s32.f32 %v1665
    %v1682 = vcvt.s32.f32 %v1666
    %v1683 = vcvt.s32.f32 %v1667
    %v1684 = vcvt.s32.f32 %v1668
    %v1685 = vcvt.s32.f32 %v1669
    %v1686 = vcvt.s32.f32 %v1670
    %v1687 = vcvt.s32.f32 %v1671
    %v1688 = vcvt.s32.f32 %v1672
    %v1689 = vcvt.s32.f32 %v1673
    %v1690 = vcvt.s32.f32 %v1674
    %v1691 = vcvt.s32.f32 %v1675
    %v1692 = vcvt.s32.f32 %v1676
    %v1693 = vcvt.s32.f32 %v1677
    %v1694 = vmul.f32 %v1678, %v1599
    %v1695 = vmul.f32 %v1679, %v1602
    %v1696 = vmul.f32 %v1680, %v1605
    %v1697 = vmul.f32 %v1681, %v1608
    %v1698 = vmul.f32 %v1682, %v1611
    %v1699 = vmul.f32 %v1683, %v1614
    %v1700 = vmul.f32 %v1684, %v1617
    %v1701 = vmul.f32 %v1685, %v1620
    %v1702 = vmul.f32 %v1686, %v1623
    %v1703 = vmul.f32 %v1687, %v1626
    %v1704 = vmul.f32 %v1688, %v1629
    %v1705 = vmul.f32 %v1689, %v1632
    %v1706 = vmul.f32 %v1690, %v1635
    %v1707 = vmul.f32 %v1691, %v1638
    %v1708 = vmul.f32 %v1692, %v1641
    %v1709 = vmul.f32 %v1693, %v1644
    %v1710 = vadd.f32 %v1694, %v1695
    %v1711 = vadd.f32 %v1710, %v1696
    %v1712 = vadd.f32 %v1711, %v1697
    %v1713 = vadd.f32 %v1712, %v1698
    %v1714 = vadd.f32 %v1713, %v1699
    %v1715 = vadd.f32 %v1714, %v1700
    %v1716 = vadd.f32 %v1715, %v1701
    %v1717 = vadd.f32 %v1716, %v1702
    %v1718 = vadd.f32 %v1717, %v1703
    %v1719 = vadd.f32 %v1718, %v1704
    %v1720 = vadd.f32 %v1719, %v1705
    %v1721 = vadd.f32 %v1720, %v1706
    %v1722 = vadd.f32 %v1721, %v1707
    %v1723 = vadd.f32 %v1722, %v1708
    %v1724 = vadd.f32 %v1723, %v1709
    %v1725 = vrot.slane %v1724, 4
    %v1726 = vadd.f32 %v1724, %v1725
    %v1727 = vrot.slane %v1726, 2
    %v1728 = vadd.f32 %v1726, %v1727
    %v1729 = vrot.slane %v1728, 1
    %v1730 = vadd.f32 %v1728, %v1729
    %v1731 = vmul.f32 %v1678, %v1576
    %v1732 = vmul.f32 %v1679, %v1576
    %v1733 = vmul.f32 %v1680, %v1576
    %v1734 = vmul.f32 %v1681, %v1576
    %v1735 = vmul.f32 %v1682, %v1576
    %v1736 = vmul.f32 %v1683, %v1576
    %v1737 = vmul.f32 %v1684, %v1576
    %v1738 = vmul.f32 %v1685, %v1576
    %v1739 = vmul.f32 %v1686, %v1576
    %v1740 = vmul.f32 %v1687, %v1576
    %v1741 = vmul.f32 %v1688, %v1576
    %v1742 = vmul.f32 %v1689, %v1576
    %v1743 = vmul.f32 %v1690, %v1576
    %v1744 = vmul.f32 %v1691, %v1576
    %v1745 = vmul.f32 %v1692, %v1576
    %v1746 = vmul.f32 %v1693, %v1576
    %1747 = vadd.xlane.f32.xlu0 %v1731
    %v1748 = vpop.xlane.xlu0 %1747
    %1749 = vadd.xlane.f32.xlu0 %v1732
    %v1750 = vpop.xlane.xlu0 %1749
    %1751 = vadd.xlane.f32.xlu0 %v1733
    %v1752 = vpop.xlane.xlu0 %1751
    %1753 = vadd.xlane.f32.xlu0 %v1734
    %v1754 = vpop.xlane.xlu0 %1753
    %1755 = vadd.xlane.f32.xlu0 %v1735
    %v1756 = vpop.xlane.xlu0 %1755
    %1757 = vadd.xlane.f32.xlu0 %v1736
    %v1758 = vpop.xlane.xlu0 %1757
    %1759 = vadd.xlane.f32.xlu0 %v1737
    %v1760 = vpop.xlane.xlu0 %1759
    %1761 = vadd.xlane.f32.xlu0 %v1738
    %v1762 = vpop.xlane.xlu0 %1761
    %1763 = vadd.xlane.f32.xlu0 %v1739
    %v1764 = vpop.xlane.xlu0 %1763
    %1765 = vadd.xlane.f32.xlu0 %v1740
    %v1766 = vpop.xlane.xlu0 %1765
    %1767 = vadd.xlane.f32.xlu0 %v1741
    %v1768 = vpop.xlane.xlu0 %1767
    %1769 = vadd.xlane.f32.xlu0 %v1742
    %v1770 = vpop.xlane.xlu0 %1769
    %1771 = vadd.xlane.f32.xlu0 %v1743
    %v1772 = vpop.xlane.xlu0 %1771
    %1773 = vadd.xlane.f32.xlu0 %v1744
    %v1774 = vpop.xlane.xlu0 %1773
    %1775 = vadd.xlane.f32.xlu0 %v1745
    %v1776 = vpop.xlane.xlu0 %1775
    %1777 = vadd.xlane.f32.xlu0 %v1746
    %v1778 = vpop.xlane.xlu0 %1777
    %vm1779 = vcmp.eq.f32.partialorder %v1748, 0.0
    %vm1780 = vcmp.eq.f32.partialorder %v1750, 0.0
    %vm1781 = vcmp.eq.f32.partialorder %v1752, 0.0
    %vm1782 = vcmp.eq.f32.partialorder %v1754, 0.0
    %vm1783 = vcmp.eq.f32.partialorder %v1756, 0.0
    %vm1784 = vcmp.eq.f32.partialorder %v1758, 0.0
    %vm1785 = vcmp.eq.f32.partialorder %v1760, 0.0
    %vm1786 = vcmp.eq.f32.partialorder %v1762, 0.0
    %vm1787 = vcmp.eq.f32.partialorder %v1764, 0.0
    %vm1788 = vcmp.eq.f32.partialorder %v1766, 0.0
    %vm1789 = vcmp.eq.f32.partialorder %v1768, 0.0
    %vm1790 = vcmp.eq.f32.partialorder %v1770, 0.0
    %vm1791 = vcmp.eq.f32.partialorder %v1772, 0.0
    %vm1792 = vcmp.eq.f32.partialorder %v1774, 0.0
    %vm1793 = vcmp.eq.f32.partialorder %v1776, 0.0
    %vm1794 = vcmp.eq.f32.partialorder %v1778, 0.0
    %v1795 = vsel %vm1779, 1, 0
    %v1796 = vsel %vm1780, 1, 0
    %v1797 = vsel %vm1781, 1, 0
    %v1798 = vsel %vm1782, 1, 0
    %v1799 = vsel %vm1783, 1, 0
    %v1800 = vsel %vm1784, 1, 0
    %v1801 = vsel %vm1785, 1, 0
    %v1802 = vsel %vm1786, 1, 0
    %v1803 = vsel %vm1787, 1, 0
    %v1804 = vsel %vm1788, 1, 0
    %v1805 = vsel %vm1789, 1, 0
    %v1806 = vsel %vm1790, 1, 0
    %v1807 = vsel %vm1791, 1, 0
    %v1808 = vsel %vm1792, 1, 0
    %v1809 = vsel %vm1793, 1, 0
    %v1810 = vsel %vm1794, 1, 0
    %v1811 = vcvt.s32.f32 %v1795
    %v1812 = vcvt.s32.f32 %v1796
    %v1813 = vcvt.s32.f32 %v1797
    %v1814 = vcvt.s32.f32 %v1798
    %v1815 = vcvt.s32.f32 %v1799
    %v1816 = vcvt.s32.f32 %v1800
    %v1817 = vcvt.s32.f32 %v1801
    %v1818 = vcvt.s32.f32 %v1802
    %v1819 = vcvt.s32.f32 %v1803
    %v1820 = vcvt.s32.f32 %v1804
    %v1821 = vcvt.s32.f32 %v1805
    %v1822 = vcvt.s32.f32 %v1806
    %v1823 = vcvt.s32.f32 %v1807
    %v1824 = vcvt.s32.f32 %v1808
    %v1825 = vcvt.s32.f32 %v1809
    %v1826 = vcvt.s32.f32 %v1810
    %v1827 = vsub.f32 1.0, %v1730
    %v1828 = vadd.f32 %v1827, %v1599
    %v1829 = vadd.f32 %v1827, %v1602
    %v1830 = vadd.f32 %v1827, %v1605
    %v1831 = vadd.f32 %v1827, %v1608
    %v1832 = vadd.f32 %v1827, %v1611
    %v1833 = vadd.f32 %v1827, %v1614
    %v1834 = vadd.f32 %v1827, %v1617
    %v1835 = vadd.f32 %v1827, %v1620
    %v1836 = vadd.f32 %v1827, %v1623
    %v1837 = vadd.f32 %v1827, %v1626
    %v1838 = vadd.f32 %v1827, %v1629
    %v1839 = vadd.f32 %v1827, %v1632
    %v1840 = vadd.f32 %v1827, %v1635
    %v1841 = vadd.f32 %v1827, %v1638
    %v1842 = vadd.f32 %v1827, %v1641
    %v1843 = vadd.f32 %v1827, %v1644
    %v1844 = vmax.f32 %v1828, 0.0
    %v1845 = vmax.f32 %v1829, 0.0
    %v1846 = vmax.f32 %v1830, 0.0
    %v1847 = vmax.f32 %v1831, 0.0
    %v1848 = vmax.f32 %v1832, 0.0
    %v1849 = vmax.f32 %v1833, 0.0
    %v1850 = vmax.f32 %v1834, 0.0
    %v1851 = vmax.f32 %v1835, 0.0
    %v1852 = vmax.f32 %v1836, 0.0
    %v1853 = vmax.f32 %v1837, 0.0
    %v1854 = vmax.f32 %v1838, 0.0
    %v1855 = vmax.f32 %v1839, 0.0
    %v1856 = vmax.f32 %v1840, 0.0
    %v1857 = vmax.f32 %v1841, 0.0
    %v1858 = vmax.f32 %v1842, 0.0
    %v1859 = vmax.f32 %v1843, 0.0
    %v1860 = vmul.f32 %v1576, %v1811
    %v1861 = vmul.f32 %v1576, %v1812
    %v1862 = vmul.f32 %v1576, %v1813
    %v1863 = vmul.f32 %v1576, %v1814
    %v1864 = vmul.f32 %v1576, %v1815
    %v1865 = vmul.f32 %v1576, %v1816
    %v1866 = vmul.f32 %v1576, %v1817
    %v1867 = vmul.f32 %v1576, %v1818
    %v1868 = vmul.f32 %v1576, %v1819
    %v1869 = vmul.f32 %v1576, %v1820
    %v1870 = vmul.f32 %v1576, %v1821
    %v1871 = vmul.f32 %v1576, %v1822
    %v1872 = vmul.f32 %v1576, %v1823
    %v1873 = vmul.f32 %v1576, %v1824
    %v1874 = vmul.f32 %v1576, %v1825
    %v1875 = vmul.f32 %v1576, %v1826
    %v1876 = vmul.f32 %v1844, %v1860
    %v1877 = vmul.f32 %v1845, %v1861
    %v1878 = vmul.f32 %v1846, %v1862
    %v1879 = vmul.f32 %v1847, %v1863
    %v1880 = vmul.f32 %v1848, %v1864
    %v1881 = vmul.f32 %v1849, %v1865
    %v1882 = vmul.f32 %v1850, %v1866
    %v1883 = vmul.f32 %v1851, %v1867
    %v1884 = vmul.f32 %v1852, %v1868
    %v1885 = vmul.f32 %v1853, %v1869
    %v1886 = vmul.f32 %v1854, %v1870
    %v1887 = vmul.f32 %v1855, %v1871
    %v1888 = vmul.f32 %v1856, %v1872
    %v1889 = vmul.f32 %v1857, %v1873
    %v1890 = vmul.f32 %v1858, %v1874
    %v1891 = vmul.f32 %v1859, %v1875
    %v1892 = vadd.f32 %v1876, %v1877
    %v1893 = vadd.f32 %v1892, %v1878
    %v1894 = vadd.f32 %v1893, %v1879
    %v1895 = vadd.f32 %v1894, %v1880
    %v1896 = vadd.f32 %v1895, %v1881
    %v1897 = vadd.f32 %v1896, %v1882
    %v1898 = vadd.f32 %v1897, %v1883
    %v1899 = vadd.f32 %v1898, %v1884
    %v1900 = vadd.f32 %v1899, %v1885
    %v1901 = vadd.f32 %v1900, %v1886
    %v1902 = vadd.f32 %v1901, %v1887
    %v1903 = vadd.f32 %v1902, %v1888
    %v1904 = vadd.f32 %v1903, %v1889
    %v1905 = vadd.f32 %v1904, %v1890
    %v1906 = vadd.f32 %v1905, %v1891
    %1907 = vadd.xlane.f32.xlu0 %v1906
    %v1908 = vpop.xlane.xlu0 %1907
    %v1909 = vrot.slane %v1908, 4
    %v1910 = vadd.f32 %v1908, %v1909
    %v1911 = vrot.slane %v1910, 2
    %v1912 = vadd.f32 %v1910, %v1911
    %v1913 = vrot.slane %v1912, 1
    %v1914 = vadd.f32 %v1912, %v1913
    %s1915 = vtos %v1914
    %v1916 = vstv %s1915
    %v1917 = vsel %vm1578, %v1916, 0.0
    %v1918 = vadd.f32 %v1544, %v1917
    %v1919 = vld [vmem:[%s1 + $0x5] sm:$0x1]
    %vm1920 = vcmp.lt.s32.totalorder %v1919, 0
    %v1921 = vsel %vm1920, %v46, 128
    %v1922 = vsel %vm50, %v1921, 2147483647
    %v1923 = vand.u32 %v1922, 65535
    %v1924 = vshra.s32 %v1922, 16
    %v1925 = vcvt.s32.f32 %v1923
    %v1926 = vcvt.s32.f32 %v1924
    %1927 = vmin.xlane.f32.xlu0 %v1926
    %v1928 = vpop.xlane.xlu0 %1927
    %vm1929 = vcmp.eq.f32.partialorder %v1926, %v1928
    %v1930 = vsel %vm1929, %v1925, inf
    %1931 = vmin.xlane.f32.xlu0 %v1930
    %v1932 = vpop.xlane.xlu0 %1931
    %v1933 = vcvt.f32.s32 %v1932
    %v1934 = vcvt.f32.s32 %v1928
    %v1935 = vshll.u32 %v1934, 16
    %v1936 = vadd.s32 %v1935, %v1933
    %v1937 = vrot.slane %v1936, 4
    %vm1938 = vcmp.lt.s32.totalorder %v1936, %v1937
    %v1939 = vsel %vm1938, %v1936, %v1937
    %v1940 = vrot.slane %v1939, 2
    %vm1941 = vcmp.lt.s32.totalorder %v1939, %v1940
    %v1942 = vsel %vm1941, %v1939, %v1940
    %v1943 = vrot.slane %v1942, 1
    %vm1944 = vcmp.lt.s32.totalorder %v1942, %v1943
    %v1945 = vsel %vm1944, %v1942, %v1943
    %s1946 = vtos %v1945
    %v1947 = vstv %s1946
    %vm1948 = vcmp.lt.s32.totalorder %v46, %v1947
    %v1949 = vsel %vm1948, 1, 0
    %v1950 = vcvt.s32.f32 %v1949
    %v1951 = vsel %vm1948, %v1919, 0
    %vm1952 = vcmp.eq.s32.totalorder %v46, 5
    %v1953 = vsel %vm1952, 1, 0
    %v1954 = vcvt.s32.f32 %v1953
    %v1955 = vmul.f32 %v12, %v1954
    %v1956 = vmul.f32 %v13, %v1954
    %v1957 = vmul.f32 %v14, %v1954
    %v1958 = vmul.f32 %v15, %v1954
    %v1959 = vmul.f32 %v16, %v1954
    %v1960 = vmul.f32 %v17, %v1954
    %v1961 = vmul.f32 %v18, %v1954
    %v1962 = vmul.f32 %v19, %v1954
    %v1963 = vmul.f32 %v20, %v1954
    %v1964 = vmul.f32 %v21, %v1954
    %v1965 = vmul.f32 %v22, %v1954
    %v1966 = vmul.f32 %v23, %v1954
    %v1967 = vmul.f32 %v24, %v1954
    %v1968 = vmul.f32 %v25, %v1954
    %v1969 = vmul.f32 %v26, %v1954
    %v1970 = vmul.f32 %v27, %v1954
    %v1971 = vsel %vm100, %v1955, 0.0
    %1972 = vadd.xlane.f32.xlu0 %v1971
    %v1973 = vpop.xlane.xlu0 %1972
    %v1974 = vsel %vm100, %v1956, 0.0
    %1975 = vadd.xlane.f32.xlu0 %v1974
    %v1976 = vpop.xlane.xlu0 %1975
    %v1977 = vsel %vm100, %v1957, 0.0
    %1978 = vadd.xlane.f32.xlu0 %v1977
    %v1979 = vpop.xlane.xlu0 %1978
    %v1980 = vsel %vm100, %v1958, 0.0
    %1981 = vadd.xlane.f32.xlu0 %v1980
    %v1982 = vpop.xlane.xlu0 %1981
    %v1983 = vsel %vm100, %v1959, 0.0
    %1984 = vadd.xlane.f32.xlu0 %v1983
    %v1985 = vpop.xlane.xlu0 %1984
    %v1986 = vsel %vm100, %v1960, 0.0
    %1987 = vadd.xlane.f32.xlu0 %v1986
    %v1988 = vpop.xlane.xlu0 %1987
    %v1989 = vsel %vm100, %v1961, 0.0
    %1990 = vadd.xlane.f32.xlu0 %v1989
    %v1991 = vpop.xlane.xlu0 %1990
    %v1992 = vsel %vm100, %v1962, 0.0
    %1993 = vadd.xlane.f32.xlu0 %v1992
    %v1994 = vpop.xlane.xlu0 %1993
    %v1995 = vsel %vm100, %v1963, 0.0
    %1996 = vadd.xlane.f32.xlu0 %v1995
    %v1997 = vpop.xlane.xlu0 %1996
    %v1998 = vsel %vm100, %v1964, 0.0
    %1999 = vadd.xlane.f32.xlu0 %v1998
    %v2000 = vpop.xlane.xlu0 %1999
    %v2001 = vsel %vm100, %v1965, 0.0
    %2002 = vadd.xlane.f32.xlu0 %v2001
    %v2003 = vpop.xlane.xlu0 %2002
    %v2004 = vsel %vm100, %v1966, 0.0
    %2005 = vadd.xlane.f32.xlu0 %v2004
    %v2006 = vpop.xlane.xlu0 %2005
    %v2007 = vsel %vm100, %v1967, 0.0
    %2008 = vadd.xlane.f32.xlu0 %v2007
    %v2009 = vpop.xlane.xlu0 %2008
    %v2010 = vsel %vm100, %v1968, 0.0
    %2011 = vadd.xlane.f32.xlu0 %v2010
    %v2012 = vpop.xlane.xlu0 %2011
    %v2013 = vsel %vm100, %v1969, 0.0
    %2014 = vadd.xlane.f32.xlu0 %v2013
    %v2015 = vpop.xlane.xlu0 %2014
    %v2016 = vsel %vm100, %v1970, 0.0
    %2017 = vadd.xlane.f32.xlu0 %v2016
    %v2018 = vpop.xlane.xlu0 %2017
    %v2019 = vperm.slane %v1951, 0
    %vm2020 = vcmp.eq.s32.totalorder %v29, %v2019
    %vm2021 = vcmp.eq.s32.totalorder %v30, %v2019
    %vm2022 = vcmp.eq.s32.totalorder %v31, %v2019
    %vm2023 = vcmp.eq.s32.totalorder %v32, %v2019
    %vm2024 = vcmp.eq.s32.totalorder %v33, %v2019
    %vm2025 = vcmp.eq.s32.totalorder %v34, %v2019
    %vm2026 = vcmp.eq.s32.totalorder %v35, %v2019
    %vm2027 = vcmp.eq.s32.totalorder %v36, %v2019
    %vm2028 = vcmp.eq.s32.totalorder %v37, %v2019
    %vm2029 = vcmp.eq.s32.totalorder %v38, %v2019
    %vm2030 = vcmp.eq.s32.totalorder %v39, %v2019
    %vm2031 = vcmp.eq.s32.totalorder %v40, %v2019
    %vm2032 = vcmp.eq.s32.totalorder %v41, %v2019
    %vm2033 = vcmp.eq.s32.totalorder %v42, %v2019
    %vm2034 = vcmp.eq.s32.totalorder %v43, %v2019
    %vm2035 = vcmp.eq.s32.totalorder %v44, %v2019
    %v2036 = vsel %vm2020, 1, 0
    %v2037 = vsel %vm2021, 1, 0
    %v2038 = vsel %vm2022, 1, 0
    %v2039 = vsel %vm2023, 1, 0
    %v2040 = vsel %vm2024, 1, 0
    %v2041 = vsel %vm2025, 1, 0
    %v2042 = vsel %vm2026, 1, 0
    %v2043 = vsel %vm2027, 1, 0
    %v2044 = vsel %vm2028, 1, 0
    %v2045 = vsel %vm2029, 1, 0
    %v2046 = vsel %vm2030, 1, 0
    %v2047 = vsel %vm2031, 1, 0
    %v2048 = vsel %vm2032, 1, 0
    %v2049 = vsel %vm2033, 1, 0
    %v2050 = vsel %vm2034, 1, 0
    %v2051 = vsel %vm2035, 1, 0
    %v2052 = vcvt.s32.f32 %v2036
    %v2053 = vcvt.s32.f32 %v2037
    %v2054 = vcvt.s32.f32 %v2038
    %v2055 = vcvt.s32.f32 %v2039
    %v2056 = vcvt.s32.f32 %v2040
    %v2057 = vcvt.s32.f32 %v2041
    %v2058 = vcvt.s32.f32 %v2042
    %v2059 = vcvt.s32.f32 %v2043
    %v2060 = vcvt.s32.f32 %v2044
    %v2061 = vcvt.s32.f32 %v2045
    %v2062 = vcvt.s32.f32 %v2046
    %v2063 = vcvt.s32.f32 %v2047
    %v2064 = vcvt.s32.f32 %v2048
    %v2065 = vcvt.s32.f32 %v2049
    %v2066 = vcvt.s32.f32 %v2050
    %v2067 = vcvt.s32.f32 %v2051
    %v2068 = vmul.f32 %v2052, %v1973
    %v2069 = vmul.f32 %v2053, %v1976
    %v2070 = vmul.f32 %v2054, %v1979
    %v2071 = vmul.f32 %v2055, %v1982
    %v2072 = vmul.f32 %v2056, %v1985
    %v2073 = vmul.f32 %v2057, %v1988
    %v2074 = vmul.f32 %v2058, %v1991
    %v2075 = vmul.f32 %v2059, %v1994
    %v2076 = vmul.f32 %v2060, %v1997
    %v2077 = vmul.f32 %v2061, %v2000
    %v2078 = vmul.f32 %v2062, %v2003
    %v2079 = vmul.f32 %v2063, %v2006
    %v2080 = vmul.f32 %v2064, %v2009
    %v2081 = vmul.f32 %v2065, %v2012
    %v2082 = vmul.f32 %v2066, %v2015
    %v2083 = vmul.f32 %v2067, %v2018
    %v2084 = vadd.f32 %v2068, %v2069
    %v2085 = vadd.f32 %v2084, %v2070
    %v2086 = vadd.f32 %v2085, %v2071
    %v2087 = vadd.f32 %v2086, %v2072
    %v2088 = vadd.f32 %v2087, %v2073
    %v2089 = vadd.f32 %v2088, %v2074
    %v2090 = vadd.f32 %v2089, %v2075
    %v2091 = vadd.f32 %v2090, %v2076
    %v2092 = vadd.f32 %v2091, %v2077
    %v2093 = vadd.f32 %v2092, %v2078
    %v2094 = vadd.f32 %v2093, %v2079
    %v2095 = vadd.f32 %v2094, %v2080
    %v2096 = vadd.f32 %v2095, %v2081
    %v2097 = vadd.f32 %v2096, %v2082
    %v2098 = vadd.f32 %v2097, %v2083
    %v2099 = vrot.slane %v2098, 4
    %v2100 = vadd.f32 %v2098, %v2099
    %v2101 = vrot.slane %v2100, 2
    %v2102 = vadd.f32 %v2100, %v2101
    %v2103 = vrot.slane %v2102, 1
    %v2104 = vadd.f32 %v2102, %v2103
    %v2105 = vmul.f32 %v2052, %v1950
    %v2106 = vmul.f32 %v2053, %v1950
    %v2107 = vmul.f32 %v2054, %v1950
    %v2108 = vmul.f32 %v2055, %v1950
    %v2109 = vmul.f32 %v2056, %v1950
    %v2110 = vmul.f32 %v2057, %v1950
    %v2111 = vmul.f32 %v2058, %v1950
    %v2112 = vmul.f32 %v2059, %v1950
    %v2113 = vmul.f32 %v2060, %v1950
    %v2114 = vmul.f32 %v2061, %v1950
    %v2115 = vmul.f32 %v2062, %v1950
    %v2116 = vmul.f32 %v2063, %v1950
    %v2117 = vmul.f32 %v2064, %v1950
    %v2118 = vmul.f32 %v2065, %v1950
    %v2119 = vmul.f32 %v2066, %v1950
    %v2120 = vmul.f32 %v2067, %v1950
    %2121 = vadd.xlane.f32.xlu0 %v2105
    %v2122 = vpop.xlane.xlu0 %2121
    %2123 = vadd.xlane.f32.xlu0 %v2106
    %v2124 = vpop.xlane.xlu0 %2123
    %2125 = vadd.xlane.f32.xlu0 %v2107
    %v2126 = vpop.xlane.xlu0 %2125
    %2127 = vadd.xlane.f32.xlu0 %v2108
    %v2128 = vpop.xlane.xlu0 %2127
    %2129 = vadd.xlane.f32.xlu0 %v2109
    %v2130 = vpop.xlane.xlu0 %2129
    %2131 = vadd.xlane.f32.xlu0 %v2110
    %v2132 = vpop.xlane.xlu0 %2131
    %2133 = vadd.xlane.f32.xlu0 %v2111
    %v2134 = vpop.xlane.xlu0 %2133
    %2135 = vadd.xlane.f32.xlu0 %v2112
    %v2136 = vpop.xlane.xlu0 %2135
    %2137 = vadd.xlane.f32.xlu0 %v2113
    %v2138 = vpop.xlane.xlu0 %2137
    %2139 = vadd.xlane.f32.xlu0 %v2114
    %v2140 = vpop.xlane.xlu0 %2139
    %2141 = vadd.xlane.f32.xlu0 %v2115
    %v2142 = vpop.xlane.xlu0 %2141
    %2143 = vadd.xlane.f32.xlu0 %v2116
    %v2144 = vpop.xlane.xlu0 %2143
    %2145 = vadd.xlane.f32.xlu0 %v2117
    %v2146 = vpop.xlane.xlu0 %2145
    %2147 = vadd.xlane.f32.xlu0 %v2118
    %v2148 = vpop.xlane.xlu0 %2147
    %2149 = vadd.xlane.f32.xlu0 %v2119
    %v2150 = vpop.xlane.xlu0 %2149
    %2151 = vadd.xlane.f32.xlu0 %v2120
    %v2152 = vpop.xlane.xlu0 %2151
    %vm2153 = vcmp.eq.f32.partialorder %v2122, 0.0
    %vm2154 = vcmp.eq.f32.partialorder %v2124, 0.0
    %vm2155 = vcmp.eq.f32.partialorder %v2126, 0.0
    %vm2156 = vcmp.eq.f32.partialorder %v2128, 0.0
    %vm2157 = vcmp.eq.f32.partialorder %v2130, 0.0
    %vm2158 = vcmp.eq.f32.partialorder %v2132, 0.0
    %vm2159 = vcmp.eq.f32.partialorder %v2134, 0.0
    %vm2160 = vcmp.eq.f32.partialorder %v2136, 0.0
    %vm2161 = vcmp.eq.f32.partialorder %v2138, 0.0
    %vm2162 = vcmp.eq.f32.partialorder %v2140, 0.0
    %vm2163 = vcmp.eq.f32.partialorder %v2142, 0.0
    %vm2164 = vcmp.eq.f32.partialorder %v2144, 0.0
    %vm2165 = vcmp.eq.f32.partialorder %v2146, 0.0
    %vm2166 = vcmp.eq.f32.partialorder %v2148, 0.0
    %vm2167 = vcmp.eq.f32.partialorder %v2150, 0.0
    %vm2168 = vcmp.eq.f32.partialorder %v2152, 0.0
    %v2169 = vsel %vm2153, 1, 0
    %v2170 = vsel %vm2154, 1, 0
    %v2171 = vsel %vm2155, 1, 0
    %v2172 = vsel %vm2156, 1, 0
    %v2173 = vsel %vm2157, 1, 0
    %v2174 = vsel %vm2158, 1, 0
    %v2175 = vsel %vm2159, 1, 0
    %v2176 = vsel %vm2160, 1, 0
    %v2177 = vsel %vm2161, 1, 0
    %v2178 = vsel %vm2162, 1, 0
    %v2179 = vsel %vm2163, 1, 0
    %v2180 = vsel %vm2164, 1, 0
    %v2181 = vsel %vm2165, 1, 0
    %v2182 = vsel %vm2166, 1, 0
    %v2183 = vsel %vm2167, 1, 0
    %v2184 = vsel %vm2168, 1, 0
    %v2185 = vcvt.s32.f32 %v2169
    %v2186 = vcvt.s32.f32 %v2170
    %v2187 = vcvt.s32.f32 %v2171
    %v2188 = vcvt.s32.f32 %v2172
    %v2189 = vcvt.s32.f32 %v2173
    %v2190 = vcvt.s32.f32 %v2174
    %v2191 = vcvt.s32.f32 %v2175
    %v2192 = vcvt.s32.f32 %v2176
    %v2193 = vcvt.s32.f32 %v2177
    %v2194 = vcvt.s32.f32 %v2178
    %v2195 = vcvt.s32.f32 %v2179
    %v2196 = vcvt.s32.f32 %v2180
    %v2197 = vcvt.s32.f32 %v2181
    %v2198 = vcvt.s32.f32 %v2182
    %v2199 = vcvt.s32.f32 %v2183
    %v2200 = vcvt.s32.f32 %v2184
    %v2201 = vsub.f32 1.0, %v2104
    %v2202 = vadd.f32 %v2201, %v1973
    %v2203 = vadd.f32 %v2201, %v1976
    %v2204 = vadd.f32 %v2201, %v1979
    %v2205 = vadd.f32 %v2201, %v1982
    %v2206 = vadd.f32 %v2201, %v1985
    %v2207 = vadd.f32 %v2201, %v1988
    %v2208 = vadd.f32 %v2201, %v1991
    %v2209 = vadd.f32 %v2201, %v1994
    %v2210 = vadd.f32 %v2201, %v1997
    %v2211 = vadd.f32 %v2201, %v2000
    %v2212 = vadd.f32 %v2201, %v2003
    %v2213 = vadd.f32 %v2201, %v2006
    %v2214 = vadd.f32 %v2201, %v2009
    %v2215 = vadd.f32 %v2201, %v2012
    %v2216 = vadd.f32 %v2201, %v2015
    %v2217 = vadd.f32 %v2201, %v2018
    %v2218 = vmax.f32 %v2202, 0.0
    %v2219 = vmax.f32 %v2203, 0.0
    %v2220 = vmax.f32 %v2204, 0.0
    %v2221 = vmax.f32 %v2205, 0.0
    %v2222 = vmax.f32 %v2206, 0.0
    %v2223 = vmax.f32 %v2207, 0.0
    %v2224 = vmax.f32 %v2208, 0.0
    %v2225 = vmax.f32 %v2209, 0.0
    %v2226 = vmax.f32 %v2210, 0.0
    %v2227 = vmax.f32 %v2211, 0.0
    %v2228 = vmax.f32 %v2212, 0.0
    %v2229 = vmax.f32 %v2213, 0.0
    %v2230 = vmax.f32 %v2214, 0.0
    %v2231 = vmax.f32 %v2215, 0.0
    %v2232 = vmax.f32 %v2216, 0.0
    %v2233 = vmax.f32 %v2217, 0.0
    %v2234 = vmul.f32 %v1950, %v2185
    %v2235 = vmul.f32 %v1950, %v2186
    %v2236 = vmul.f32 %v1950, %v2187
    %v2237 = vmul.f32 %v1950, %v2188
    %v2238 = vmul.f32 %v1950, %v2189
    %v2239 = vmul.f32 %v1950, %v2190
    %v2240 = vmul.f32 %v1950, %v2191
    %v2241 = vmul.f32 %v1950, %v2192
    %v2242 = vmul.f32 %v1950, %v2193
    %v2243 = vmul.f32 %v1950, %v2194
    %v2244 = vmul.f32 %v1950, %v2195
    %v2245 = vmul.f32 %v1950, %v2196
    %v2246 = vmul.f32 %v1950, %v2197
    %v2247 = vmul.f32 %v1950, %v2198
    %v2248 = vmul.f32 %v1950, %v2199
    %v2249 = vmul.f32 %v1950, %v2200
    %v2250 = vmul.f32 %v2218, %v2234
    %v2251 = vmul.f32 %v2219, %v2235
    %v2252 = vmul.f32 %v2220, %v2236
    %v2253 = vmul.f32 %v2221, %v2237
    %v2254 = vmul.f32 %v2222, %v2238
    %v2255 = vmul.f32 %v2223, %v2239
    %v2256 = vmul.f32 %v2224, %v2240
    %v2257 = vmul.f32 %v2225, %v2241
    %v2258 = vmul.f32 %v2226, %v2242
    %v2259 = vmul.f32 %v2227, %v2243
    %v2260 = vmul.f32 %v2228, %v2244
    %v2261 = vmul.f32 %v2229, %v2245
    %v2262 = vmul.f32 %v2230, %v2246
    %v2263 = vmul.f32 %v2231, %v2247
    %v2264 = vmul.f32 %v2232, %v2248
    %v2265 = vmul.f32 %v2233, %v2249
    %v2266 = vadd.f32 %v2250, %v2251
    %v2267 = vadd.f32 %v2266, %v2252
    %v2268 = vadd.f32 %v2267, %v2253
    %v2269 = vadd.f32 %v2268, %v2254
    %v2270 = vadd.f32 %v2269, %v2255
    %v2271 = vadd.f32 %v2270, %v2256
    %v2272 = vadd.f32 %v2271, %v2257
    %v2273 = vadd.f32 %v2272, %v2258
    %v2274 = vadd.f32 %v2273, %v2259
    %v2275 = vadd.f32 %v2274, %v2260
    %v2276 = vadd.f32 %v2275, %v2261
    %v2277 = vadd.f32 %v2276, %v2262
    %v2278 = vadd.f32 %v2277, %v2263
    %v2279 = vadd.f32 %v2278, %v2264
    %v2280 = vadd.f32 %v2279, %v2265
    %2281 = vadd.xlane.f32.xlu0 %v2280
    %v2282 = vpop.xlane.xlu0 %2281
    %v2283 = vrot.slane %v2282, 4
    %v2284 = vadd.f32 %v2282, %v2283
    %v2285 = vrot.slane %v2284, 2
    %v2286 = vadd.f32 %v2284, %v2285
    %v2287 = vrot.slane %v2286, 1
    %v2288 = vadd.f32 %v2286, %v2287
    %s2289 = vtos %v2288
    %v2290 = vstv %s2289
    %v2291 = vsel %vm1952, %v2290, 0.0
    %v2292 = vadd.f32 %v1918, %v2291
    %v2293 = vld [vmem:[%s1 + $0x6] sm:$0x1]
    %vm2294 = vcmp.lt.s32.totalorder %v2293, 0
    %v2295 = vsel %vm2294, %v46, 128
    %v2296 = vsel %vm50, %v2295, 2147483647
    %v2297 = vand.u32 %v2296, 65535
    %v2298 = vshra.s32 %v2296, 16
    %v2299 = vcvt.s32.f32 %v2297
    %v2300 = vcvt.s32.f32 %v2298
    %2301 = vmin.xlane.f32.xlu0 %v2300
    %v2302 = vpop.xlane.xlu0 %2301
    %vm2303 = vcmp.eq.f32.partialorder %v2300, %v2302
    %v2304 = vsel %vm2303, %v2299, inf
    %2305 = vmin.xlane.f32.xlu0 %v2304
    %v2306 = vpop.xlane.xlu0 %2305
    %v2307 = vcvt.f32.s32 %v2306
    %v2308 = vcvt.f32.s32 %v2302
    %v2309 = vshll.u32 %v2308, 16
    %v2310 = vadd.s32 %v2309, %v2307
    %v2311 = vrot.slane %v2310, 4
    %vm2312 = vcmp.lt.s32.totalorder %v2310, %v2311
    %v2313 = vsel %vm2312, %v2310, %v2311
    %v2314 = vrot.slane %v2313, 2
    %vm2315 = vcmp.lt.s32.totalorder %v2313, %v2314
    %v2316 = vsel %vm2315, %v2313, %v2314
    %v2317 = vrot.slane %v2316, 1
    %vm2318 = vcmp.lt.s32.totalorder %v2316, %v2317
    %v2319 = vsel %vm2318, %v2316, %v2317
    %s2320 = vtos %v2319
    %v2321 = vstv %s2320
    %vm2322 = vcmp.lt.s32.totalorder %v46, %v2321
    %v2323 = vsel %vm2322, 1, 0
    %v2324 = vcvt.s32.f32 %v2323
    %v2325 = vsel %vm2322, %v2293, 0
    %vm2326 = vcmp.eq.s32.totalorder %v46, 6
    %v2327 = vsel %vm2326, 1, 0
    %v2328 = vcvt.s32.f32 %v2327
    %v2329 = vmul.f32 %v12, %v2328
    %v2330 = vmul.f32 %v13, %v2328
    %v2331 = vmul.f32 %v14, %v2328
    %v2332 = vmul.f32 %v15, %v2328
    %v2333 = vmul.f32 %v16, %v2328
    %v2334 = vmul.f32 %v17, %v2328
    %v2335 = vmul.f32 %v18, %v2328
    %v2336 = vmul.f32 %v19, %v2328
    %v2337 = vmul.f32 %v20, %v2328
    %v2338 = vmul.f32 %v21, %v2328
    %v2339 = vmul.f32 %v22, %v2328
    %v2340 = vmul.f32 %v23, %v2328
    %v2341 = vmul.f32 %v24, %v2328
    %v2342 = vmul.f32 %v25, %v2328
    %v2343 = vmul.f32 %v26, %v2328
    %v2344 = vmul.f32 %v27, %v2328
    %v2345 = vsel %vm100, %v2329, 0.0
    %2346 = vadd.xlane.f32.xlu0 %v2345
    %v2347 = vpop.xlane.xlu0 %2346
    %v2348 = vsel %vm100, %v2330, 0.0
    %2349 = vadd.xlane.f32.xlu0 %v2348
    %v2350 = vpop.xlane.xlu0 %2349
    %v2351 = vsel %vm100, %v2331, 0.0
    %2352 = vadd.xlane.f32.xlu0 %v2351
    %v2353 = vpop.xlane.xlu0 %2352
    %v2354 = vsel %vm100, %v2332, 0.0
    %2355 = vadd.xlane.f32.xlu0 %v2354
    %v2356 = vpop.xlane.xlu0 %2355
    %v2357 = vsel %vm100, %v2333, 0.0
    %2358 = vadd.xlane.f32.xlu0 %v2357
    %v2359 = vpop.xlane.xlu0 %2358
    %v2360 = vsel %vm100, %v2334, 0.0
    %2361 = vadd.xlane.f32.xlu0 %v2360
    %v2362 = vpop.xlane.xlu0 %2361
    %v2363 = vsel %vm100, %v2335, 0.0
    %2364 = vadd.xlane.f32.xlu0 %v2363
    %v2365 = vpop.xlane.xlu0 %2364
    %v2366 = vsel %vm100, %v2336, 0.0
    %2367 = vadd.xlane.f32.xlu0 %v2366
    %v2368 = vpop.xlane.xlu0 %2367
    %v2369 = vsel %vm100, %v2337, 0.0
    %2370 = vadd.xlane.f32.xlu0 %v2369
    %v2371 = vpop.xlane.xlu0 %2370
    %v2372 = vsel %vm100, %v2338, 0.0
    %2373 = vadd.xlane.f32.xlu0 %v2372
    %v2374 = vpop.xlane.xlu0 %2373
    %v2375 = vsel %vm100, %v2339, 0.0
    %2376 = vadd.xlane.f32.xlu0 %v2375
    %v2377 = vpop.xlane.xlu0 %2376
    %v2378 = vsel %vm100, %v2340, 0.0
    %2379 = vadd.xlane.f32.xlu0 %v2378
    %v2380 = vpop.xlane.xlu0 %2379
    %v2381 = vsel %vm100, %v2341, 0.0
    %2382 = vadd.xlane.f32.xlu0 %v2381
    %v2383 = vpop.xlane.xlu0 %2382
    %v2384 = vsel %vm100, %v2342, 0.0
    %2385 = vadd.xlane.f32.xlu0 %v2384
    %v2386 = vpop.xlane.xlu0 %2385
    %v2387 = vsel %vm100, %v2343, 0.0
    %2388 = vadd.xlane.f32.xlu0 %v2387
    %v2389 = vpop.xlane.xlu0 %2388
    %v2390 = vsel %vm100, %v2344, 0.0
    %2391 = vadd.xlane.f32.xlu0 %v2390
    %v2392 = vpop.xlane.xlu0 %2391
    %v2393 = vperm.slane %v2325, 0
    %vm2394 = vcmp.eq.s32.totalorder %v29, %v2393
    %vm2395 = vcmp.eq.s32.totalorder %v30, %v2393
    %vm2396 = vcmp.eq.s32.totalorder %v31, %v2393
    %vm2397 = vcmp.eq.s32.totalorder %v32, %v2393
    %vm2398 = vcmp.eq.s32.totalorder %v33, %v2393
    %vm2399 = vcmp.eq.s32.totalorder %v34, %v2393
    %vm2400 = vcmp.eq.s32.totalorder %v35, %v2393
    %vm2401 = vcmp.eq.s32.totalorder %v36, %v2393
    %vm2402 = vcmp.eq.s32.totalorder %v37, %v2393
    %vm2403 = vcmp.eq.s32.totalorder %v38, %v2393
    %vm2404 = vcmp.eq.s32.totalorder %v39, %v2393
    %vm2405 = vcmp.eq.s32.totalorder %v40, %v2393
    %vm2406 = vcmp.eq.s32.totalorder %v41, %v2393
    %vm2407 = vcmp.eq.s32.totalorder %v42, %v2393
    %vm2408 = vcmp.eq.s32.totalorder %v43, %v2393
    %vm2409 = vcmp.eq.s32.totalorder %v44, %v2393
    %v2410 = vsel %vm2394, 1, 0
    %v2411 = vsel %vm2395, 1, 0
    %v2412 = vsel %vm2396, 1, 0
    %v2413 = vsel %vm2397, 1, 0
    %v2414 = vsel %vm2398, 1, 0
    %v2415 = vsel %vm2399, 1, 0
    %v2416 = vsel %vm2400, 1, 0
    %v2417 = vsel %vm2401, 1, 0
    %v2418 = vsel %vm2402, 1, 0
    %v2419 = vsel %vm2403, 1, 0
    %v2420 = vsel %vm2404, 1, 0
    %v2421 = vsel %vm2405, 1, 0
    %v2422 = vsel %vm2406, 1, 0
    %v2423 = vsel %vm2407, 1, 0
    %v2424 = vsel %vm2408, 1, 0
    %v2425 = vsel %vm2409, 1, 0
    %v2426 = vcvt.s32.f32 %v2410
    %v2427 = vcvt.s32.f32 %v2411
    %v2428 = vcvt.s32.f32 %v2412
    %v2429 = vcvt.s32.f32 %v2413
    %v2430 = vcvt.s32.f32 %v2414
    %v2431 = vcvt.s32.f32 %v2415
    %v2432 = vcvt.s32.f32 %v2416
    %v2433 = vcvt.s32.f32 %v2417
    %v2434 = vcvt.s32.f32 %v2418
    %v2435 = vcvt.s32.f32 %v2419
    %v2436 = vcvt.s32.f32 %v2420
    %v2437 = vcvt.s32.f32 %v2421
    %v2438 = vcvt.s32.f32 %v2422
    %v2439 = vcvt.s32.f32 %v2423
    %v2440 = vcvt.s32.f32 %v2424
    %v2441 = vcvt.s32.f32 %v2425
    %v2442 = vmul.f32 %v2426, %v2347
    %v2443 = vmul.f32 %v2427, %v2350
    %v2444 = vmul.f32 %v2428, %v2353
    %v2445 = vmul.f32 %v2429, %v2356
    %v2446 = vmul.f32 %v2430, %v2359
    %v2447 = vmul.f32 %v2431, %v2362
    %v2448 = vmul.f32 %v2432, %v2365
    %v2449 = vmul.f32 %v2433, %v2368
    %v2450 = vmul.f32 %v2434, %v2371
    %v2451 = vmul.f32 %v2435, %v2374
    %v2452 = vmul.f32 %v2436, %v2377
    %v2453 = vmul.f32 %v2437, %v2380
    %v2454 = vmul.f32 %v2438, %v2383
    %v2455 = vmul.f32 %v2439, %v2386
    %v2456 = vmul.f32 %v2440, %v2389
    %v2457 = vmul.f32 %v2441, %v2392
    %v2458 = vadd.f32 %v2442, %v2443
    %v2459 = vadd.f32 %v2458, %v2444
    %v2460 = vadd.f32 %v2459, %v2445
    %v2461 = vadd.f32 %v2460, %v2446
    %v2462 = vadd.f32 %v2461, %v2447
    %v2463 = vadd.f32 %v2462, %v2448
    %v2464 = vadd.f32 %v2463, %v2449
    %v2465 = vadd.f32 %v2464, %v2450
    %v2466 = vadd.f32 %v2465, %v2451
    %v2467 = vadd.f32 %v2466, %v2452
    %v2468 = vadd.f32 %v2467, %v2453
    %v2469 = vadd.f32 %v2468, %v2454
    %v2470 = vadd.f32 %v2469, %v2455
    %v2471 = vadd.f32 %v2470, %v2456
    %v2472 = vadd.f32 %v2471, %v2457
    %v2473 = vrot.slane %v2472, 4
    %v2474 = vadd.f32 %v2472, %v2473
    %v2475 = vrot.slane %v2474, 2
    %v2476 = vadd.f32 %v2474, %v2475
    %v2477 = vrot.slane %v2476, 1
    %v2478 = vadd.f32 %v2476, %v2477
    %v2479 = vmul.f32 %v2426, %v2324
    %v2480 = vmul.f32 %v2427, %v2324
    %v2481 = vmul.f32 %v2428, %v2324
    %v2482 = vmul.f32 %v2429, %v2324
    %v2483 = vmul.f32 %v2430, %v2324
    %v2484 = vmul.f32 %v2431, %v2324
    %v2485 = vmul.f32 %v2432, %v2324
    %v2486 = vmul.f32 %v2433, %v2324
    %v2487 = vmul.f32 %v2434, %v2324
    %v2488 = vmul.f32 %v2435, %v2324
    %v2489 = vmul.f32 %v2436, %v2324
    %v2490 = vmul.f32 %v2437, %v2324
    %v2491 = vmul.f32 %v2438, %v2324
    %v2492 = vmul.f32 %v2439, %v2324
    %v2493 = vmul.f32 %v2440, %v2324
    %v2494 = vmul.f32 %v2441, %v2324
    %2495 = vadd.xlane.f32.xlu0 %v2479
    %v2496 = vpop.xlane.xlu0 %2495
    %2497 = vadd.xlane.f32.xlu0 %v2480
    %v2498 = vpop.xlane.xlu0 %2497
    %2499 = vadd.xlane.f32.xlu0 %v2481
    %v2500 = vpop.xlane.xlu0 %2499
    %2501 = vadd.xlane.f32.xlu0 %v2482
    %v2502 = vpop.xlane.xlu0 %2501
    %2503 = vadd.xlane.f32.xlu0 %v2483
    %v2504 = vpop.xlane.xlu0 %2503
    %2505 = vadd.xlane.f32.xlu0 %v2484
    %v2506 = vpop.xlane.xlu0 %2505
    %2507 = vadd.xlane.f32.xlu0 %v2485
    %v2508 = vpop.xlane.xlu0 %2507
    %2509 = vadd.xlane.f32.xlu0 %v2486
    %v2510 = vpop.xlane.xlu0 %2509
    %2511 = vadd.xlane.f32.xlu0 %v2487
    %v2512 = vpop.xlane.xlu0 %2511
    %2513 = vadd.xlane.f32.xlu0 %v2488
    %v2514 = vpop.xlane.xlu0 %2513
    %2515 = vadd.xlane.f32.xlu0 %v2489
    %v2516 = vpop.xlane.xlu0 %2515
    %2517 = vadd.xlane.f32.xlu0 %v2490
    %v2518 = vpop.xlane.xlu0 %2517
    %2519 = vadd.xlane.f32.xlu0 %v2491
    %v2520 = vpop.xlane.xlu0 %2519
    %2521 = vadd.xlane.f32.xlu0 %v2492
    %v2522 = vpop.xlane.xlu0 %2521
    %2523 = vadd.xlane.f32.xlu0 %v2493
    %v2524 = vpop.xlane.xlu0 %2523
    %2525 = vadd.xlane.f32.xlu0 %v2494
    %v2526 = vpop.xlane.xlu0 %2525
    %vm2527 = vcmp.eq.f32.partialorder %v2496, 0.0
    %vm2528 = vcmp.eq.f32.partialorder %v2498, 0.0
    %vm2529 = vcmp.eq.f32.partialorder %v2500, 0.0
    %vm2530 = vcmp.eq.f32.partialorder %v2502, 0.0
    %vm2531 = vcmp.eq.f32.partialorder %v2504, 0.0
    %vm2532 = vcmp.eq.f32.partialorder %v2506, 0.0
    %vm2533 = vcmp.eq.f32.partialorder %v2508, 0.0
    %vm2534 = vcmp.eq.f32.partialorder %v2510, 0.0
    %vm2535 = vcmp.eq.f32.partialorder %v2512, 0.0
    %vm2536 = vcmp.eq.f32.partialorder %v2514, 0.0
    %vm2537 = vcmp.eq.f32.partialorder %v2516, 0.0
    %vm2538 = vcmp.eq.f32.partialorder %v2518, 0.0
    %vm2539 = vcmp.eq.f32.partialorder %v2520, 0.0
    %vm2540 = vcmp.eq.f32.partialorder %v2522, 0.0
    %vm2541 = vcmp.eq.f32.partialorder %v2524, 0.0
    %vm2542 = vcmp.eq.f32.partialorder %v2526, 0.0
    %v2543 = vsel %vm2527, 1, 0
    %v2544 = vsel %vm2528, 1, 0
    %v2545 = vsel %vm2529, 1, 0
    %v2546 = vsel %vm2530, 1, 0
    %v2547 = vsel %vm2531, 1, 0
    %v2548 = vsel %vm2532, 1, 0
    %v2549 = vsel %vm2533, 1, 0
    %v2550 = vsel %vm2534, 1, 0
    %v2551 = vsel %vm2535, 1, 0
    %v2552 = vsel %vm2536, 1, 0
    %v2553 = vsel %vm2537, 1, 0
    %v2554 = vsel %vm2538, 1, 0
    %v2555 = vsel %vm2539, 1, 0
    %v2556 = vsel %vm2540, 1, 0
    %v2557 = vsel %vm2541, 1, 0
    %v2558 = vsel %vm2542, 1, 0
    %v2559 = vcvt.s32.f32 %v2543
    %v2560 = vcvt.s32.f32 %v2544
    %v2561 = vcvt.s32.f32 %v2545
    %v2562 = vcvt.s32.f32 %v2546
    %v2563 = vcvt.s32.f32 %v2547
    %v2564 = vcvt.s32.f32 %v2548
    %v2565 = vcvt.s32.f32 %v2549
    %v2566 = vcvt.s32.f32 %v2550
    %v2567 = vcvt.s32.f32 %v2551
    %v2568 = vcvt.s32.f32 %v2552
    %v2569 = vcvt.s32.f32 %v2553
    %v2570 = vcvt.s32.f32 %v2554
    %v2571 = vcvt.s32.f32 %v2555
    %v2572 = vcvt.s32.f32 %v2556
    %v2573 = vcvt.s32.f32 %v2557
    %v2574 = vcvt.s32.f32 %v2558
    %v2575 = vsub.f32 1.0, %v2478
    %v2576 = vadd.f32 %v2575, %v2347
    %v2577 = vadd.f32 %v2575, %v2350
    %v2578 = vadd.f32 %v2575, %v2353
    %v2579 = vadd.f32 %v2575, %v2356
    %v2580 = vadd.f32 %v2575, %v2359
    %v2581 = vadd.f32 %v2575, %v2362
    %v2582 = vadd.f32 %v2575, %v2365
    %v2583 = vadd.f32 %v2575, %v2368
    %v2584 = vadd.f32 %v2575, %v2371
    %v2585 = vadd.f32 %v2575, %v2374
    %v2586 = vadd.f32 %v2575, %v2377
    %v2587 = vadd.f32 %v2575, %v2380
    %v2588 = vadd.f32 %v2575, %v2383
    %v2589 = vadd.f32 %v2575, %v2386
    %v2590 = vadd.f32 %v2575, %v2389
    %v2591 = vadd.f32 %v2575, %v2392
    %v2592 = vmax.f32 %v2576, 0.0
    %v2593 = vmax.f32 %v2577, 0.0
    %v2594 = vmax.f32 %v2578, 0.0
    %v2595 = vmax.f32 %v2579, 0.0
    %v2596 = vmax.f32 %v2580, 0.0
    %v2597 = vmax.f32 %v2581, 0.0
    %v2598 = vmax.f32 %v2582, 0.0
    %v2599 = vmax.f32 %v2583, 0.0
    %v2600 = vmax.f32 %v2584, 0.0
    %v2601 = vmax.f32 %v2585, 0.0
    %v2602 = vmax.f32 %v2586, 0.0
    %v2603 = vmax.f32 %v2587, 0.0
    %v2604 = vmax.f32 %v2588, 0.0
    %v2605 = vmax.f32 %v2589, 0.0
    %v2606 = vmax.f32 %v2590, 0.0
    %v2607 = vmax.f32 %v2591, 0.0
    %v2608 = vmul.f32 %v2324, %v2559
    %v2609 = vmul.f32 %v2324, %v2560
    %v2610 = vmul.f32 %v2324, %v2561
    %v2611 = vmul.f32 %v2324, %v2562
    %v2612 = vmul.f32 %v2324, %v2563
    %v2613 = vmul.f32 %v2324, %v2564
    %v2614 = vmul.f32 %v2324, %v2565
    %v2615 = vmul.f32 %v2324, %v2566
    %v2616 = vmul.f32 %v2324, %v2567
    %v2617 = vmul.f32 %v2324, %v2568
    %v2618 = vmul.f32 %v2324, %v2569
    %v2619 = vmul.f32 %v2324, %v2570
    %v2620 = vmul.f32 %v2324, %v2571
    %v2621 = vmul.f32 %v2324, %v2572
    %v2622 = vmul.f32 %v2324, %v2573
    %v2623 = vmul.f32 %v2324, %v2574
    %v2624 = vmul.f32 %v2592, %v2608
    %v2625 = vmul.f32 %v2593, %v2609
    %v2626 = vmul.f32 %v2594, %v2610
    %v2627 = vmul.f32 %v2595, %v2611
    %v2628 = vmul.f32 %v2596, %v2612
    %v2629 = vmul.f32 %v2597, %v2613
    %v2630 = vmul.f32 %v2598, %v2614
    %v2631 = vmul.f32 %v2599, %v2615
    %v2632 = vmul.f32 %v2600, %v2616
    %v2633 = vmul.f32 %v2601, %v2617
    %v2634 = vmul.f32 %v2602, %v2618
    %v2635 = vmul.f32 %v2603, %v2619
    %v2636 = vmul.f32 %v2604, %v2620
    %v2637 = vmul.f32 %v2605, %v2621
    %v2638 = vmul.f32 %v2606, %v2622
    %v2639 = vmul.f32 %v2607, %v2623
    %v2640 = vadd.f32 %v2624, %v2625
    %v2641 = vadd.f32 %v2640, %v2626
    %v2642 = vadd.f32 %v2641, %v2627
    %v2643 = vadd.f32 %v2642, %v2628
    %v2644 = vadd.f32 %v2643, %v2629
    %v2645 = vadd.f32 %v2644, %v2630
    %v2646 = vadd.f32 %v2645, %v2631
    %v2647 = vadd.f32 %v2646, %v2632
    %v2648 = vadd.f32 %v2647, %v2633
    %v2649 = vadd.f32 %v2648, %v2634
    %v2650 = vadd.f32 %v2649, %v2635
    %v2651 = vadd.f32 %v2650, %v2636
    %v2652 = vadd.f32 %v2651, %v2637
    %v2653 = vadd.f32 %v2652, %v2638
    %v2654 = vadd.f32 %v2653, %v2639
    %2655 = vadd.xlane.f32.xlu0 %v2654
    %v2656 = vpop.xlane.xlu0 %2655
    %v2657 = vrot.slane %v2656, 4
    %v2658 = vadd.f32 %v2656, %v2657
    %v2659 = vrot.slane %v2658, 2
    %v2660 = vadd.f32 %v2658, %v2659
    %v2661 = vrot.slane %v2660, 1
    %v2662 = vadd.f32 %v2660, %v2661
    %s2663 = vtos %v2662
    %v2664 = vstv %s2663
    %v2665 = vsel %vm2326, %v2664, 0.0
    %v2666 = vadd.f32 %v2292, %v2665
    %v2667 = vld [vmem:[%s1 + $0x7] sm:$0x1]
    %vm2668 = vcmp.lt.s32.totalorder %v2667, 0
    %v2669 = vsel %vm2668, %v46, 128
    %v2670 = vsel %vm50, %v2669, 2147483647
    %v2671 = vand.u32 %v2670, 65535
    %v2672 = vshra.s32 %v2670, 16
    %v2673 = vcvt.s32.f32 %v2671
    %v2674 = vcvt.s32.f32 %v2672
    %2675 = vmin.xlane.f32.xlu0 %v2674
    %v2676 = vpop.xlane.xlu0 %2675
    %vm2677 = vcmp.eq.f32.partialorder %v2674, %v2676
    %v2678 = vsel %vm2677, %v2673, inf
    %2679 = vmin.xlane.f32.xlu0 %v2678
    %v2680 = vpop.xlane.xlu0 %2679
    %v2681 = vcvt.f32.s32 %v2680
    %v2682 = vcvt.f32.s32 %v2676
    %v2683 = vshll.u32 %v2682, 16
    %v2684 = vadd.s32 %v2683, %v2681
    %v2685 = vrot.slane %v2684, 4
    %vm2686 = vcmp.lt.s32.totalorder %v2684, %v2685
    %v2687 = vsel %vm2686, %v2684, %v2685
    %v2688 = vrot.slane %v2687, 2
    %vm2689 = vcmp.lt.s32.totalorder %v2687, %v2688
    %v2690 = vsel %vm2689, %v2687, %v2688
    %v2691 = vrot.slane %v2690, 1
    %vm2692 = vcmp.lt.s32.totalorder %v2690, %v2691
    %v2693 = vsel %vm2692, %v2690, %v2691
    %s2694 = vtos %v2693
    %v2695 = vstv %s2694
    %vm2696 = vcmp.lt.s32.totalorder %v46, %v2695
    %v2697 = vsel %vm2696, 1, 0
    %v2698 = vcvt.s32.f32 %v2697
    %v2699 = vsel %vm2696, %v2667, 0
    %vm2700 = vcmp.eq.s32.totalorder %v46, 7
    %v2701 = vsel %vm2700, 1, 0
    %v2702 = vcvt.s32.f32 %v2701
    %v2703 = vmul.f32 %v12, %v2702
    %v2704 = vmul.f32 %v13, %v2702
    %v2705 = vmul.f32 %v14, %v2702
    %v2706 = vmul.f32 %v15, %v2702
    %v2707 = vmul.f32 %v16, %v2702
    %v2708 = vmul.f32 %v17, %v2702
    %v2709 = vmul.f32 %v18, %v2702
    %v2710 = vmul.f32 %v19, %v2702
    %v2711 = vmul.f32 %v20, %v2702
    %v2712 = vmul.f32 %v21, %v2702
    %v2713 = vmul.f32 %v22, %v2702
    %v2714 = vmul.f32 %v23, %v2702
    %v2715 = vmul.f32 %v24, %v2702
    %v2716 = vmul.f32 %v25, %v2702
    %v2717 = vmul.f32 %v26, %v2702
    %v2718 = vmul.f32 %v27, %v2702
    %v2719 = vsel %vm100, %v2703, 0.0
    %2720 = vadd.xlane.f32.xlu0 %v2719
    %v2721 = vpop.xlane.xlu0 %2720
    %v2722 = vsel %vm100, %v2704, 0.0
    %2723 = vadd.xlane.f32.xlu0 %v2722
    %v2724 = vpop.xlane.xlu0 %2723
    %v2725 = vsel %vm100, %v2705, 0.0
    %2726 = vadd.xlane.f32.xlu0 %v2725
    %v2727 = vpop.xlane.xlu0 %2726
    %v2728 = vsel %vm100, %v2706, 0.0
    %2729 = vadd.xlane.f32.xlu0 %v2728
    %v2730 = vpop.xlane.xlu0 %2729
    %v2731 = vsel %vm100, %v2707, 0.0
    %2732 = vadd.xlane.f32.xlu0 %v2731
    %v2733 = vpop.xlane.xlu0 %2732
    %v2734 = vsel %vm100, %v2708, 0.0
    %2735 = vadd.xlane.f32.xlu0 %v2734
    %v2736 = vpop.xlane.xlu0 %2735
    %v2737 = vsel %vm100, %v2709, 0.0
    %2738 = vadd.xlane.f32.xlu0 %v2737
    %v2739 = vpop.xlane.xlu0 %2738
    %v2740 = vsel %vm100, %v2710, 0.0
    %2741 = vadd.xlane.f32.xlu0 %v2740
    %v2742 = vpop.xlane.xlu0 %2741
    %v2743 = vsel %vm100, %v2711, 0.0
    %2744 = vadd.xlane.f32.xlu0 %v2743
    %v2745 = vpop.xlane.xlu0 %2744
    %v2746 = vsel %vm100, %v2712, 0.0
    %2747 = vadd.xlane.f32.xlu0 %v2746
    %v2748 = vpop.xlane.xlu0 %2747
    %v2749 = vsel %vm100, %v2713, 0.0
    %2750 = vadd.xlane.f32.xlu0 %v2749
    %v2751 = vpop.xlane.xlu0 %2750
    %v2752 = vsel %vm100, %v2714, 0.0
    %2753 = vadd.xlane.f32.xlu0 %v2752
    %v2754 = vpop.xlane.xlu0 %2753
    %v2755 = vsel %vm100, %v2715, 0.0
    %2756 = vadd.xlane.f32.xlu0 %v2755
    %v2757 = vpop.xlane.xlu0 %2756
    %v2758 = vsel %vm100, %v2716, 0.0
    %2759 = vadd.xlane.f32.xlu0 %v2758
    %v2760 = vpop.xlane.xlu0 %2759
    %v2761 = vsel %vm100, %v2717, 0.0
    %2762 = vadd.xlane.f32.xlu0 %v2761
    %v2763 = vpop.xlane.xlu0 %2762
    %v2764 = vsel %vm100, %v2718, 0.0
    %2765 = vadd.xlane.f32.xlu0 %v2764
    %v2766 = vpop.xlane.xlu0 %2765
    %v2767 = vperm.slane %v2699, 0
    %vm2768 = vcmp.eq.s32.totalorder %v29, %v2767
    %vm2769 = vcmp.eq.s32.totalorder %v30, %v2767
    %vm2770 = vcmp.eq.s32.totalorder %v31, %v2767
    %vm2771 = vcmp.eq.s32.totalorder %v32, %v2767
    %vm2772 = vcmp.eq.s32.totalorder %v33, %v2767
    %vm2773 = vcmp.eq.s32.totalorder %v34, %v2767
    %vm2774 = vcmp.eq.s32.totalorder %v35, %v2767
    %vm2775 = vcmp.eq.s32.totalorder %v36, %v2767
    %vm2776 = vcmp.eq.s32.totalorder %v37, %v2767
    %vm2777 = vcmp.eq.s32.totalorder %v38, %v2767
    %vm2778 = vcmp.eq.s32.totalorder %v39, %v2767
    %vm2779 = vcmp.eq.s32.totalorder %v40, %v2767
    %vm2780 = vcmp.eq.s32.totalorder %v41, %v2767
    %vm2781 = vcmp.eq.s32.totalorder %v42, %v2767
    %vm2782 = vcmp.eq.s32.totalorder %v43, %v2767
    %vm2783 = vcmp.eq.s32.totalorder %v44, %v2767
    %v2784 = vsel %vm2768, 1, 0
    %v2785 = vsel %vm2769, 1, 0
    %v2786 = vsel %vm2770, 1, 0
    %v2787 = vsel %vm2771, 1, 0
    %v2788 = vsel %vm2772, 1, 0
    %v2789 = vsel %vm2773, 1, 0
    %v2790 = vsel %vm2774, 1, 0
    %v2791 = vsel %vm2775, 1, 0
    %v2792 = vsel %vm2776, 1, 0
    %v2793 = vsel %vm2777, 1, 0
    %v2794 = vsel %vm2778, 1, 0
    %v2795 = vsel %vm2779, 1, 0
    %v2796 = vsel %vm2780, 1, 0
    %v2797 = vsel %vm2781, 1, 0
    %v2798 = vsel %vm2782, 1, 0
    %v2799 = vsel %vm2783, 1, 0
    %v2800 = vcvt.s32.f32 %v2784
    %v2801 = vcvt.s32.f32 %v2785
    %v2802 = vcvt.s32.f32 %v2786
    %v2803 = vcvt.s32.f32 %v2787
    %v2804 = vcvt.s32.f32 %v2788
    %v2805 = vcvt.s32.f32 %v2789
    %v2806 = vcvt.s32.f32 %v2790
    %v2807 = vcvt.s32.f32 %v2791
    %v2808 = vcvt.s32.f32 %v2792
    %v2809 = vcvt.s32.f32 %v2793
    %v2810 = vcvt.s32.f32 %v2794
    %v2811 = vcvt.s32.f32 %v2795
    %v2812 = vcvt.s32.f32 %v2796
    %v2813 = vcvt.s32.f32 %v2797
    %v2814 = vcvt.s32.f32 %v2798
    %v2815 = vcvt.s32.f32 %v2799
    %v2816 = vmul.f32 %v2800, %v2721
    %v2817 = vmul.f32 %v2801, %v2724
    %v2818 = vmul.f32 %v2802, %v2727
    %v2819 = vmul.f32 %v2803, %v2730
    %v2820 = vmul.f32 %v2804, %v2733
    %v2821 = vmul.f32 %v2805, %v2736
    %v2822 = vmul.f32 %v2806, %v2739
    %v2823 = vmul.f32 %v2807, %v2742
    %v2824 = vmul.f32 %v2808, %v2745
    %v2825 = vmul.f32 %v2809, %v2748
    %v2826 = vmul.f32 %v2810, %v2751
    %v2827 = vmul.f32 %v2811, %v2754
    %v2828 = vmul.f32 %v2812, %v2757
    %v2829 = vmul.f32 %v2813, %v2760
    %v2830 = vmul.f32 %v2814, %v2763
    %v2831 = vmul.f32 %v2815, %v2766
    %v2832 = vadd.f32 %v2816, %v2817
    %v2833 = vadd.f32 %v2832, %v2818
    %v2834 = vadd.f32 %v2833, %v2819
    %v2835 = vadd.f32 %v2834, %v2820
    %v2836 = vadd.f32 %v2835, %v2821
    %v2837 = vadd.f32 %v2836, %v2822
    %v2838 = vadd.f32 %v2837, %v2823
    %v2839 = vadd.f32 %v2838, %v2824
    %v2840 = vadd.f32 %v2839, %v2825
    %v2841 = vadd.f32 %v2840, %v2826
    %v2842 = vadd.f32 %v2841, %v2827
    %v2843 = vadd.f32 %v2842, %v2828
    %v2844 = vadd.f32 %v2843, %v2829
    %v2845 = vadd.f32 %v2844, %v2830
    %v2846 = vadd.f32 %v2845, %v2831
    %v2847 = vrot.slane %v2846, 4
    %v2848 = vadd.f32 %v2846, %v2847
    %v2849 = vrot.slane %v2848, 2
    %v2850 = vadd.f32 %v2848, %v2849
    %v2851 = vrot.slane %v2850, 1
    %v2852 = vadd.f32 %v2850, %v2851
    %v2853 = vmul.f32 %v2800, %v2698
    %v2854 = vmul.f32 %v2801, %v2698
    %v2855 = vmul.f32 %v2802, %v2698
    %v2856 = vmul.f32 %v2803, %v2698
    %v2857 = vmul.f32 %v2804, %v2698
    %v2858 = vmul.f32 %v2805, %v2698
    %v2859 = vmul.f32 %v2806, %v2698
    %v2860 = vmul.f32 %v2807, %v2698
    %v2861 = vmul.f32 %v2808, %v2698
    %v2862 = vmul.f32 %v2809, %v2698
    %v2863 = vmul.f32 %v2810, %v2698
    %v2864 = vmul.f32 %v2811, %v2698
    %v2865 = vmul.f32 %v2812, %v2698
    %v2866 = vmul.f32 %v2813, %v2698
    %v2867 = vmul.f32 %v2814, %v2698
    %v2868 = vmul.f32 %v2815, %v2698
    %2869 = vadd.xlane.f32.xlu0 %v2853
    %v2870 = vpop.xlane.xlu0 %2869
    %2871 = vadd.xlane.f32.xlu0 %v2854
    %v2872 = vpop.xlane.xlu0 %2871
    %2873 = vadd.xlane.f32.xlu0 %v2855
    %v2874 = vpop.xlane.xlu0 %2873
    %2875 = vadd.xlane.f32.xlu0 %v2856
    %v2876 = vpop.xlane.xlu0 %2875
    %2877 = vadd.xlane.f32.xlu0 %v2857
    %v2878 = vpop.xlane.xlu0 %2877
    %2879 = vadd.xlane.f32.xlu0 %v2858
    %v2880 = vpop.xlane.xlu0 %2879
    %2881 = vadd.xlane.f32.xlu0 %v2859
    %v2882 = vpop.xlane.xlu0 %2881
    %2883 = vadd.xlane.f32.xlu0 %v2860
    %v2884 = vpop.xlane.xlu0 %2883
    %2885 = vadd.xlane.f32.xlu0 %v2861
    %v2886 = vpop.xlane.xlu0 %2885
    %2887 = vadd.xlane.f32.xlu0 %v2862
    %v2888 = vpop.xlane.xlu0 %2887
    %2889 = vadd.xlane.f32.xlu0 %v2863
    %v2890 = vpop.xlane.xlu0 %2889
    %2891 = vadd.xlane.f32.xlu0 %v2864
    %v2892 = vpop.xlane.xlu0 %2891
    %2893 = vadd.xlane.f32.xlu0 %v2865
    %v2894 = vpop.xlane.xlu0 %2893
    %2895 = vadd.xlane.f32.xlu0 %v2866
    %v2896 = vpop.xlane.xlu0 %2895
    %2897 = vadd.xlane.f32.xlu0 %v2867
    %v2898 = vpop.xlane.xlu0 %2897
    %2899 = vadd.xlane.f32.xlu0 %v2868
    %v2900 = vpop.xlane.xlu0 %2899
    %vm2901 = vcmp.eq.f32.partialorder %v2870, 0.0
    %vm2902 = vcmp.eq.f32.partialorder %v2872, 0.0
    %vm2903 = vcmp.eq.f32.partialorder %v2874, 0.0
    %vm2904 = vcmp.eq.f32.partialorder %v2876, 0.0
    %vm2905 = vcmp.eq.f32.partialorder %v2878, 0.0
    %vm2906 = vcmp.eq.f32.partialorder %v2880, 0.0
    %vm2907 = vcmp.eq.f32.partialorder %v2882, 0.0
    %vm2908 = vcmp.eq.f32.partialorder %v2884, 0.0
    %vm2909 = vcmp.eq.f32.partialorder %v2886, 0.0
    %vm2910 = vcmp.eq.f32.partialorder %v2888, 0.0
    %vm2911 = vcmp.eq.f32.partialorder %v2890, 0.0
    %vm2912 = vcmp.eq.f32.partialorder %v2892, 0.0
    %vm2913 = vcmp.eq.f32.partialorder %v2894, 0.0
    %vm2914 = vcmp.eq.f32.partialorder %v2896, 0.0
    %vm2915 = vcmp.eq.f32.partialorder %v2898, 0.0
    %vm2916 = vcmp.eq.f32.partialorder %v2900, 0.0
    %v2917 = vsel %vm2901, 1, 0
    %v2918 = vsel %vm2902, 1, 0
    %v2919 = vsel %vm2903, 1, 0
    %v2920 = vsel %vm2904, 1, 0
    %v2921 = vsel %vm2905, 1, 0
    %v2922 = vsel %vm2906, 1, 0
    %v2923 = vsel %vm2907, 1, 0
    %v2924 = vsel %vm2908, 1, 0
    %v2925 = vsel %vm2909, 1, 0
    %v2926 = vsel %vm2910, 1, 0
    %v2927 = vsel %vm2911, 1, 0
    %v2928 = vsel %vm2912, 1, 0
    %v2929 = vsel %vm2913, 1, 0
    %v2930 = vsel %vm2914, 1, 0
    %v2931 = vsel %vm2915, 1, 0
    %v2932 = vsel %vm2916, 1, 0
    %v2933 = vcvt.s32.f32 %v2917
    %v2934 = vcvt.s32.f32 %v2918
    %v2935 = vcvt.s32.f32 %v2919
    %v2936 = vcvt.s32.f32 %v2920
    %v2937 = vcvt.s32.f32 %v2921
    %v2938 = vcvt.s32.f32 %v2922
    %v2939 = vcvt.s32.f32 %v2923
    %v2940 = vcvt.s32.f32 %v2924
    %v2941 = vcvt.s32.f32 %v2925
    %v2942 = vcvt.s32.f32 %v2926
    %v2943 = vcvt.s32.f32 %v2927
    %v2944 = vcvt.s32.f32 %v2928
    %v2945 = vcvt.s32.f32 %v2929
    %v2946 = vcvt.s32.f32 %v2930
    %v2947 = vcvt.s32.f32 %v2931
    %v2948 = vcvt.s32.f32 %v2932
    %v2949 = vsub.f32 1.0, %v2852
    %v2950 = vadd.f32 %v2949, %v2721
    %v2951 = vadd.f32 %v2949, %v2724
    %v2952 = vadd.f32 %v2949, %v2727
    %v2953 = vadd.f32 %v2949, %v2730
    %v2954 = vadd.f32 %v2949, %v2733
    %v2955 = vadd.f32 %v2949, %v2736
    %v2956 = vadd.f32 %v2949, %v2739
    %v2957 = vadd.f32 %v2949, %v2742
    %v2958 = vadd.f32 %v2949, %v2745
    %v2959 = vadd.f32 %v2949, %v2748
    %v2960 = vadd.f32 %v2949, %v2751
    %v2961 = vadd.f32 %v2949, %v2754
    %v2962 = vadd.f32 %v2949, %v2757
    %v2963 = vadd.f32 %v2949, %v2760
    %v2964 = vadd.f32 %v2949, %v2763
    %v2965 = vadd.f32 %v2949, %v2766
    %v2966 = vmax.f32 %v2950, 0.0
    %v2967 = vmax.f32 %v2951, 0.0
    %v2968 = vmax.f32 %v2952, 0.0
    %v2969 = vmax.f32 %v2953, 0.0
    %v2970 = vmax.f32 %v2954, 0.0
    %v2971 = vmax.f32 %v2955, 0.0
    %v2972 = vmax.f32 %v2956, 0.0
    %v2973 = vmax.f32 %v2957, 0.0
    %v2974 = vmax.f32 %v2958, 0.0
    %v2975 = vmax.f32 %v2959, 0.0
    %v2976 = vmax.f32 %v2960, 0.0
    %v2977 = vmax.f32 %v2961, 0.0
    %v2978 = vmax.f32 %v2962, 0.0
    %v2979 = vmax.f32 %v2963, 0.0
    %v2980 = vmax.f32 %v2964, 0.0
    %v2981 = vmax.f32 %v2965, 0.0
    %v2982 = vmul.f32 %v2698, %v2933
    %v2983 = vmul.f32 %v2698, %v2934
    %v2984 = vmul.f32 %v2698, %v2935
    %v2985 = vmul.f32 %v2698, %v2936
    %v2986 = vmul.f32 %v2698, %v2937
    %v2987 = vmul.f32 %v2698, %v2938
    %v2988 = vmul.f32 %v2698, %v2939
    %v2989 = vmul.f32 %v2698, %v2940
    %v2990 = vmul.f32 %v2698, %v2941
    %v2991 = vmul.f32 %v2698, %v2942
    %v2992 = vmul.f32 %v2698, %v2943
    %v2993 = vmul.f32 %v2698, %v2944
    %v2994 = vmul.f32 %v2698, %v2945
    %v2995 = vmul.f32 %v2698, %v2946
    %v2996 = vmul.f32 %v2698, %v2947
    %v2997 = vmul.f32 %v2698, %v2948
    %v2998 = vmul.f32 %v2966, %v2982
    %v2999 = vmul.f32 %v2967, %v2983
    %v3000 = vmul.f32 %v2968, %v2984
    %v3001 = vmul.f32 %v2969, %v2985
    %v3002 = vmul.f32 %v2970, %v2986
    %v3003 = vmul.f32 %v2971, %v2987
    %v3004 = vmul.f32 %v2972, %v2988
    %v3005 = vmul.f32 %v2973, %v2989
    %v3006 = vmul.f32 %v2974, %v2990
    %v3007 = vmul.f32 %v2975, %v2991
    %v3008 = vmul.f32 %v2976, %v2992
    %v3009 = vmul.f32 %v2977, %v2993
    %v3010 = vmul.f32 %v2978, %v2994
    %v3011 = vmul.f32 %v2979, %v2995
    %v3012 = vmul.f32 %v2980, %v2996
    %v3013 = vmul.f32 %v2981, %v2997
    %v3014 = vadd.f32 %v2998, %v2999
    %v3015 = vadd.f32 %v3014, %v3000
    %v3016 = vadd.f32 %v3015, %v3001
    %v3017 = vadd.f32 %v3016, %v3002
    %v3018 = vadd.f32 %v3017, %v3003
    %v3019 = vadd.f32 %v3018, %v3004
    %v3020 = vadd.f32 %v3019, %v3005
    %v3021 = vadd.f32 %v3020, %v3006
    %v3022 = vadd.f32 %v3021, %v3007
    %v3023 = vadd.f32 %v3022, %v3008
    %v3024 = vadd.f32 %v3023, %v3009
    %v3025 = vadd.f32 %v3024, %v3010
    %v3026 = vadd.f32 %v3025, %v3011
    %v3027 = vadd.f32 %v3026, %v3012
    %v3028 = vadd.f32 %v3027, %v3013
    %3029 = vadd.xlane.f32.xlu0 %v3028
    %v3030 = vpop.xlane.xlu0 %3029
    %v3031 = vrot.slane %v3030, 4
    %v3032 = vadd.f32 %v3030, %v3031
    %v3033 = vrot.slane %v3032, 2
    %v3034 = vadd.f32 %v3032, %v3033
    %v3035 = vrot.slane %v3034, 1
    %v3036 = vadd.f32 %v3034, %v3035
    %s3037 = vtos %v3036
    %v3038 = vstv %s3037
    %v3039 = vsel %vm2700, %v3038, 0.0
    %v3040 = vadd.f32 %v2666, %v3039
    %v3041 = vmul.f32 %v3040, 0.125
    %vm3042 = vcmask 57344
    %3043 = vst.msk [vmem:[#allocation2] sm:$0x1] %vm3042, %v3041
    // Predicated region
    $region10: #{tpu_custom_call.1} parent=1 // pred_check
      _
    $region11: #{tpu_custom_call.1} parent=1 // pred_check_branch
      %3045 = sbr.rel (0) target = $region13
    $region12: #{tpu_custom_call.1} parent=1 // pred_region
      %3047 = vsyncadd [#allocation3], 0
      %s3049 = sshll.u32 [#allocation2], 4
      %s3050 = int_to_ptr.vmem [resolvable:$true] %s3049
      %s3051 = sshll.u32 %s2, 4
      %s3052 = int_to_ptr.hbm [resolvable:$true] %s3051
      %3054 = dma.vmem_to_hbm [thread:$0]  %s3050, 16, %s3052, [#allocation3]
    $region13: #{tpu_custom_call.1} parent=1 // pred_fallthru
      _
    // Predicated region
    $region14: #{tpu_custom_call.1} parent=1 // pred_check
      _
    $region15: #{tpu_custom_call.1} parent=1 // pred_check_branch
      %3056 = sbr.rel (0) target = $region17
    $region16: #{tpu_custom_call.1} parent=1 // pred_region
      %3058 = dma.done [#allocation3], 16
    $region17: #{tpu_custom_call.1} parent=1 // pred_fallthru
      _
    %3059 = vsyncpa [#allocation3], 1

</llo_original>
